<compile_context>
chip_gen: v7x
topology: tpu7x:2x2x1
jax: 0.10.0
libtpu: 0.0.40
codegen_flags: <defaults>
</compile_context>

<pallas_src>
import functools
import math

import numpy as np
import jax
import jax.numpy as jnp
from jax.experimental import pallas as pl
from jax.experimental.pallas import tpu as pltpu

CENTER_VARIANCE = 0.1
SIZE_VARIANCE = 0.2
_VMEM_LIMIT = 32 * 1024 * 1024


def _round_up(x, m):
    return ((x + m - 1) // m) * m


# ---------------------------------------------------------------------------
# Fused detector kernel: one image per grid step.
#   backbone patchify matmul + ReLU  ->  stacked 3x3 head conv  ->  SSD decode
# ---------------------------------------------------------------------------
def _detector_kernel(xp_ref, w_bb_ref, b_bb_ref, w_head_ref,
                     dbase_ref, passcv_ref, dsize_ref, svmask_ref,
                     o_ref, stack_ref, *, Hf, Wf, C):
    # ---- backbone: stride-32 patchify conv (full-K matmul, bf16 operands, f32 acc)
    feat = jnp.dot(xp_ref[0], w_bb_ref[...], preferred_element_type=jnp.float32)
    feat = jnp.maximum(feat + b_bb_ref[...], 0.0)            # (Hf*Wf, C) f32

    # ---- assemble the 9 shifted tap views as one (Rv, 9*C) stacked matrix in VMEM.
    #      Zero-init provides the zero halo of the padding=1 conv; only in-bounds
    #      (tap, row) pieces are copied.  All slice offsets are static.
    stack_ref[...] = jnp.zeros_like(stack_ref)
    t = 0
    for dy in (-1, 0, 1):
        y0, y1 = max(0, -dy), min(Hf, Hf - dy)
        for dx in (-1, 0, 1):
            x0, x1 = max(0, -dx), min(Wf, Wf - dx)
            L = x1 - x0
            for y in range(y0, y1):
                dst = y * Wf + x0
                src = (y + dy) * Wf + (x0 + dx)
                stack_ref[dst:dst + L, t * C:(t + 1) * C] = feat[src:src + L, :]
            t += 1

    # ---- 3x3 head conv as ONE stacked-K matmul (bf16 operands, f32 accumulation)
    acc = jnp.dot(stack_ref[...].astype(jnp.bfloat16), w_head_ref[...],
                  preferred_element_type=jnp.float32)         # (Rv, n_out)

    # ---- fused SSD decode epilogue (conv bias + variances folded into the tables):
    #      cls columns:   out = acc + bias
    #      cx/cy columns: out = d_c + (acc + bias) * CV * d_wh
    #      w/h columns:   out = d_wh * exp((acc + bias) * SV)
    o_ref[0] = (dbase_ref[...] + acc * passcv_ref[...]
                + dsize_ref[...] * jnp.exp(acc * svmask_ref[...]))


def detector_forward(xp, w_bb, b_bb, w_head, dbase, passcv, dsize, svmask,
                     *, Hf, Wf, C, Rv, n_out):
    B, n_valid, Kin = xp.shape
    kernel = functools.partial(_detector_kernel, Hf=Hf, Wf=Wf, C=C)
    return pl.pallas_call(
        kernel,
        out_shape=jax.ShapeDtypeStruct((B, Rv, n_out), jnp.float32),
        grid=(B,),
        in_specs=[
            pl.BlockSpec((1, n_valid, Kin), lambda b: (b, 0, 0)),   # per-image patch rows
            pl.BlockSpec((Kin, C), lambda b: (0, 0)),               # backbone weight (resident)
            pl.BlockSpec((1, C), lambda b: (0, 0)),                 # backbone bias
            pl.BlockSpec((9 * C, n_out), lambda b: (0, 0)),         # stacked head weight
            pl.BlockSpec((Rv, n_out), lambda b: (0, 0)),            # decode: base table
            pl.BlockSpec((Rv, n_out), lambda b: (0, 0)),            # decode: pass/center-scale
            pl.BlockSpec((Rv, n_out), lambda b: (0, 0)),            # decode: size table
            pl.BlockSpec((1, n_out), lambda b: (0, 0)),             # decode: size-variance mask
        ],
        out_specs=pl.BlockSpec((1, Rv, n_out), lambda b: (b, 0, 0)),
        scratch_shapes=[pltpu.VMEM((Rv, 9 * C), jnp.float32)],
        compiler_params=pltpu.CompilerParams(
            dimension_semantics=("parallel",),     # v7x: batch shards across both TCs
            vmem_limit_bytes=_VMEM_LIMIT),
    )(xp, w_bb, b_bb, w_head, dbase, passcv, dsize, svmask)


# ---------------------------------------------------------------------------
# Default boxes (matches ObjectDetectionModel._generate_default_boxes)
# ---------------------------------------------------------------------------
def generate_default_boxes(feature_map_size, num_anchors_per_cell):
    feat_h, feat_w = feature_map_size
    if num_anchors_per_cell == 5:
        aspect_ratios = [1.0, 0.5, 2.0, 0.333, 3.0]
        scales = [0.1, 0.2, 0.2, 0.3, 0.3]
    elif num_anchors_per_cell == 6:
        aspect_ratios = [1.0, 2.0, 0.5, 3.0, 1.0 / 3.0, 1.0]
        scales = [0.1, 0.2, 0.2, 0.2, 0.2, 0.15]
    else:
        aspect_ratios = [1.0] * num_anchors_per_cell
        scales = [0.1 + i * 0.15 for i in range(num_anchors_per_cell)]
    boxes = []
    cell_h, cell_w = 1.0 / feat_h, 1.0 / feat_w
    for y in range(feat_h):
        for x in range(feat_w):
            cx = (x + 0.5) * cell_w
            cy = (y + 0.5) * cell_h
            for k in range(num_anchors_per_cell):
                s, ar = scales[k], aspect_ratios[k]
                w = s * math.sqrt(ar)
                h = s / math.sqrt(ar)
                boxes.append([cx - w / 2.0, cy - h / 2.0, cx + w / 2.0, cy + h / 2.0])
    return np.clip(np.asarray(boxes, dtype=np.float32), 0.0, 1.0)


# ---------------------------------------------------------------------------
# Model
# ---------------------------------------------------------------------------
class ObjectDetectionModelPallas:
    def __init__(self, num_classes_fg, num_anchors_per_cell=5,
                 backbone_output_channels=256,
                 image_size_for_default_boxes=(128, 128), seed=0):
        self.num_classes_fg = num_classes_fg
        self.num_classes_loss = num_classes_fg + 1
        self.A = num_anchors_per_cell
        self.C_bb = backbone_output_channels
        self.patch = 32
        self.image_size_for_default_boxes = image_size_for_default_boxes
        self.Hf = image_size_for_default_boxes[0] // self.patch
        self.Wf = image_size_for_default_boxes[1] // self.patch
        self.n_valid = self.Hf * self.Wf
        self.Rv = _round_up(self.n_valid, 8)

        A, NC, C = self.A, self.num_classes_loss, self.C_bb
        self.n_cls = A * NC
        self.n_box = A * 4
        self.n_out = _round_up(self.n_cls + self.n_box, 128)   # lane-dense head width
        self.Kin = 3 * self.patch * self.patch

        key = jax.random.PRNGKey(seed)
        k1, k2, k3 = jax.random.split(key, 3)
        # backbone: stride-32 patchify conv weights (see TODO at top of file)
        self.w_backbone = (jax.random.normal(k1, (self.Kin, C), jnp.float32)
                           * 0.02).astype(jnp.bfloat16)
        self.b_backbone = jnp.zeros((1, C), jnp.float32)

        # detection head (3x3 conv), stacked over the 9 taps; columns = [cls | box | pad].
        # TODO(synk): to load real pretrained SSD head weights, map them as
        # w_head[(dy*3+dx)*C + c_in, c_out] = W_torch[c_out, c_in, dy, dx].
        w_cls = np.asarray(jax.random.normal(k2, (9, C, self.n_cls), jnp.float32)) * 0.01
        w_box = np.asarray(jax.random.normal(k3, (9, C, self.n_box), jnp.float32)) * 0.01
        w_head = np.zeros((9, C, self.n_out), np.float32)
        w_head[:, :, :self.n_cls] = w_cls
        w_head[:, :, self.n_cls:self.n_cls + self.n_box] = w_box
        self.w_head_stacked = jnp.asarray(w_head.reshape(9 * C, self.n_out), jnp.bfloat16)
        self.b_head = np.zeros((1, self.n_out), np.float32)     # conv bias (folded below)

        # default boxes + fused-decode lookup tables (bias / variances folded host-side)
        d_np = generate_default_boxes((self.Hf, self.Wf), A)            # (N, 4) xyxy
        self.default_boxes_xyxy = jnp.asarray(d_np)
        dc = np.stack([(d_np[:, 0] + d_np[:, 2]) / 2.0,
                       (d_np[:, 1] + d_np[:, 3]) / 2.0,
                       d_np[:, 2] - d_np[:, 0],
                       d_np[:, 3] - d_np[:, 1]], axis=-1)               # (N, 4) cxcywh
        self.default_boxes_cxcywh = jnp.asarray(dc)

        dbase = np.zeros((self.Rv, self.n_out), np.float32)
        passcv = np.zeros((self.Rv, self.n_out), np.float32)
        dsize = np.zeros((self.Rv, self.n_out), np.float32)
        svmask = np.zeros((1, self.n_out), np.float32)
        passcv[:self.n_valid, :self.n_cls] = 1.0                        # cls pass-through
        for r in range(self.n_valid):
            for a in range(A):
                n = r * A + a
                col = self.n_cls + a * 4
                dbase[r, col + 0] = dc[n, 0]                            # default cx
                dbase[r, col + 1] = dc[n, 1]                            # default cy
                passcv[r, col + 0] = CENTER_VARIANCE * dc[n, 2]
                passcv[r, col + 1] = CENTER_VARIANCE * dc[n, 3]
                dsize[r, col + 2] = dc[n, 2]                            # default w
                dsize[r, col + 3] = dc[n, 3]                            # default h
                svmask[0, col + 2] = SIZE_VARIANCE
                svmask[0, col + 3] = SIZE_VARIANCE
        # fold the head conv bias into the decode tables (exact rewrite)
        dbase[:self.n_valid] += self.b_head * passcv[:self.n_valid]
        dsize[:self.n_valid] *= np.exp(self.b_head * svmask)
        self.dbase = jnp.asarray(dbase)
        self.passcv = jnp.asarray(passcv)
        self.dsize = jnp.asarray(dsize)
        self.svmask = jnp.asarray(svmask)

        self._forward_jit = jax.jit(self._forward)

    # ------------------------------------------------------------------ forward
    def _forward(self, images):
        B, Cin, H, W = images.shape
        Hf, Wf = H // self.patch, W // self.patch
        if Hf * Wf * self.A != self.default_boxes_xyxy.shape[0]:
            raise ValueError("Mismatch between head predictions and default boxes")

        # NCHW -> per-image patch rows (one XLA relayout op; see TODO at top of file)
        x = images.astype(jnp.bfloat16)
        x = x.reshape(B, Cin, Hf, self.patch, Wf, self.patch)
        x = jnp.transpose(x, (0, 2, 4, 1, 3, 5)).reshape(B, Hf * Wf, self.Kin)

        out = detector_forward(
            x, self.w_backbone, self.b_backbone, self.w_head_stacked,
            self.dbase, self.passcv, self.dsize, self.svmask,
            Hf=Hf, Wf=Wf, C=self.C_bb, Rv=self.Rv, n_out=self.n_out)   # (B, Rv, 128)

        valid = out[:, :Hf * Wf, :]
        N = Hf * Wf * self.A
        cls_logits = valid[:, :, :self.n_cls].reshape(B, N, self.num_classes_loss)
        bbox_pred_cxcywh = valid[:, :, self.n_cls:self.n_cls + self.n_box].reshape(B, N, 4)
        return cls_logits, bbox_pred_cxcywh, self.default_boxes_xyxy

    def __call__(self, images):
        return self._forward_jit(images)

    # -------------------------------------------------------- pure-JAX reference
    def reference_forward(self, images):
        B, Cin, H, W = images.shape
        Hf, Wf = H // self.patch, W // self.patch
        C = self.C_bb
        x = images.astype(jnp.bfloat16).astype(jnp.float32)
        x = x.reshape(B, Cin, Hf, self.patch, Wf, self.patch)
        x = jnp.transpose(x, (0, 2, 4, 1, 3, 5)).reshape(B * Hf * Wf, self.Kin)
        feat = jnp.maximum(x @ self.w_backbone.astype(jnp.float32)
                           + self.b_backbone.astype(jnp.float32), 0.0)
        feat = feat.astype(jnp.bfloat16).astype(jnp.float32).reshape(B, Hf, Wf, C)
        featp = jnp.pad(feat, ((0, 0), (1, 1), (1, 1), (0, 0)))
        w_h = self.w_head_stacked.astype(jnp.float32).reshape(9, C, self.n_out)
        out = jnp.zeros((B, Hf, Wf, self.n_out), jnp.float32)
        taps = [(dy, dx) for dy in range(3) for dx in range(3)]
        for t, (dy, dx) in enumerate(taps):
            out = out + jnp.einsum('bhwc,cn->bhwn',
                                   featp[:, dy:dy + Hf, dx:dx + Wf, :], w_h[t])
        out = out + jnp.asarray(self.b_head)[0]
        N = Hf * Wf * self.A
        cls = out[..., :self.n_cls].reshape(B, N, self.num_classes_loss)
        off = out[..., self.n_cls:self.n_cls + self.n_box].reshape(B, N, 4)
        d = self.default_boxes_cxcywh
        pred_cx = d[None, :, 0] + off[..., 0] * CENTER_VARIANCE * d[None, :, 2]
        pred_cy = d[None, :, 1] + off[..., 1] * CENTER_VARIANCE * d[None, :, 3]
        pred_w = d[None, :, 2] * jnp.exp(off[..., 2] * SIZE_VARIANCE)
        pred_h = d[None, :, 3] * jnp.exp(off[..., 3] * SIZE_VARIANCE)
        bbox = jnp.stack([pred_cx, pred_cy, pred_w, pred_h], axis=-1)
        return cls, bbox


# ---------------------------------------------------------------------------
if __name__ == "__main__":
    B, H, W = 2, 128, 128               # stride-32 backbone -> 4x4 feature map, 80 anchors
    num_classes_fg = 20

    model = ObjectDetectionModelPallas(
        num_classes_fg=num_classes_fg,
        num_anchors_per_cell=5,
        backbone_output_channels=256,
        image_size_for_default_boxes=(H, W),
        seed=0,
    )

    images = jax.random.normal(jax.random.PRNGKey(0), (B, 3, H, W), dtype=jnp.float32)

    cls_logits, bbox_pred, default_boxes = model(images)
    jax.block_until_ready((cls_logits, bbox_pred, default_boxes))

    N = (H // 32) * (W // 32) * 5
    assert cls_logits.shape == (B, N, num_classes_fg + 1), cls_logits.shape
    assert bbox_pred.shape == (B, N, 4), bbox_pred.shape
    assert default_boxes.shape == (N, 4), default_boxes.shape

    # correctness vs. a pure-JAX reference using the same bf16 operand rounding
    cls_ref, bbox_ref = model.reference_forward(images)
    np.testing.assert_allclose(np.asarray(cls_logits), np.asarray(cls_ref),
                               rtol=2e-2, atol=2e-2)
    np.testing.assert_allclose(np.asarray(bbox_pred), np.asarray(bbox_ref),
                               rtol=2e-2, atol=2e-2)

    print("KERNEL_OK")
</pallas_src>

<mosaic_0001>
module attributes {stable_mosaic.version = 11 : i64} {
  func.func @_detector_kernel(%arg0: i32, %arg1: memref<1x16x3072xbf16, #tpu.memory_space<vmem>>, %arg2: memref<3072x256xbf16, #tpu.memory_space<vmem>>, %arg3: memref<1x256xf32, #tpu.memory_space<vmem>>, %arg4: memref<2304x128xbf16, #tpu.memory_space<vmem>>, %arg5: memref<16x128xf32, #tpu.memory_space<vmem>>, %arg6: memref<16x128xf32, #tpu.memory_space<vmem>>, %arg7: memref<16x128xf32, #tpu.memory_space<vmem>>, %arg8: memref<1x128xf32, #tpu.memory_space<vmem>>, %arg9: memref<1x16x128xf32, #tpu.memory_space<vmem>>, %arg10: memref<16x2304xf32, #tpu.memory_space<vmem>>) attributes {dimension_semantics = [#tpu.dimension_semantics<parallel>], iteration_bounds = array<i64: 2>, scalar_prefetch = 0 : i64, scratch_operands = 1 : i64, tpu.core_type = #tpu.core_type<tc>, window_params = [{transform_indices = @transform_0, window_bounds = array<i64: 1, 16, 3072>}, {pipeline_mode = #tpu.pipeline_mode<synchronous>, transform_indices = @transform_1, window_bounds = array<i64: 3072, 256>}, {pipeline_mode = #tpu.pipeline_mode<synchronous>, transform_indices = @transform_2, window_bounds = array<i64: 1, 256>}, {pipeline_mode = #tpu.pipeline_mode<synchronous>, transform_indices = @transform_3, window_bounds = array<i64: 2304, 128>}, {pipeline_mode = #tpu.pipeline_mode<synchronous>, transform_indices = @transform_4, window_bounds = array<i64: 16, 128>}, {pipeline_mode = #tpu.pipeline_mode<synchronous>, transform_indices = @transform_5, window_bounds = array<i64: 16, 128>}, {pipeline_mode = #tpu.pipeline_mode<synchronous>, transform_indices = @transform_6, window_bounds = array<i64: 16, 128>}, {pipeline_mode = #tpu.pipeline_mode<synchronous>, transform_indices = @transform_7, window_bounds = array<i64: 1, 128>}, {transform_indices = @transform_8, window_bounds = array<i64: 1, 16, 128>}]} {
    %c0 = arith.constant 0 : index
    %c0_0 = arith.constant 0 : index
    %c0_1 = arith.constant 0 : index
    %0 = vector.load %arg1[%c0, %c0_0, %c0_1] : memref<1x16x3072xbf16, #tpu.memory_space<vmem>>, vector<1x16x3072xbf16>
    %1 = vector.shape_cast %0 : vector<1x16x3072xbf16> to vector<16x3072xbf16>
    %c0_2 = arith.constant 0 : index
    %c0_3 = arith.constant 0 : index
    %2 = vector.load %arg2[%c0_2, %c0_3] : memref<3072x256xbf16, #tpu.memory_space<vmem>>, vector<3072x256xbf16>
    %cst = arith.constant dense<0.000000e+00> : vector<16x256xf32>
    %3 = tpu.matmul %1, %2, %cst {dimension_numbers = #tpu.dot_dimension_numbers<[1], [0], [0], [1], [0, 0, 1, 1], [], []>} : vector<16x3072xbf16>, vector<3072x256xbf16>, vector<16x256xf32> -> vector<16x256xf32>
    %c0_4 = arith.constant 0 : index
    %c0_5 = arith.constant 0 : index
    %4 = vector.load %arg3[%c0_4, %c0_5] : memref<1x256xf32, #tpu.memory_space<vmem>>, vector<1x256xf32>
    %5 = vector.broadcast %4 : vector<1x256xf32> to vector<16x256xf32>
    %6 = arith.addf %3, %5 : vector<16x256xf32>
    %cst_6 = arith.constant 0.000000e+00 : f32
    %7 = vector.broadcast %cst_6 : f32 to vector<16x256xf32>
    %8 = arith.maximumf %6, %7 : vector<16x256xf32>
    %cst_7 = arith.constant 0.000000e+00 : f32
    %9 = vector.broadcast %cst_7 : f32 to vector<16x2304xf32>
    %c0_8 = arith.constant 0 : index
    %c0_9 = arith.constant 0 : index
    %10 = vector.load %arg10[%c0_8, %c0_9] : memref<16x2304xf32, #tpu.memory_space<vmem>>, vector<16x2304xf32>
    tpu.vector_store %arg10[%c0_8, %c0_9], %9 {strides = array<i32>} : memref<16x2304xf32, #tpu.memory_space<vmem>>, vector<16x2304xf32>,
    %11 = vector.extract_strided_slice %8 {offsets = [0, 0], sizes = [3, 256], strides = [1, 1]} : vector<16x256xf32> to vector<3x256xf32>
    %c5 = arith.constant 5 : index
    %c0_10 = arith.constant 0 : index
    %12 = vector.load %arg10[%c5, %c0_10] : memref<16x2304xf32, #tpu.memory_space<vmem>>, vector<3x256xf32>
    tpu.vector_store %arg10[%c5, %c0_10], %11 {strides = array<i32>} : memref<16x2304xf32, #tpu.memory_space<vmem>>, vector<3x256xf32>,
    %13 = vector.extract_strided_slice %8 {offsets = [4, 0], sizes = [3, 256], strides = [1, 1]} : vector<16x256xf32> to vector<3x256xf32>
    %c9 = arith.constant 9 : index
    %c0_11 = arith.constant 0 : index
    %14 = vector.load %arg10[%c9, %c0_11] : memref<16x2304xf32, #tpu.memory_space<vmem>>, vector<3x256xf32>
    tpu.vector_store %arg10[%c9, %c0_11], %13 {strides = array<i32>} : memref<16x2304xf32, #tpu.memory_space<vmem>>, vector<3x256xf32>,
    %15 = vector.extract_strided_slice %8 {offsets = [8, 0], sizes = [3, 256], strides = [1, 1]} : vector<16x256xf32> to vector<3x256xf32>
    %c13 = arith.constant 13 : index
    %c0_12 = arith.constant 0 : index
    %16 = vector.load %arg10[%c13, %c0_12] : memref<16x2304xf32, #tpu.memory_space<vmem>>, vector<3x256xf32>
    tpu.vector_store %arg10[%c13, %c0_12], %15 {strides = array<i32>} : memref<16x2304xf32, #tpu.memory_space<vmem>>, vector<3x256xf32>,
    %17 = vector.extract_strided_slice %8 {offsets = [0, 0], sizes = [4, 256], strides = [1, 1]} : vector<16x256xf32> to vector<4x256xf32>
    %c4 = arith.constant 4 : index
    %c256 = arith.constant 256 : index
    %18 = vector.load %arg10[%c4, %c256] : memref<16x2304xf32, #tpu.memory_space<vmem>>, vector<4x256xf32>
    tpu.vector_store %arg10[%c4, %c256], %17 {strides = array<i32>} : memref<16x2304xf32, #tpu.memory_space<vmem>>, vector<4x256xf32>,
    %19 = vector.extract_strided_slice %8 {offsets = [4, 0], sizes = [4, 256], strides = [1, 1]} : vector<16x256xf32> to vector<4x256xf32>
    %c8 = arith.constant 8 : index
    %c256_13 = arith.constant 256 : index
    %20 = vector.load %arg10[%c8, %c256_13] : memref<16x2304xf32, #tpu.memory_space<vmem>>, vector<4x256xf32>
    tpu.vector_store %arg10[%c8, %c256_13], %19 {strides = array<i32>} : memref<16x2304xf32, #tpu.memory_space<vmem>>, vector<4x256xf32>,
    %21 = vector.extract_strided_slice %8 {offsets = [8, 0], sizes = [4, 256], strides = [1, 1]} : vector<16x256xf32> to vector<4x256xf32>
    %c12 = arith.constant 12 : index
    %c256_14 = arith.constant 256 : index
    %22 = vector.load %arg10[%c12, %c256_14] : memref<16x2304xf32, #tpu.memory_space<vmem>>, vector<4x256xf32>
    tpu.vector_store %arg10[%c12, %c256_14], %21 {strides = array<i32>} : memref<16x2304xf32, #tpu.memory_space<vmem>>, vector<4x256xf32>,
    %23 = vector.extract_strided_slice %8 {offsets = [1, 0], sizes = [3, 256], strides = [1, 1]} : vector<16x256xf32> to vector<3x256xf32>
    %c4_15 = arith.constant 4 : index
    %c512 = arith.constant 512 : index
    %24 = vector.load %arg10[%c4_15, %c512] : memref<16x2304xf32, #tpu.memory_space<vmem>>, vector<3x256xf32>
    tpu.vector_store %arg10[%c4_15, %c512], %23 {strides = array<i32>} : memref<16x2304xf32, #tpu.memory_space<vmem>>, vector<3x256xf32>,
    %25 = vector.extract_strided_slice %8 {offsets = [5, 0], sizes = [3, 256], strides = [1, 1]} : vector<16x256xf32> to vector<3x256xf32>
    %c8_16 = arith.constant 8 : index
    %c512_17 = arith.constant 512 : index
    %26 = vector.load %arg10[%c8_16, %c512_17] : memref<16x2304xf32, #tpu.memory_space<vmem>>, vector<3x256xf32>
    tpu.vector_store %arg10[%c8_16, %c512_17], %25 {strides = array<i32>} : memref<16x2304xf32, #tpu.memory_space<vmem>>, vector<3x256xf32>,
    %27 = vector.extract_strided_slice %8 {offsets = [9, 0], sizes = [3, 256], strides = [1, 1]} : vector<16x256xf32> to vector<3x256xf32>
    %c12_18 = arith.constant 12 : index
    %c512_19 = arith.constant 512 : index
    %28 = vector.load %arg10[%c12_18, %c512_19] : memref<16x2304xf32, #tpu.memory_space<vmem>>, vector<3x256xf32>
    tpu.vector_store %arg10[%c12_18, %c512_19], %27 {strides = array<i32>} : memref<16x2304xf32, #tpu.memory_space<vmem>>, vector<3x256xf32>,
    %29 = vector.extract_strided_slice %8 {offsets = [0, 0], sizes = [3, 256], strides = [1, 1]} : vector<16x256xf32> to vector<3x256xf32>
    %c1 = arith.constant 1 : index
    %c768 = arith.constant 768 : index
    %30 = vector.load %arg10[%c1, %c768] : memref<16x2304xf32, #tpu.memory_space<vmem>>, vector<3x256xf32>
    tpu.vector_store %arg10[%c1, %c768], %29 {strides = array<i32>} : memref<16x2304xf32, #tpu.memory_space<vmem>>, vector<3x256xf32>,
    %31 = vector.extract_strided_slice %8 {offsets = [4, 0], sizes = [3, 256], strides = [1, 1]} : vector<16x256xf32> to vector<3x256xf32>
    %c5_20 = arith.constant 5 : index
    %c768_21 = arith.constant 768 : index
    %32 = vector.load %arg10[%c5_20, %c768_21] : memref<16x2304xf32, #tpu.memory_space<vmem>>, vector<3x256xf32>
    tpu.vector_store %arg10[%c5_20, %c768_21], %31 {strides = array<i32>} : memref<16x2304xf32, #tpu.memory_space<vmem>>, vector<3x256xf32>,
    %33 = vector.extract_strided_slice %8 {offsets = [8, 0], sizes = [3, 256], strides = [1, 1]} : vector<16x256xf32> to vector<3x256xf32>
    %c9_22 = arith.constant 9 : index
    %c768_23 = arith.constant 768 : index
    %34 = vector.load %arg10[%c9_22, %c768_23] : memref<16x2304xf32, #tpu.memory_space<vmem>>, vector<3x256xf32>
    tpu.vector_store %arg10[%c9_22, %c768_23], %33 {strides = array<i32>} : memref<16x2304xf32, #tpu.memory_space<vmem>>, vector<3x256xf32>,
    %35 = vector.extract_strided_slice %8 {offsets = [12, 0], sizes = [3, 256], strides = [1, 1]} : vector<16x256xf32> to vector<3x256xf32>
    %c13_24 = arith.constant 13 : index
    %c768_25 = arith.constant 768 : index
    %36 = vector.load %arg10[%c13_24, %c768_25] : memref<16x2304xf32, #tpu.memory_space<vmem>>, vector<3x256xf32>
    tpu.vector_store %arg10[%c13_24, %c768_25], %35 {strides = array<i32>} : memref<16x2304xf32, #tpu.memory_space<vmem>>, vector<3x256xf32>,
    %37 = vector.extract_strided_slice %8 {offsets = [0, 0], sizes = [4, 256], strides = [1, 1]} : vector<16x256xf32> to vector<4x256xf32>
    %c0_26 = arith.constant 0 : index
    %c1024 = arith.constant 1024 : index
    %38 = vector.load %arg10[%c0_26, %c1024] : memref<16x2304xf32, #tpu.memory_space<vmem>>, vector<4x256xf32>
    tpu.vector_store %arg10[%c0_26, %c1024], %37 {strides = array<i32>} : memref<16x2304xf32, #tpu.memory_space<vmem>>, vector<4x256xf32>,
    %39 = vector.extract_strided_slice %8 {offsets = [4, 0], sizes = [4, 256], strides = [1, 1]} : vector<16x256xf32> to vector<4x256xf32>
    %c4_27 = arith.constant 4 : index
    %c1024_28 = arith.constant 1024 : index
    %40 = vector.load %arg10[%c4_27, %c1024_28] : memref<16x2304xf32, #tpu.memory_space<vmem>>, vector<4x256xf32>
    tpu.vector_store %arg10[%c4_27, %c1024_28], %39 {strides = array<i32>} : memref<16x2304xf32, #tpu.memory_space<vmem>>, vector<4x256xf32>,
    %41 = vector.extract_strided_slice %8 {offsets = [8, 0], sizes = [4, 256], strides = [1, 1]} : vector<16x256xf32> to vector<4x256xf32>
    %c8_29 = arith.constant 8 : index
    %c1024_30 = arith.constant 1024 : index
    %42 = vector.load %arg10[%c8_29, %c1024_30] : memref<16x2304xf32, #tpu.memory_space<vmem>>, vector<4x256xf32>
    tpu.vector_store %arg10[%c8_29, %c1024_30], %41 {strides = array<i32>} : memref<16x2304xf32, #tpu.memory_space<vmem>>, vector<4x256xf32>,
    %43 = vector.extract_strided_slice %8 {offsets = [12, 0], sizes = [4, 256], strides = [1, 1]} : vector<16x256xf32> to vector<4x256xf32>
    %c12_31 = arith.constant 12 : index
    %c1024_32 = arith.constant 1024 : index
    %44 = vector.load %arg10[%c12_31, %c1024_32] : memref<16x2304xf32, #tpu.memory_space<vmem>>, vector<4x256xf32>
    tpu.vector_store %arg10[%c12_31, %c1024_32], %43 {strides = array<i32>} : memref<16x2304xf32, #tpu.memory_space<vmem>>, vector<4x256xf32>,
    %45 = vector.extract_strided_slice %8 {offsets = [1, 0], sizes = [3, 256], strides = [1, 1]} : vector<16x256xf32> to vector<3x256xf32>
    %c0_33 = arith.constant 0 : index
    %c1280 = arith.constant 1280 : index
    %46 = vector.load %arg10[%c0_33, %c1280] : memref<16x2304xf32, #tpu.memory_space<vmem>>, vector<3x256xf32>
    tpu.vector_store %arg10[%c0_33, %c1280], %45 {strides = array<i32>} : memref<16x2304xf32, #tpu.memory_space<vmem>>, vector<3x256xf32>,
    %47 = vector.extract_strided_slice %8 {offsets = [5, 0], sizes = [3, 256], strides = [1, 1]} : vector<16x256xf32> to vector<3x256xf32>
    %c4_34 = arith.constant 4 : index
    %c1280_35 = arith.constant 1280 : index
    %48 = vector.load %arg10[%c4_34, %c1280_35] : memref<16x2304xf32, #tpu.memory_space<vmem>>, vector<3x256xf32>
    tpu.vector_store %arg10[%c4_34, %c1280_35], %47 {strides = array<i32>} : memref<16x2304xf32, #tpu.memory_space<vmem>>, vector<3x256xf32>,
    %49 = vector.extract_strided_slice %8 {offsets = [9, 0], sizes = [3, 256], strides = [1, 1]} : vector<16x256xf32> to vector<3x256xf32>
    %c8_36 = arith.constant 8 : index
    %c1280_37 = arith.constant 1280 : index
    %50 = vector.load %arg10[%c8_36, %c1280_37] : memref<16x2304xf32, #tpu.memory_space<vmem>>, vector<3x256xf32>
    tpu.vector_store %arg10[%c8_36, %c1280_37], %49 {strides = array<i32>} : memref<16x2304xf32, #tpu.memory_space<vmem>>, vector<3x256xf32>,
    %51 = vector.extract_strided_slice %8 {offsets = [13, 0], sizes = [3, 256], strides = [1, 1]} : vector<16x256xf32> to vector<3x256xf32>
    %c12_38 = arith.constant 12 : index
    %c1280_39 = arith.constant 1280 : index
    %52 = vector.load %arg10[%c12_38, %c1280_39] : memref<16x2304xf32, #tpu.memory_space<vmem>>, vector<3x256xf32>
    tpu.vector_store %arg10[%c12_38, %c1280_39], %51 {strides = array<i32>} : memref<16x2304xf32, #tpu.memory_space<vmem>>, vector<3x256xf32>,
    %53 = vector.extract_strided_slice %8 {offsets = [4, 0], sizes = [3, 256], strides = [1, 1]} : vector<16x256xf32> to vector<3x256xf32>
    %c1_40 = arith.constant 1 : index
    %c1536 = arith.constant 1536 : index
    %54 = vector.load %arg10[%c1_40, %c1536] : memref<16x2304xf32, #tpu.memory_space<vmem>>, vector<3x256xf32>
    tpu.vector_store %arg10[%c1_40, %c1536], %53 {strides = array<i32>} : memref<16x2304xf32, #tpu.memory_space<vmem>>, vector<3x256xf32>,
    %55 = vector.extract_strided_slice %8 {offsets = [8, 0], sizes = [3, 256], strides = [1, 1]} : vector<16x256xf32> to vector<3x256xf32>
    %c5_41 = arith.constant 5 : index
    %c1536_42 = arith.constant 1536 : index
    %56 = vector.load %arg10[%c5_41, %c1536_42] : memref<16x2304xf32, #tpu.memory_space<vmem>>, vector<3x256xf32>
    tpu.vector_store %arg10[%c5_41, %c1536_42], %55 {strides = array<i32>} : memref<16x2304xf32, #tpu.memory_space<vmem>>, vector<3x256xf32>,
    %57 = vector.extract_strided_slice %8 {offsets = [12, 0], sizes = [3, 256], strides = [1, 1]} : vector<16x256xf32> to vector<3x256xf32>
    %c9_43 = arith.constant 9 : index
    %c1536_44 = arith.constant 1536 : index
    %58 = vector.load %arg10[%c9_43, %c1536_44] : memref<16x2304xf32, #tpu.memory_space<vmem>>, vector<3x256xf32>
    tpu.vector_store %arg10[%c9_43, %c1536_44], %57 {strides = array<i32>} : memref<16x2304xf32, #tpu.memory_space<vmem>>, vector<3x256xf32>,
    %59 = vector.extract_strided_slice %8 {offsets = [4, 0], sizes = [4, 256], strides = [1, 1]} : vector<16x256xf32> to vector<4x256xf32>
    %c0_45 = arith.constant 0 : index
    %c1792 = arith.constant 1792 : index
    %60 = vector.load %arg10[%c0_45, %c1792] : memref<16x2304xf32, #tpu.memory_space<vmem>>, vector<4x256xf32>
    tpu.vector_store %arg10[%c0_45, %c1792], %59 {strides = array<i32>} : memref<16x2304xf32, #tpu.memory_space<vmem>>, vector<4x256xf32>,
    %61 = vector.extract_strided_slice %8 {offsets = [8, 0], sizes = [4, 256], strides = [1, 1]} : vector<16x256xf32> to vector<4x256xf32>
    %c4_46 = arith.constant 4 : index
    %c1792_47 = arith.constant 1792 : index
    %62 = vector.load %arg10[%c4_46, %c1792_47] : memref<16x2304xf32, #tpu.memory_space<vmem>>, vector<4x256xf32>
    tpu.vector_store %arg10[%c4_46, %c1792_47], %61 {strides = array<i32>} : memref<16x2304xf32, #tpu.memory_space<vmem>>, vector<4x256xf32>,
    %63 = vector.extract_strided_slice %8 {offsets = [12, 0], sizes = [4, 256], strides = [1, 1]} : vector<16x256xf32> to vector<4x256xf32>
    %c8_48 = arith.constant 8 : index
    %c1792_49 = arith.constant 1792 : index
    %64 = vector.load %arg10[%c8_48, %c1792_49] : memref<16x2304xf32, #tpu.memory_space<vmem>>, vector<4x256xf32>
    tpu.vector_store %arg10[%c8_48, %c1792_49], %63 {strides = array<i32>} : memref<16x2304xf32, #tpu.memory_space<vmem>>, vector<4x256xf32>,
    %65 = vector.extract_strided_slice %8 {offsets = [5, 0], sizes = [3, 256], strides = [1, 1]} : vector<16x256xf32> to vector<3x256xf32>
    %c0_50 = arith.constant 0 : index
    %c2048 = arith.constant 2048 : index
    %66 = vector.load %arg10[%c0_50, %c2048] : memref<16x2304xf32, #tpu.memory_space<vmem>>, vector<3x256xf32>
    tpu.vector_store %arg10[%c0_50, %c2048], %65 {strides = array<i32>} : memref<16x2304xf32, #tpu.memory_space<vmem>>, vector<3x256xf32>,
    %67 = vector.extract_strided_slice %8 {offsets = [9, 0], sizes = [3, 256], strides = [1, 1]} : vector<16x256xf32> to vector<3x256xf32>
    %c4_51 = arith.constant 4 : index
    %c2048_52 = arith.constant 2048 : index
    %68 = vector.load %arg10[%c4_51, %c2048_52] : memref<16x2304xf32, #tpu.memory_space<vmem>>, vector<3x256xf32>
    tpu.vector_store %arg10[%c4_51, %c2048_52], %67 {strides = array<i32>} : memref<16x2304xf32, #tpu.memory_space<vmem>>, vector<3x256xf32>,
    %69 = vector.extract_strided_slice %8 {offsets = [13, 0], sizes = [3, 256], strides = [1, 1]} : vector<16x256xf32> to vector<3x256xf32>
    %c8_53 = arith.constant 8 : index
    %c2048_54 = arith.constant 2048 : index
    %70 = vector.load %arg10[%c8_53, %c2048_54] : memref<16x2304xf32, #tpu.memory_space<vmem>>, vector<3x256xf32>
    tpu.vector_store %arg10[%c8_53, %c2048_54], %69 {strides = array<i32>} : memref<16x2304xf32, #tpu.memory_space<vmem>>, vector<3x256xf32>,
    %c0_55 = arith.constant 0 : index
    %c0_56 = arith.constant 0 : index
    %71 = vector.load %arg10[%c0_55, %c0_56] : memref<16x2304xf32, #tpu.memory_space<vmem>>, vector<16x2304xf32>
    %72 = arith.truncf %71 : vector<16x2304xf32> to vector<16x2304xbf16>
    %c0_57 = arith.constant 0 : index
    %c0_58 = arith.constant 0 : index
    %73 = vector.load %arg4[%c0_57, %c0_58] : memref<2304x128xbf16, #tpu.memory_space<vmem>>, vector<2304x128xbf16>
    %cst_59 = arith.constant dense<0.000000e+00> : vector<16x128xf32>
    %74 = tpu.matmul %72, %73, %cst_59 {dimension_numbers = #tpu.dot_dimension_numbers<[1], [0], [0], [1], [0, 0, 1, 1], [], []>} : vector<16x2304xbf16>, vector<2304x128xbf16>, vector<16x128xf32> -> vector<16x128xf32>
    %c0_60 = arith.constant 0 : index
    %c0_61 = arith.constant 0 : index
    %75 = vector.load %arg5[%c0_60, %c0_61] : memref<16x128xf32, #tpu.memory_space<vmem>>, vector<16x128xf32>
    %c0_62 = arith.constant 0 : index
    %c0_63 = arith.constant 0 : index
    %76 = vector.load %arg6[%c0_62, %c0_63] : memref<16x128xf32, #tpu.memory_space<vmem>>, vector<16x128xf32>
    %77 = arith.mulf %74, %76 : vector<16x128xf32>
    %78 = arith.addf %75, %77 : vector<16x128xf32>
    %c0_64 = arith.constant 0 : index
    %c0_65 = arith.constant 0 : index
    %79 = vector.load %arg7[%c0_64, %c0_65] : memref<16x128xf32, #tpu.memory_space<vmem>>, vector<16x128xf32>
    %c0_66 = arith.constant 0 : index
    %c0_67 = arith.constant 0 : index
    %80 = vector.load %arg8[%c0_66, %c0_67] : memref<1x128xf32, #tpu.memory_space<vmem>>, vector<1x128xf32>
    %81 = vector.broadcast %80 : vector<1x128xf32> to vector<16x128xf32>
    %82 = arith.mulf %74, %81 : vector<16x128xf32>
    %83 = math.exp %82 : vector<16x128xf32>
    %84 = arith.mulf %79, %83 : vector<16x128xf32>
    %85 = arith.addf %78, %84 : vector<16x128xf32>
    %c0_68 = arith.constant 0 : index
    %c0_69 = arith.constant 0 : index
    %c0_70 = arith.constant 0 : index
    %86 = vector.load %arg9[%c0_68, %c0_69, %c0_70] : memref<1x16x128xf32, #tpu.memory_space<vmem>>, vector<1x16x128xf32>
    %87 = vector.shape_cast %86 : vector<1x16x128xf32> to vector<16x128xf32>
    %88 = vector.shape_cast %85 : vector<16x128xf32> to vector<1x16x128xf32>
    tpu.vector_store %arg9[%c0_68, %c0_69, %c0_70], %88 {strides = array<i32>} : memref<1x16x128xf32, #tpu.memory_space<vmem>>, vector<1x16x128xf32>,
    return
  }
  func.func @transform_0(%arg0: i32) -> (i32, i32, i32) {
    %c0_i32 = arith.constant 0 : i32
    %c0_i32_0 = arith.constant 0 : i32
    %c0_i32_1 = arith.constant 0 : i32
    return %arg0, %c0_i32, %c0_i32_0 : i32, i32, i32
  }
  func.func @transform_1(%arg0: i32) -> (i32, i32) {
    %c0_i32 = arith.constant 0 : i32
    %c0_i32_0 = arith.constant 0 : i32
    %c0_i32_1 = arith.constant 0 : i32
    return %c0_i32, %c0_i32_0 : i32, i32
  }
  func.func @transform_2(%arg0: i32) -> (i32, i32) {
    %c0_i32 = arith.constant 0 : i32
    %c0_i32_0 = arith.constant 0 : i32
    %c0_i32_1 = arith.constant 0 : i32
    return %c0_i32, %c0_i32_0 : i32, i32
  }
  func.func @transform_3(%arg0: i32) -> (i32, i32) {
    %c0_i32 = arith.constant 0 : i32
    %c0_i32_0 = arith.constant 0 : i32
    %c0_i32_1 = arith.constant 0 : i32
    return %c0_i32, %c0_i32_0 : i32, i32
  }
  func.func @transform_4(%arg0: i32) -> (i32, i32) {
    %c0_i32 = arith.constant 0 : i32
    %c0_i32_0 = arith.constant 0 : i32
    %c0_i32_1 = arith.constant 0 : i32
    return %c0_i32, %c0_i32_0 : i32, i32
  }
  func.func @transform_5(%arg0: i32) -> (i32, i32) {
    %c0_i32 = arith.constant 0 : i32
    %c0_i32_0 = arith.constant 0 : i32
    %c0_i32_1 = arith.constant 0 : i32
    return %c0_i32, %c0_i32_0 : i32, i32
  }
  func.func @transform_6(%arg0: i32) -> (i32, i32) {
    %c0_i32 = arith.constant 0 : i32
    %c0_i32_0 = arith.constant 0 : i32
    %c0_i32_1 = arith.constant 0 : i32
    return %c0_i32, %c0_i32_0 : i32, i32
  }
  func.func @transform_7(%arg0: i32) -> (i32, i32) {
    %c0_i32 = arith.constant 0 : i32
    %c0_i32_0 = arith.constant 0 : i32
    %c0_i32_1 = arith.constant 0 : i32
    return %c0_i32, %c0_i32_0 : i32, i32
  }
  func.func @transform_8(%arg0: i32) -> (i32, i32, i32) {
    %c0_i32 = arith.constant 0 : i32
    %c0_i32_0 = arith.constant 0 : i32
    %c0_i32_1 = arith.constant 0 : i32
    return %arg0, %c0_i32, %c0_i32_0 : i32, i32, i32
  }
}

</mosaic_0001>

<llo_original>
// kernel: _forward.1
$region0: #{_forward.1}
  #allocation0 [shape = 'u32[]', space=smem, size = 0x4, offset = 0x4, fixed_abs, tag = 'smem constant byte address 0x4 - core index']
  #allocation1 [shape = 'u32[144,128]{1,0:T(1,128)}', space=vmem, size = 0x12000, scoped, tag = 'internal scratch']
  #allocation2 [shape = 'f32[16,2304]{1,0:T(8,128)}', space=vmem, size = 0x24000, scoped, tag = 'scratch operand']
  %s0 = inlined_call_operand.vmem [shape: bf16[2,16,3072], index: 0, kind: input, shape index: {}]
  %s1 = inlined_call_operand.vmem [shape: bf16[3072,256], index: 1, kind: input, shape index: {}]
  %s2 = inlined_call_operand.vmem [shape: f32[1,256], index: 2, kind: input, shape index: {}]
  %s3 = inlined_call_operand.vmem [shape: bf16[2304,128], index: 3, kind: input, shape index: {}]
  %s4 = inlined_call_operand.vmem [shape: f32[16,128], index: 4, kind: input, shape index: {}]
  %s5 = inlined_call_operand.vmem [shape: f32[16,128], index: 5, kind: input, shape index: {}]
  %s6 = inlined_call_operand.vmem [shape: f32[16,128], index: 6, kind: input, shape index: {}]
  %s7 = inlined_call_operand.vmem [shape: f32[1,128], index: 7, kind: input, shape index: {}]
  %s8 = inlined_call_operand.vmem [shape: f32[2,16,128], index: 8, kind: output, shape index: {}]
  %s9 = sld [smem:[#allocation0]]
  $region65: #{_forward.1} parent=0
    _
  %s11 = ssub.s32 1, %s9
  %s12 = scalar_select 0, %s11, %s9
  loop: start=0, step=1, limit=4
  $region2: #{_forward.1} parent=0 // loop_pre_header
    _
  $region3: #{_forward.1} parent=0 // loop_header
    %s14 = sphi 0, %s18
    %p15 = scmp.ge.s32.totalorder %s14, 4
    %s24 = sphi 0, %s26
    %s27 = sphi 0, %s24
    %s28 = sphi 0, %s27
    %s44 = sphi 0, %s28
    %s48 = sphi 0, %s48
    %s50 = sphi 0, %s48
    %s51 = sphi 0, %s50
    %s65 = sphi 0, %s51
    %s69 = sphi 0, %s69
    %s71 = sphi 0, %s69
    %s72 = sphi 0, %s71
    %s86 = sphi 0, %s72
    %s90 = sphi 0, %s90
    %s92 = sphi 0, %s90
    %s93 = sphi 0, %s92
    %s107 = sphi 0, %s93
    %s111 = sphi 0, %s111
    %s113 = sphi 0, %s111
    %s114 = sphi 0, %s113
    %s128 = sphi 0, %s114
    %s132 = sphi 0, %s132
    %s134 = sphi 0, %s132
    %s135 = sphi 0, %s134
    %s149 = sphi 0, %s135
    %s153 = sphi 0, %s153
    %s155 = sphi 0, %s153
    %s156 = sphi 0, %s155
    %s170 = sphi 0, %s156
    %s174 = sphi 0, %s174
    %s176 = sphi 0, %s174
    %s177 = sphi 0, %s176
    %s191 = sphi 0, %s177
    %s197 = sphi 0, %s199
    %s200 = sphi 0, %s197
    %s201 = sphi 0, %s200
    %s217 = sphi 0, %s201
  $region4: #{_forward.1} parent=0 // loop_header_branch
    %17 = sbr.rel (%p15) target = $region8
  $region5: #{_forward.1} parent=0 // loop_body
    %s19 = ssub.s32 %s14, 1
    %s20 = ssub.s32 %s14, 2
    %s21 = sadd.s32 %s14, 1
    %s22 = ssub.s32 %s14, %s21
    %p23 = scmp.eq.s32.totalorder %s22, 0
    %s25 = sadd.s32 %s24, 1
    %s26 = scalar_select %p23, %s24, %s25
    %p29 = pneg %p23
    %p30 = scmp.eq.s32.totalorder %s14, 1
    %p31 = por %p29, %p30
    %p32 = scmp.ne.s32.totalorder %s24, %s27
    %p33 = scmp.eq.s32.totalorder %s14, 0
    %p34 = por %p32, %p33
    %p35 = scmp.ne.s32.totalorder %s24, %s27
    %p36 = scmp.eq.s32.totalorder %s19, 1
    %p37 = por %p35, %p36
    %p38 = scmp.ne.s32.totalorder %s27, %s28
    %p39 = scmp.eq.s32.totalorder %s19, 0
    %p40 = por %p38, %p39
    %p41 = scmp.ne.s32.totalorder %s27, %s28
    %p42 = scmp.eq.s32.totalorder %s20, 1
    %p43 = por %p41, %p42
    %p45 = scmp.ne.s32.totalorder %s28, %s44
    %p46 = scmp.eq.s32.totalorder %s20, 0
    %p47 = por %p45, %p46
    %s49 = sadd.s32 %s48, 1
    %p52 = scmp.eq.s32.totalorder %s14, 1
    %p53 = scmp.ne.s32.totalorder %s48, %s50
    %p54 = scmp.eq.s32.totalorder %s14, 0
    %p55 = por %p53, %p54
    %p56 = scmp.ne.s32.totalorder %s48, %s50
    %p57 = scmp.eq.s32.totalorder %s19, 1
    %p58 = por %p56, %p57
    %p59 = scmp.ne.s32.totalorder %s50, %s51
    %p60 = scmp.eq.s32.totalorder %s19, 0
    %p61 = por %p59, %p60
    %p62 = scmp.ne.s32.totalorder %s50, %s51
    %p63 = scmp.eq.s32.totalorder %s20, 1
    %p64 = por %p62, %p63
    %p66 = scmp.ne.s32.totalorder %s51, %s65
    %p67 = scmp.eq.s32.totalorder %s20, 0
    %p68 = por %p66, %p67
    %s70 = sadd.s32 %s69, 1
    %p73 = scmp.eq.s32.totalorder %s14, 1
    %p74 = scmp.ne.s32.totalorder %s69, %s71
    %p75 = scmp.eq.s32.totalorder %s14, 0
    %p76 = por %p74, %p75
    %p77 = scmp.ne.s32.totalorder %s69, %s71
    %p78 = scmp.eq.s32.totalorder %s19, 1
    %p79 = por %p77, %p78
    %p80 = scmp.ne.s32.totalorder %s71, %s72
    %p81 = scmp.eq.s32.totalorder %s19, 0
    %p82 = por %p80, %p81
    %p83 = scmp.ne.s32.totalorder %s71, %s72
    %p84 = scmp.eq.s32.totalorder %s20, 1
    %p85 = por %p83, %p84
    %p87 = scmp.ne.s32.totalorder %s72, %s86
    %p88 = scmp.eq.s32.totalorder %s20, 0
    %p89 = por %p87, %p88
    %s91 = sadd.s32 %s90, 1
    %p94 = scmp.eq.s32.totalorder %s14, 1
    %p95 = scmp.ne.s32.totalorder %s90, %s92
    %p96 = scmp.eq.s32.totalorder %s14, 0
    %p97 = por %p95, %p96
    %p98 = scmp.ne.s32.totalorder %s90, %s92
    %p99 = scmp.eq.s32.totalorder %s19, 1
    %p100 = por %p98, %p99
    %p101 = scmp.ne.s32.totalorder %s92, %s93
    %p102 = scmp.eq.s32.totalorder %s19, 0
    %p103 = por %p101, %p102
    %p104 = scmp.ne.s32.totalorder %s92, %s93
    %p105 = scmp.eq.s32.totalorder %s20, 1
    %p106 = por %p104, %p105
    %p108 = scmp.ne.s32.totalorder %s93, %s107
    %p109 = scmp.eq.s32.totalorder %s20, 0
    %p110 = por %p108, %p109
    %s112 = sadd.s32 %s111, 1
    %p115 = scmp.eq.s32.totalorder %s14, 1
    %p116 = scmp.ne.s32.totalorder %s111, %s113
    %p117 = scmp.eq.s32.totalorder %s14, 0
    %p118 = por %p116, %p117
    %p119 = scmp.ne.s32.totalorder %s111, %s113
    %p120 = scmp.eq.s32.totalorder %s19, 1
    %p121 = por %p119, %p120
    %p122 = scmp.ne.s32.totalorder %s113, %s114
    %p123 = scmp.eq.s32.totalorder %s19, 0
    %p124 = por %p122, %p123
    %p125 = scmp.ne.s32.totalorder %s113, %s114
    %p126 = scmp.eq.s32.totalorder %s20, 1
    %p127 = por %p125, %p126
    %p129 = scmp.ne.s32.totalorder %s114, %s128
    %p130 = scmp.eq.s32.totalorder %s20, 0
    %p131 = por %p129, %p130
    %s133 = sadd.s32 %s132, 1
    %p136 = scmp.eq.s32.totalorder %s14, 1
    %p137 = scmp.ne.s32.totalorder %s132, %s134
    %p138 = scmp.eq.s32.totalorder %s14, 0
    %p139 = por %p137, %p138
    %p140 = scmp.ne.s32.totalorder %s132, %s134
    %p141 = scmp.eq.s32.totalorder %s19, 1
    %p142 = por %p140, %p141
    %p143 = scmp.ne.s32.totalorder %s134, %s135
    %p144 = scmp.eq.s32.totalorder %s19, 0
    %p145 = por %p143, %p144
    %p146 = scmp.ne.s32.totalorder %s134, %s135
    %p147 = scmp.eq.s32.totalorder %s20, 1
    %p148 = por %p146, %p147
    %p150 = scmp.ne.s32.totalorder %s135, %s149
    %p151 = scmp.eq.s32.totalorder %s20, 0
    %p152 = por %p150, %p151
    %s154 = sadd.s32 %s153, 1
    %p157 = scmp.eq.s32.totalorder %s14, 1
    %p158 = scmp.ne.s32.totalorder %s153, %s155
    %p159 = scmp.eq.s32.totalorder %s14, 0
    %p160 = por %p158, %p159
    %p161 = scmp.ne.s32.totalorder %s153, %s155
    %p162 = scmp.eq.s32.totalorder %s19, 1
    %p163 = por %p161, %p162
    %p164 = scmp.ne.s32.totalorder %s155, %s156
    %p165 = scmp.eq.s32.totalorder %s19, 0
    %p166 = por %p164, %p165
    %p167 = scmp.ne.s32.totalorder %s155, %s156
    %p168 = scmp.eq.s32.totalorder %s20, 1
    %p169 = por %p167, %p168
    %p171 = scmp.ne.s32.totalorder %s156, %s170
    %p172 = scmp.eq.s32.totalorder %s20, 0
    %p173 = por %p171, %p172
    %s175 = sadd.s32 %s174, 1
    %p178 = scmp.eq.s32.totalorder %s14, 1
    %p179 = scmp.ne.s32.totalorder %s174, %s176
    %p180 = scmp.eq.s32.totalorder %s14, 0
    %p181 = por %p179, %p180
    %p182 = scmp.ne.s32.totalorder %s174, %s176
    %p183 = scmp.eq.s32.totalorder %s19, 1
    %p184 = por %p182, %p183
    %p185 = scmp.ne.s32.totalorder %s176, %s177
    %p186 = scmp.eq.s32.totalorder %s19, 0
    %p187 = por %p185, %p186
    %p188 = scmp.ne.s32.totalorder %s176, %s177
    %p189 = scmp.eq.s32.totalorder %s20, 1
    %p190 = por %p188, %p189
    %p192 = scmp.ne.s32.totalorder %s177, %s191
    %p193 = scmp.eq.s32.totalorder %s20, 0
    %p194 = por %p192, %p193
    %s195 = ssub.s32 %s14, %s21
    %p196 = scmp.eq.s32.totalorder %s195, 0
    %s198 = sadd.s32 %s197, 1
    %s199 = scalar_select %p196, %s197, %s198
    %p202 = pneg %p196
    %p203 = scmp.eq.s32.totalorder %s14, 1
    %p204 = por %p202, %p203
    %p205 = scmp.ne.s32.totalorder %s197, %s200
    %p206 = scmp.eq.s32.totalorder %s14, 0
    %p207 = por %p205, %p206
    %p208 = scmp.ne.s32.totalorder %s197, %s200
    %p209 = scmp.eq.s32.totalorder %s19, 1
    %p210 = por %p208, %p209
    %p211 = scmp.ne.s32.totalorder %s200, %s201
    %p212 = scmp.eq.s32.totalorder %s19, 0
    %p213 = por %p211, %p212
    %p214 = scmp.ne.s32.totalorder %s200, %s201
    %p215 = scmp.eq.s32.totalorder %s20, 1
    %p216 = por %p214, %p215
    %p218 = scmp.ne.s32.totalorder %s201, %s217
    %p219 = scmp.eq.s32.totalorder %s20, 0
    %p220 = por %p218, %p219
    %p221 = scmp.le.s32.totalorder 1, %s14
    %p222 = scmp.lt.s32.totalorder %s14, 3
    %p223 = pnand %p221, %p222
    %p224 = pneg %p223
    // Predicated region
    $region9: #{_forward.1} parent=5 // pred_check
      _
    $region10: #{_forward.1} parent=5 // pred_check_branch
      %226 = sbr.rel (%p223) target = $region12
    $region11: #{_forward.1} parent=5 // pred_region
      %s227 = ssub.s32 %s14, 1
      // Predicated region
      $region13: #{_forward.1} parent=11 // pred_check
        %p228 = pneg %p61
      $region14: #{_forward.1} parent=11 // pred_check_branch
        %230 = sbr.rel (%p228) target = $region16
      $region15: #{_forward.1} parent=11 // pred_region
        _
      $region16: #{_forward.1} parent=11 // pred_fallthru
        _
      // Predicated region
      $region17: #{_forward.1} parent=11 // pred_check
        %p231 = pneg %p82
      $region18: #{_forward.1} parent=11 // pred_check_branch
        %233 = sbr.rel (%p231) target = $region20
      $region19: #{_forward.1} parent=11 // pred_region
        _
      $region20: #{_forward.1} parent=11 // pred_fallthru
        _
      // Predicated region
      $region21: #{_forward.1} parent=11 // pred_check
        %p234 = pneg %p103
      $region22: #{_forward.1} parent=11 // pred_check_branch
        %236 = sbr.rel (%p234) target = $region24
      $region23: #{_forward.1} parent=11 // pred_region
        _
      $region24: #{_forward.1} parent=11 // pred_fallthru
        _
      // Predicated region
      $region25: #{_forward.1} parent=11 // pred_check
        %p237 = pneg %p124
      $region26: #{_forward.1} parent=11 // pred_check_branch
        %239 = sbr.rel (%p237) target = $region28
      $region27: #{_forward.1} parent=11 // pred_region
        _
      $region28: #{_forward.1} parent=11 // pred_fallthru
        _
      // Predicated region
      $region29: #{_forward.1} parent=11 // pred_check
        %p240 = pneg %p145
      $region30: #{_forward.1} parent=11 // pred_check_branch
        %242 = sbr.rel (%p240) target = $region32
      $region31: #{_forward.1} parent=11 // pred_region
        _
      $region32: #{_forward.1} parent=11 // pred_fallthru
        _
      // Predicated region
      $region33: #{_forward.1} parent=11 // pred_check
        %p243 = pneg %p166
      $region34: #{_forward.1} parent=11 // pred_check_branch
        %245 = sbr.rel (%p243) target = $region36
      $region35: #{_forward.1} parent=11 // pred_region
        _
      $region36: #{_forward.1} parent=11 // pred_fallthru
        _
      // Predicated region
      $region37: #{_forward.1} parent=11 // pred_check
        %p246 = pneg %p187
      $region38: #{_forward.1} parent=11 // pred_check_branch
        %248 = sbr.rel (%p246) target = $region40
      $region39: #{_forward.1} parent=11 // pred_region
        _
      $region40: #{_forward.1} parent=11 // pred_fallthru
        _
    $region12: #{_forward.1} parent=5 // pred_fallthru
      _
    %p249 = scmp.lt.s32.totalorder %s14, 2
    // Predicated region
    $region41: #{_forward.1} parent=5 // pred_check
      %p250 = pneg %p249
    $region42: #{_forward.1} parent=5 // pred_check_branch
      %252 = sbr.rel (%p250) target = $region44
    $region43: #{_forward.1} parent=5 // pred_region
      // Predicated region
      $region45: #{_forward.1} parent=43 // pred_check
        %p253 = pneg %p34
      $region46: #{_forward.1} parent=43 // pred_check_branch
        %255 = sbr.rel (%p253) target = $region48
      $region47: #{_forward.1} parent=43 // pred_region
        %p256 = scmp.lt.s32.totalorder %s14, 1
        %s257 = scalar_select %p256, %s14, 1
        %s258 = smul.addr %s257, 48
        %s259 = smul.addr %s258, 4
        %s260 = scalar_lea.vmem %s0, %s259
      $region48: #{_forward.1} parent=43 // pred_fallthru
        _
    $region44: #{_forward.1} parent=5 // pred_fallthru
      _
    %p261 = scmp.le.s32.totalorder 1, %s14
    %p262 = scmp.lt.s32.totalorder %s14, 3
    %p263 = pnand %p261, %p262
    %p264 = pneg %p263
    // Predicated region
    $region49: #{_forward.1} parent=5 // pred_check
      _
    $region50: #{_forward.1} parent=5 // pred_check_branch
      %266 = sbr.rel (%p263) target = $region52
    $region51: #{_forward.1} parent=5 // pred_region
      %s267 = ssub.s32 %s14, 1
      %p268 = scmp.lt.s32.totalorder %s19, 1
      %s269 = scalar_select %p268, %s19, 1
      %s270 = smul.addr %s269, 48
      %s271 = smul.addr %s270, 4
      %s272 = scalar_lea.vmem %s0, %s271
      %p273 = pneg %p40
      %p274 = pneg %p37
      %p275 = pneg %p61
      %p276 = pneg %p58
      %p277 = pneg %p82
      %p278 = pneg %p79
      %p279 = pneg %p103
      %p280 = pneg %p100
      %p281 = pneg %p124
      %p282 = pneg %p121
      %p283 = pneg %p145
      %p284 = pneg %p142
      %p285 = pneg %p166
      %p286 = pneg %p163
      %p287 = pneg %p187
      %p288 = pneg %p184
      %p289 = pneg %p213
      %p290 = pneg %p210
      %p291 = scmp.lt.s32.totalorder %s19, 1
      %s292 = scalar_select %p291, %s19, 1
      %s293 = smul.addr %s292, 2
      %s294 = smul.addr %s293, 8
      %s295 = scalar_lea.vmem %s8, %s294
      %p296 = scmp.lt.s32.totalorder %s19, 1
      %s297 = scalar_select %p296, %s19, 1
      %s298 = smul.addr %s297, 48
      %s299 = smul.addr %s298, 4
      %s300 = scalar_lea.vmem %s0, %s299
      %p301 = scmp.lt.s32.totalorder %s19, 1
      %s302 = scalar_select %p301, %s19, 1
      %s303 = smul.addr %s302, 2
      %s304 = smul.addr %s303, 8
      %s305 = scalar_lea.vmem %s8, %s304
      %v307 = vld [vmem:[%s300] sm:$0xff]
      %v308 = vld [vmem:[%s300 + $0x8] sm:$0xff]
      %v309 = vld [vmem:[%s300 + $0x10] sm:$0xff]
      %v310 = vld [vmem:[%s300 + $0x18] sm:$0xff]
      %v311 = vld [vmem:[%s300 + $0x20] sm:$0xff]
      %v312 = vld [vmem:[%s300 + $0x28] sm:$0xff]
      %v313 = vld [vmem:[%s300 + $0x30] sm:$0xff]
      %v314 = vld [vmem:[%s300 + $0x38] sm:$0xff]
      %v315 = vld [vmem:[%s300 + $0x40] sm:$0xff]
      %v316 = vld [vmem:[%s300 + $0x48] sm:$0xff]
      %v317 = vld [vmem:[%s300 + $0x50] sm:$0xff]
      %v318 = vld [vmem:[%s300 + $0x58] sm:$0xff]
      %v319 = vld [vmem:[%s300 + $0x60] sm:$0xff]
      %v320 = vld [vmem:[%s300 + $0x68] sm:$0xff]
      %v321 = vld [vmem:[%s300 + $0x70] sm:$0xff]
      %v322 = vld [vmem:[%s300 + $0x78] sm:$0xff]
      %v323 = vld [vmem:[%s300 + $0x80] sm:$0xff]
      %v324 = vld [vmem:[%s300 + $0x88] sm:$0xff]
      %v325 = vld [vmem:[%s300 + $0x90] sm:$0xff]
      %v326 = vld [vmem:[%s300 + $0x98] sm:$0xff]
      %v327 = vld [vmem:[%s300 + $0xa0] sm:$0xff]
      %v328 = vld [vmem:[%s300 + $0xa8] sm:$0xff]
      %v329 = vld [vmem:[%s300 + $0xb0] sm:$0xff]
      %v330 = vld [vmem:[%s300 + $0xb8] sm:$0xff]
      %v331 = vld [vmem:[%s1] sm:$0xff]
      %v332 = vld [vmem:[%s1 + $0x8] sm:$0xff]
      %v333 = vld [vmem:[%s1 + $0x10] sm:$0xff]
      %v334 = vld [vmem:[%s1 + $0x18] sm:$0xff]
      %v335 = vld [vmem:[%s1 + $0x20] sm:$0xff]
      %v336 = vld [vmem:[%s1 + $0x28] sm:$0xff]
      %v337 = vld [vmem:[%s1 + $0x30] sm:$0xff]
      %v338 = vld [vmem:[%s1 + $0x38] sm:$0xff]
      %v339 = vld [vmem:[%s1 + $0x40] sm:$0xff]
      %v340 = vld [vmem:[%s1 + $0x48] sm:$0xff]
      %v341 = vld [vmem:[%s1 + $0x50] sm:$0xff]
      %v342 = vld [vmem:[%s1 + $0x58] sm:$0xff]
      %v343 = vld [vmem:[%s1 + $0x60] sm:$0xff]
      %v344 = vld [vmem:[%s1 + $0x68] sm:$0xff]
      %v345 = vld [vmem:[%s1 + $0x70] sm:$0xff]
      %v346 = vld [vmem:[%s1 + $0x78] sm:$0xff]
      %v347 = vld [vmem:[%s1 + $0x80] sm:$0xff]
      %v348 = vld [vmem:[%s1 + $0x88] sm:$0xff]
      %v349 = vld [vmem:[%s1 + $0x90] sm:$0xff]
      %v350 = vld [vmem:[%s1 + $0x98] sm:$0xff]
      %v351 = vld [vmem:[%s1 + $0xa0] sm:$0xff]
      %v352 = vld [vmem:[%s1 + $0xa8] sm:$0xff]
      %v353 = vld [vmem:[%s1 + $0xb0] sm:$0xff]
      %v354 = vld [vmem:[%s1 + $0xb8] sm:$0xff]
      %v355 = vld [vmem:[%s1 + $0xc0] sm:$0xff]
      %v356 = vld [vmem:[%s1 + $0xc8] sm:$0xff]
      %v357 = vld [vmem:[%s1 + $0xd0] sm:$0xff]
      %v358 = vld [vmem:[%s1 + $0xd8] sm:$0xff]
      %v359 = vld [vmem:[%s1 + $0xe0] sm:$0xff]
      %v360 = vld [vmem:[%s1 + $0xe8] sm:$0xff]
      %v361 = vld [vmem:[%s1 + $0xf0] sm:$0xff]
      %v362 = vld [vmem:[%s1 + $0xf8] sm:$0xff]
      %v363 = vld [vmem:[%s1 + $0x100] sm:$0xff]
      %v364 = vld [vmem:[%s1 + $0x108] sm:$0xff]
      %v365 = vld [vmem:[%s1 + $0x110] sm:$0xff]
      %v366 = vld [vmem:[%s1 + $0x118] sm:$0xff]
      %v367 = vld [vmem:[%s1 + $0x120] sm:$0xff]
      %v368 = vld [vmem:[%s1 + $0x128] sm:$0xff]
      %v369 = vld [vmem:[%s1 + $0x130] sm:$0xff]
      %v370 = vld [vmem:[%s1 + $0x138] sm:$0xff]
      %v371 = vld [vmem:[%s1 + $0x140] sm:$0xff]
      %v372 = vld [vmem:[%s1 + $0x148] sm:$0xff]
      %v373 = vld [vmem:[%s1 + $0x150] sm:$0xff]
      %v374 = vld [vmem:[%s1 + $0x158] sm:$0xff]
      %v375 = vld [vmem:[%s1 + $0x160] sm:$0xff]
      %v376 = vld [vmem:[%s1 + $0x168] sm:$0xff]
      %v377 = vld [vmem:[%s1 + $0x170] sm:$0xff]
      %v378 = vld [vmem:[%s1 + $0x178] sm:$0xff]
      %v379 = vld [vmem:[%s1 + $0x180] sm:$0xff]
      %v380 = vld [vmem:[%s1 + $0x188] sm:$0xff]
      %v381 = vld [vmem:[%s1 + $0x190] sm:$0xff]
      %v382 = vld [vmem:[%s1 + $0x198] sm:$0xff]
      %v383 = vld [vmem:[%s1 + $0x1a0] sm:$0xff]
      %v384 = vld [vmem:[%s1 + $0x1a8] sm:$0xff]
      %v385 = vld [vmem:[%s1 + $0x1b0] sm:$0xff]
      %v386 = vld [vmem:[%s1 + $0x1b8] sm:$0xff]
      %v387 = vld [vmem:[%s1 + $0x1c0] sm:$0xff]
      %v388 = vld [vmem:[%s1 + $0x1c8] sm:$0xff]
      %v389 = vld [vmem:[%s1 + $0x1d0] sm:$0xff]
      %v390 = vld [vmem:[%s1 + $0x1d8] sm:$0xff]
      %v391 = vld [vmem:[%s1 + $0x1e0] sm:$0xff]
      %v392 = vld [vmem:[%s1 + $0x1e8] sm:$0xff]
      %v393 = vld [vmem:[%s1 + $0x1f0] sm:$0xff]
      %v394 = vld [vmem:[%s1 + $0x1f8] sm:$0xff]
      %v395 = vld [vmem:[%s1 + $0x200] sm:$0xff]
      %v396 = vld [vmem:[%s1 + $0x208] sm:$0xff]
      %v397 = vld [vmem:[%s1 + $0x210] sm:$0xff]
      %v398 = vld [vmem:[%s1 + $0x218] sm:$0xff]
      %v399 = vld [vmem:[%s1 + $0x220] sm:$0xff]
      %v400 = vld [vmem:[%s1 + $0x228] sm:$0xff]
      %v401 = vld [vmem:[%s1 + $0x230] sm:$0xff]
      %v402 = vld [vmem:[%s1 + $0x238] sm:$0xff]
      %v403 = vld [vmem:[%s1 + $0x240] sm:$0xff]
      %v404 = vld [vmem:[%s1 + $0x248] sm:$0xff]
      %v405 = vld [vmem:[%s1 + $0x250] sm:$0xff]
      %v406 = vld [vmem:[%s1 + $0x258] sm:$0xff]
      %v407 = vld [vmem:[%s1 + $0x260] sm:$0xff]
      %v408 = vld [vmem:[%s1 + $0x268] sm:$0xff]
      %v409 = vld [vmem:[%s1 + $0x270] sm:$0xff]
      %v410 = vld [vmem:[%s1 + $0x278] sm:$0xff]
      %v411 = vld [vmem:[%s1 + $0x280] sm:$0xff]
      %v412 = vld [vmem:[%s1 + $0x288] sm:$0xff]
      %v413 = vld [vmem:[%s1 + $0x290] sm:$0xff]
      %v414 = vld [vmem:[%s1 + $0x298] sm:$0xff]
      %v415 = vld [vmem:[%s1 + $0x2a0] sm:$0xff]
      %v416 = vld [vmem:[%s1 + $0x2a8] sm:$0xff]
      %v417 = vld [vmem:[%s1 + $0x2b0] sm:$0xff]
      %v418 = vld [vmem:[%s1 + $0x2b8] sm:$0xff]
      %v419 = vld [vmem:[%s1 + $0x2c0] sm:$0xff]
      %v420 = vld [vmem:[%s1 + $0x2c8] sm:$0xff]
      %v421 = vld [vmem:[%s1 + $0x2d0] sm:$0xff]
      %v422 = vld [vmem:[%s1 + $0x2d8] sm:$0xff]
      %v423 = vld [vmem:[%s1 + $0x2e0] sm:$0xff]
      %v424 = vld [vmem:[%s1 + $0x2e8] sm:$0xff]
      %v425 = vld [vmem:[%s1 + $0x2f0] sm:$0xff]
      %v426 = vld [vmem:[%s1 + $0x2f8] sm:$0xff]
      %v427 = vld [vmem:[%s1 + $0x300] sm:$0xff]
      %v428 = vld [vmem:[%s1 + $0x308] sm:$0xff]
      %v429 = vld [vmem:[%s1 + $0x310] sm:$0xff]
      %v430 = vld [vmem:[%s1 + $0x318] sm:$0xff]
      %v431 = vld [vmem:[%s1 + $0x320] sm:$0xff]
      %v432 = vld [vmem:[%s1 + $0x328] sm:$0xff]
      %v433 = vld [vmem:[%s1 + $0x330] sm:$0xff]
      %v434 = vld [vmem:[%s1 + $0x338] sm:$0xff]
      %v435 = vld [vmem:[%s1 + $0x340] sm:$0xff]
      %v436 = vld [vmem:[%s1 + $0x348] sm:$0xff]
      %v437 = vld [vmem:[%s1 + $0x350] sm:$0xff]
      %v438 = vld [vmem:[%s1 + $0x358] sm:$0xff]
      %v439 = vld [vmem:[%s1 + $0x360] sm:$0xff]
      %v440 = vld [vmem:[%s1 + $0x368] sm:$0xff]
      %v441 = vld [vmem:[%s1 + $0x370] sm:$0xff]
      %v442 = vld [vmem:[%s1 + $0x378] sm:$0xff]
      %v443 = vld [vmem:[%s1 + $0x380] sm:$0xff]
      %v444 = vld [vmem:[%s1 + $0x388] sm:$0xff]
      %v445 = vld [vmem:[%s1 + $0x390] sm:$0xff]
      %v446 = vld [vmem:[%s1 + $0x398] sm:$0xff]
      %v447 = vld [vmem:[%s1 + $0x3a0] sm:$0xff]
      %v448 = vld [vmem:[%s1 + $0x3a8] sm:$0xff]
      %v449 = vld [vmem:[%s1 + $0x3b0] sm:$0xff]
      %v450 = vld [vmem:[%s1 + $0x3b8] sm:$0xff]
      %v451 = vld [vmem:[%s1 + $0x3c0] sm:$0xff]
      %v452 = vld [vmem:[%s1 + $0x3c8] sm:$0xff]
      %v453 = vld [vmem:[%s1 + $0x3d0] sm:$0xff]
      %v454 = vld [vmem:[%s1 + $0x3d8] sm:$0xff]
      %v455 = vld [vmem:[%s1 + $0x3e0] sm:$0xff]
      %v456 = vld [vmem:[%s1 + $0x3e8] sm:$0xff]
      %v457 = vld [vmem:[%s1 + $0x3f0] sm:$0xff]
      %v458 = vld [vmem:[%s1 + $0x3f8] sm:$0xff]
      %v459 = vld [vmem:[%s1 + $0x400] sm:$0xff]
      %v460 = vld [vmem:[%s1 + $0x408] sm:$0xff]
      %v461 = vld [vmem:[%s1 + $0x410] sm:$0xff]
      %v462 = vld [vmem:[%s1 + $0x418] sm:$0xff]
      %v463 = vld [vmem:[%s1 + $0x420] sm:$0xff]
      %v464 = vld [vmem:[%s1 + $0x428] sm:$0xff]
      %v465 = vld [vmem:[%s1 + $0x430] sm:$0xff]
      %v466 = vld [vmem:[%s1 + $0x438] sm:$0xff]
      %v467 = vld [vmem:[%s1 + $0x440] sm:$0xff]
      %v468 = vld [vmem:[%s1 + $0x448] sm:$0xff]
      %v469 = vld [vmem:[%s1 + $0x450] sm:$0xff]
      %v470 = vld [vmem:[%s1 + $0x458] sm:$0xff]
      %v471 = vld [vmem:[%s1 + $0x460] sm:$0xff]
      %v472 = vld [vmem:[%s1 + $0x468] sm:$0xff]
      %v473 = vld [vmem:[%s1 + $0x470] sm:$0xff]
      %v474 = vld [vmem:[%s1 + $0x478] sm:$0xff]
      %v475 = vld [vmem:[%s1 + $0x480] sm:$0xff]
      %v476 = vld [vmem:[%s1 + $0x488] sm:$0xff]
      %v477 = vld [vmem:[%s1 + $0x490] sm:$0xff]
      %v478 = vld [vmem:[%s1 + $0x498] sm:$0xff]
      %v479 = vld [vmem:[%s1 + $0x4a0] sm:$0xff]
      %v480 = vld [vmem:[%s1 + $0x4a8] sm:$0xff]
      %v481 = vld [vmem:[%s1 + $0x4b0] sm:$0xff]
      %v482 = vld [vmem:[%s1 + $0x4b8] sm:$0xff]
      %v483 = vld [vmem:[%s1 + $0x4c0] sm:$0xff]
      %v484 = vld [vmem:[%s1 + $0x4c8] sm:$0xff]
      %v485 = vld [vmem:[%s1 + $0x4d0] sm:$0xff]
      %v486 = vld [vmem:[%s1 + $0x4d8] sm:$0xff]
      %v487 = vld [vmem:[%s1 + $0x4e0] sm:$0xff]
      %v488 = vld [vmem:[%s1 + $0x4e8] sm:$0xff]
      %v489 = vld [vmem:[%s1 + $0x4f0] sm:$0xff]
      %v490 = vld [vmem:[%s1 + $0x4f8] sm:$0xff]
      %v491 = vld [vmem:[%s1 + $0x500] sm:$0xff]
      %v492 = vld [vmem:[%s1 + $0x508] sm:$0xff]
      %v493 = vld [vmem:[%s1 + $0x510] sm:$0xff]
      %v494 = vld [vmem:[%s1 + $0x518] sm:$0xff]
      %v495 = vld [vmem:[%s1 + $0x520] sm:$0xff]
      %v496 = vld [vmem:[%s1 + $0x528] sm:$0xff]
      %v497 = vld [vmem:[%s1 + $0x530] sm:$0xff]
      %v498 = vld [vmem:[%s1 + $0x538] sm:$0xff]
      %v499 = vld [vmem:[%s1 + $0x540] sm:$0xff]
      %v500 = vld [vmem:[%s1 + $0x548] sm:$0xff]
      %v501 = vld [vmem:[%s1 + $0x550] sm:$0xff]
      %v502 = vld [vmem:[%s1 + $0x558] sm:$0xff]
      %v503 = vld [vmem:[%s1 + $0x560] sm:$0xff]
      %v504 = vld [vmem:[%s1 + $0x568] sm:$0xff]
      %v505 = vld [vmem:[%s1 + $0x570] sm:$0xff]
      %v506 = vld [vmem:[%s1 + $0x578] sm:$0xff]
      %v507 = vld [vmem:[%s1 + $0x580] sm:$0xff]
      %v508 = vld [vmem:[%s1 + $0x588] sm:$0xff]
      %v509 = vld [vmem:[%s1 + $0x590] sm:$0xff]
      %v510 = vld [vmem:[%s1 + $0x598] sm:$0xff]
      %v511 = vld [vmem:[%s1 + $0x5a0] sm:$0xff]
      %v512 = vld [vmem:[%s1 + $0x5a8] sm:$0xff]
      %v513 = vld [vmem:[%s1 + $0x5b0] sm:$0xff]
      %v514 = vld [vmem:[%s1 + $0x5b8] sm:$0xff]
      %v515 = vld [vmem:[%s1 + $0x5c0] sm:$0xff]
      %v516 = vld [vmem:[%s1 + $0x5c8] sm:$0xff]
      %v517 = vld [vmem:[%s1 + $0x5d0] sm:$0xff]
      %v518 = vld [vmem:[%s1 + $0x5d8] sm:$0xff]
      %v519 = vld [vmem:[%s1 + $0x5e0] sm:$0xff]
      %v520 = vld [vmem:[%s1 + $0x5e8] sm:$0xff]
      %v521 = vld [vmem:[%s1 + $0x5f0] sm:$0xff]
      %v522 = vld [vmem:[%s1 + $0x5f8] sm:$0xff]
      %v523 = vld [vmem:[%s1 + $0x600] sm:$0xff]
      %v524 = vld [vmem:[%s1 + $0x608] sm:$0xff]
      %v525 = vld [vmem:[%s1 + $0x610] sm:$0xff]
      %v526 = vld [vmem:[%s1 + $0x618] sm:$0xff]
      %v527 = vld [vmem:[%s1 + $0x620] sm:$0xff]
      %v528 = vld [vmem:[%s1 + $0x628] sm:$0xff]
      %v529 = vld [vmem:[%s1 + $0x630] sm:$0xff]
      %v530 = vld [vmem:[%s1 + $0x638] sm:$0xff]
      %v531 = vld [vmem:[%s1 + $0x640] sm:$0xff]
      %v532 = vld [vmem:[%s1 + $0x648] sm:$0xff]
      %v533 = vld [vmem:[%s1 + $0x650] sm:$0xff]
      %v534 = vld [vmem:[%s1 + $0x658] sm:$0xff]
      %v535 = vld [vmem:[%s1 + $0x660] sm:$0xff]
      %v536 = vld [vmem:[%s1 + $0x668] sm:$0xff]
      %v537 = vld [vmem:[%s1 + $0x670] sm:$0xff]
      %v538 = vld [vmem:[%s1 + $0x678] sm:$0xff]
      %v539 = vld [vmem:[%s1 + $0x680] sm:$0xff]
      %v540 = vld [vmem:[%s1 + $0x688] sm:$0xff]
      %v541 = vld [vmem:[%s1 + $0x690] sm:$0xff]
      %v542 = vld [vmem:[%s1 + $0x698] sm:$0xff]
      %v543 = vld [vmem:[%s1 + $0x6a0] sm:$0xff]
      %v544 = vld [vmem:[%s1 + $0x6a8] sm:$0xff]
      %v545 = vld [vmem:[%s1 + $0x6b0] sm:$0xff]
      %v546 = vld [vmem:[%s1 + $0x6b8] sm:$0xff]
      %v547 = vld [vmem:[%s1 + $0x6c0] sm:$0xff]
      %v548 = vld [vmem:[%s1 + $0x6c8] sm:$0xff]
      %v549 = vld [vmem:[%s1 + $0x6d0] sm:$0xff]
      %v550 = vld [vmem:[%s1 + $0x6d8] sm:$0xff]
      %v551 = vld [vmem:[%s1 + $0x6e0] sm:$0xff]
      %v552 = vld [vmem:[%s1 + $0x6e8] sm:$0xff]
      %v553 = vld [vmem:[%s1 + $0x6f0] sm:$0xff]
      %v554 = vld [vmem:[%s1 + $0x6f8] sm:$0xff]
      %v555 = vld [vmem:[%s1 + $0x700] sm:$0xff]
      %v556 = vld [vmem:[%s1 + $0x708] sm:$0xff]
      %v557 = vld [vmem:[%s1 + $0x710] sm:$0xff]
      %v558 = vld [vmem:[%s1 + $0x718] sm:$0xff]
      %v559 = vld [vmem:[%s1 + $0x720] sm:$0xff]
      %v560 = vld [vmem:[%s1 + $0x728] sm:$0xff]
      %v561 = vld [vmem:[%s1 + $0x730] sm:$0xff]
      %v562 = vld [vmem:[%s1 + $0x738] sm:$0xff]
      %v563 = vld [vmem:[%s1 + $0x740] sm:$0xff]
      %v564 = vld [vmem:[%s1 + $0x748] sm:$0xff]
      %v565 = vld [vmem:[%s1 + $0x750] sm:$0xff]
      %v566 = vld [vmem:[%s1 + $0x758] sm:$0xff]
      %v567 = vld [vmem:[%s1 + $0x760] sm:$0xff]
      %v568 = vld [vmem:[%s1 + $0x768] sm:$0xff]
      %v569 = vld [vmem:[%s1 + $0x770] sm:$0xff]
      %v570 = vld [vmem:[%s1 + $0x778] sm:$0xff]
      %v571 = vld [vmem:[%s1 + $0x780] sm:$0xff]
      %v572 = vld [vmem:[%s1 + $0x788] sm:$0xff]
      %v573 = vld [vmem:[%s1 + $0x790] sm:$0xff]
      %v574 = vld [vmem:[%s1 + $0x798] sm:$0xff]
      %v575 = vld [vmem:[%s1 + $0x7a0] sm:$0xff]
      %v576 = vld [vmem:[%s1 + $0x7a8] sm:$0xff]
      %v577 = vld [vmem:[%s1 + $0x7b0] sm:$0xff]
      %v578 = vld [vmem:[%s1 + $0x7b8] sm:$0xff]
      %v579 = vld [vmem:[%s1 + $0x7c0] sm:$0xff]
      %v580 = vld [vmem:[%s1 + $0x7c8] sm:$0xff]
      %v581 = vld [vmem:[%s1 + $0x7d0] sm:$0xff]
      %v582 = vld [vmem:[%s1 + $0x7d8] sm:$0xff]
      %v583 = vld [vmem:[%s1 + $0x7e0] sm:$0xff]
      %v584 = vld [vmem:[%s1 + $0x7e8] sm:$0xff]
      %v585 = vld [vmem:[%s1 + $0x7f0] sm:$0xff]
      %v586 = vld [vmem:[%s1 + $0x7f8] sm:$0xff]
      %v587 = vld [vmem:[%s1 + $0x800] sm:$0xff]
      %v588 = vld [vmem:[%s1 + $0x808] sm:$0xff]
      %v589 = vld [vmem:[%s1 + $0x810] sm:$0xff]
      %v590 = vld [vmem:[%s1 + $0x818] sm:$0xff]
      %v591 = vld [vmem:[%s1 + $0x820] sm:$0xff]
      %v592 = vld [vmem:[%s1 + $0x828] sm:$0xff]
      %v593 = vld [vmem:[%s1 + $0x830] sm:$0xff]
      %v594 = vld [vmem:[%s1 + $0x838] sm:$0xff]
      %v595 = vld [vmem:[%s1 + $0x840] sm:$0xff]
      %v596 = vld [vmem:[%s1 + $0x848] sm:$0xff]
      %v597 = vld [vmem:[%s1 + $0x850] sm:$0xff]
      %v598 = vld [vmem:[%s1 + $0x858] sm:$0xff]
      %v599 = vld [vmem:[%s1 + $0x860] sm:$0xff]
      %v600 = vld [vmem:[%s1 + $0x868] sm:$0xff]
      %v601 = vld [vmem:[%s1 + $0x870] sm:$0xff]
      %v602 = vld [vmem:[%s1 + $0x878] sm:$0xff]
      %v603 = vld [vmem:[%s1 + $0x880] sm:$0xff]
      %v604 = vld [vmem:[%s1 + $0x888] sm:$0xff]
      %v605 = vld [vmem:[%s1 + $0x890] sm:$0xff]
      %v606 = vld [vmem:[%s1 + $0x898] sm:$0xff]
      %v607 = vld [vmem:[%s1 + $0x8a0] sm:$0xff]
      %v608 = vld [vmem:[%s1 + $0x8a8] sm:$0xff]
      %v609 = vld [vmem:[%s1 + $0x8b0] sm:$0xff]
      %v610 = vld [vmem:[%s1 + $0x8b8] sm:$0xff]
      %v611 = vld [vmem:[%s1 + $0x8c0] sm:$0xff]
      %v612 = vld [vmem:[%s1 + $0x8c8] sm:$0xff]
      %v613 = vld [vmem:[%s1 + $0x8d0] sm:$0xff]
      %v614 = vld [vmem:[%s1 + $0x8d8] sm:$0xff]
      %v615 = vld [vmem:[%s1 + $0x8e0] sm:$0xff]
      %v616 = vld [vmem:[%s1 + $0x8e8] sm:$0xff]
      %v617 = vld [vmem:[%s1 + $0x8f0] sm:$0xff]
      %v618 = vld [vmem:[%s1 + $0x8f8] sm:$0xff]
      %v619 = vld [vmem:[%s1 + $0x900] sm:$0xff]
      %v620 = vld [vmem:[%s1 + $0x908] sm:$0xff]
      %v621 = vld [vmem:[%s1 + $0x910] sm:$0xff]
      %v622 = vld [vmem:[%s1 + $0x918] sm:$0xff]
      %v623 = vld [vmem:[%s1 + $0x920] sm:$0xff]
      %v624 = vld [vmem:[%s1 + $0x928] sm:$0xff]
      %v625 = vld [vmem:[%s1 + $0x930] sm:$0xff]
      %v626 = vld [vmem:[%s1 + $0x938] sm:$0xff]
      %v627 = vld [vmem:[%s1 + $0x940] sm:$0xff]
      %v628 = vld [vmem:[%s1 + $0x948] sm:$0xff]
      %v629 = vld [vmem:[%s1 + $0x950] sm:$0xff]
      %v630 = vld [vmem:[%s1 + $0x958] sm:$0xff]
      %v631 = vld [vmem:[%s1 + $0x960] sm:$0xff]
      %v632 = vld [vmem:[%s1 + $0x968] sm:$0xff]
      %v633 = vld [vmem:[%s1 + $0x970] sm:$0xff]
      %v634 = vld [vmem:[%s1 + $0x978] sm:$0xff]
      %v635 = vld [vmem:[%s1 + $0x980] sm:$0xff]
      %v636 = vld [vmem:[%s1 + $0x988] sm:$0xff]
      %v637 = vld [vmem:[%s1 + $0x990] sm:$0xff]
      %v638 = vld [vmem:[%s1 + $0x998] sm:$0xff]
      %v639 = vld [vmem:[%s1 + $0x9a0] sm:$0xff]
      %v640 = vld [vmem:[%s1 + $0x9a8] sm:$0xff]
      %v641 = vld [vmem:[%s1 + $0x9b0] sm:$0xff]
      %v642 = vld [vmem:[%s1 + $0x9b8] sm:$0xff]
      %v643 = vld [vmem:[%s1 + $0x9c0] sm:$0xff]
      %v644 = vld [vmem:[%s1 + $0x9c8] sm:$0xff]
      %v645 = vld [vmem:[%s1 + $0x9d0] sm:$0xff]
      %v646 = vld [vmem:[%s1 + $0x9d8] sm:$0xff]
      %v647 = vld [vmem:[%s1 + $0x9e0] sm:$0xff]
      %v648 = vld [vmem:[%s1 + $0x9e8] sm:$0xff]
      %v649 = vld [vmem:[%s1 + $0x9f0] sm:$0xff]
      %v650 = vld [vmem:[%s1 + $0x9f8] sm:$0xff]
      %v651 = vld [vmem:[%s1 + $0xa00] sm:$0xff]
      %v652 = vld [vmem:[%s1 + $0xa08] sm:$0xff]
      %v653 = vld [vmem:[%s1 + $0xa10] sm:$0xff]
      %v654 = vld [vmem:[%s1 + $0xa18] sm:$0xff]
      %v655 = vld [vmem:[%s1 + $0xa20] sm:$0xff]
      %v656 = vld [vmem:[%s1 + $0xa28] sm:$0xff]
      %v657 = vld [vmem:[%s1 + $0xa30] sm:$0xff]
      %v658 = vld [vmem:[%s1 + $0xa38] sm:$0xff]
      %v659 = vld [vmem:[%s1 + $0xa40] sm:$0xff]
      %v660 = vld [vmem:[%s1 + $0xa48] sm:$0xff]
      %v661 = vld [vmem:[%s1 + $0xa50] sm:$0xff]
      %v662 = vld [vmem:[%s1 + $0xa58] sm:$0xff]
      %v663 = vld [vmem:[%s1 + $0xa60] sm:$0xff]
      %v664 = vld [vmem:[%s1 + $0xa68] sm:$0xff]
      %v665 = vld [vmem:[%s1 + $0xa70] sm:$0xff]
      %v666 = vld [vmem:[%s1 + $0xa78] sm:$0xff]
      %v667 = vld [vmem:[%s1 + $0xa80] sm:$0xff]
      %v668 = vld [vmem:[%s1 + $0xa88] sm:$0xff]
      %v669 = vld [vmem:[%s1 + $0xa90] sm:$0xff]
      %v670 = vld [vmem:[%s1 + $0xa98] sm:$0xff]
      %v671 = vld [vmem:[%s1 + $0xaa0] sm:$0xff]
      %v672 = vld [vmem:[%s1 + $0xaa8] sm:$0xff]
      %v673 = vld [vmem:[%s1 + $0xab0] sm:$0xff]
      %v674 = vld [vmem:[%s1 + $0xab8] sm:$0xff]
      %v675 = vld [vmem:[%s1 + $0xac0] sm:$0xff]
      %v676 = vld [vmem:[%s1 + $0xac8] sm:$0xff]
      %v677 = vld [vmem:[%s1 + $0xad0] sm:$0xff]
      %v678 = vld [vmem:[%s1 + $0xad8] sm:$0xff]
      %v679 = vld [vmem:[%s1 + $0xae0] sm:$0xff]
      %v680 = vld [vmem:[%s1 + $0xae8] sm:$0xff]
      %v681 = vld [vmem:[%s1 + $0xaf0] sm:$0xff]
      %v682 = vld [vmem:[%s1 + $0xaf8] sm:$0xff]
      %v683 = vld [vmem:[%s1 + $0xb00] sm:$0xff]
      %v684 = vld [vmem:[%s1 + $0xb08] sm:$0xff]
      %v685 = vld [vmem:[%s1 + $0xb10] sm:$0xff]
      %v686 = vld [vmem:[%s1 + $0xb18] sm:$0xff]
      %v687 = vld [vmem:[%s1 + $0xb20] sm:$0xff]
      %v688 = vld [vmem:[%s1 + $0xb28] sm:$0xff]
      %v689 = vld [vmem:[%s1 + $0xb30] sm:$0xff]
      %v690 = vld [vmem:[%s1 + $0xb38] sm:$0xff]
      %v691 = vld [vmem:[%s1 + $0xb40] sm:$0xff]
      %v692 = vld [vmem:[%s1 + $0xb48] sm:$0xff]
      %v693 = vld [vmem:[%s1 + $0xb50] sm:$0xff]
      %v694 = vld [vmem:[%s1 + $0xb58] sm:$0xff]
      %v695 = vld [vmem:[%s1 + $0xb60] sm:$0xff]
      %v696 = vld [vmem:[%s1 + $0xb68] sm:$0xff]
      %v697 = vld [vmem:[%s1 + $0xb70] sm:$0xff]
      %v698 = vld [vmem:[%s1 + $0xb78] sm:$0xff]
      %v699 = vld [vmem:[%s1 + $0xb80] sm:$0xff]
      %v700 = vld [vmem:[%s1 + $0xb88] sm:$0xff]
      %v701 = vld [vmem:[%s1 + $0xb90] sm:$0xff]
      %v702 = vld [vmem:[%s1 + $0xb98] sm:$0xff]
      %v703 = vld [vmem:[%s1 + $0xba0] sm:$0xff]
      %v704 = vld [vmem:[%s1 + $0xba8] sm:$0xff]
      %v705 = vld [vmem:[%s1 + $0xbb0] sm:$0xff]
      %v706 = vld [vmem:[%s1 + $0xbb8] sm:$0xff]
      %v707 = vld [vmem:[%s1 + $0xbc0] sm:$0xff]
      %v708 = vld [vmem:[%s1 + $0xbc8] sm:$0xff]
      %v709 = vld [vmem:[%s1 + $0xbd0] sm:$0xff]
      %v710 = vld [vmem:[%s1 + $0xbd8] sm:$0xff]
      %v711 = vld [vmem:[%s1 + $0xbe0] sm:$0xff]
      %v712 = vld [vmem:[%s1 + $0xbe8] sm:$0xff]
      %v713 = vld [vmem:[%s1 + $0xbf0] sm:$0xff]
      %v714 = vld [vmem:[%s1 + $0xbf8] sm:$0xff]
      %v715 = vld [vmem:[%s2] sm:$0x3]
      %v717 = vlaneseq
      %v718 = vshrl.u32 %v717, 7
      %v719 = vsub.s32 0, %v718
      %v720 = vrot.slane %v715, %v719
      %v721 = vlaneseq
      %v722 = vshrl.u32 %v721, 7
      %v723 = vsub.s32 1, %v722
      %v724 = vrot.slane %v715, %v723
      %v751 = vunpack.c.l.b16 %v307
      %v752 = vunpack.c.h.b16 %v307
      %v753 = vunpack.c.l.b16 %v308
      %v754 = vunpack.c.h.b16 %v308
      %v755 = vunpack.c.l.b16 %v309
      %v756 = vunpack.c.h.b16 %v309
      %v757 = vunpack.c.l.b16 %v310
      %v758 = vunpack.c.h.b16 %v310
      %v759 = vunpack.c.l.b16 %v311
      %v760 = vunpack.c.h.b16 %v311
      %v761 = vunpack.c.l.b16 %v312
      %v762 = vunpack.c.h.b16 %v312
      %v763 = vunpack.c.l.b16 %v313
      %v764 = vunpack.c.h.b16 %v313
      %v765 = vunpack.c.l.b16 %v314
      %v766 = vunpack.c.h.b16 %v314
      %v767 = vunpack.c.l.b16 %v315
      %v768 = vunpack.c.h.b16 %v315
      %v769 = vunpack.c.l.b16 %v316
      %v770 = vunpack.c.h.b16 %v316
      %v771 = vunpack.c.l.b16 %v317
      %v772 = vunpack.c.h.b16 %v317
      %v773 = vunpack.c.l.b16 %v318
      %v774 = vunpack.c.h.b16 %v318
      %v775 = vunpack.c.l.b16 %v319
      %v776 = vunpack.c.h.b16 %v319
      %v777 = vunpack.c.l.b16 %v320
      %v778 = vunpack.c.h.b16 %v320
      %v779 = vunpack.c.l.b16 %v321
      %v780 = vunpack.c.h.b16 %v321
      %v781 = vunpack.c.l.b16 %v322
      %v782 = vunpack.c.h.b16 %v322
      %v783 = vunpack.c.l.b16 %v323
      %v784 = vunpack.c.h.b16 %v323
      %v785 = vunpack.c.l.b16 %v324
      %v786 = vunpack.c.h.b16 %v324
      %v787 = vunpack.c.l.b16 %v325
      %v788 = vunpack.c.h.b16 %v325
      %v789 = vunpack.c.l.b16 %v326
      %v790 = vunpack.c.h.b16 %v326
      %v791 = vunpack.c.l.b16 %v327
      %v792 = vunpack.c.h.b16 %v327
      %v793 = vunpack.c.l.b16 %v328
      %v794 = vunpack.c.h.b16 %v328
      %v795 = vunpack.c.l.b16 %v329
      %v796 = vunpack.c.h.b16 %v329
      %v797 = vunpack.c.l.b16 %v330
      %v798 = vunpack.c.h.b16 %v330
      %v799 = vpack.c.b16 %v775, %v751
      %v800 = vpack.c.b16 %v776, %v752
      %v801 = vpack.c.b16 %v777, %v753
      %v802 = vpack.c.b16 %v778, %v754
      %v803 = vpack.c.b16 %v779, %v755
      %v804 = vpack.c.b16 %v780, %v756
      %v805 = vpack.c.b16 %v781, %v757
      %v806 = vpack.c.b16 %v782, %v758
      %v807 = vpack.c.b16 %v783, %v759
      %v808 = vpack.c.b16 %v784, %v760
      %v809 = vpack.c.b16 %v785, %v761
      %v810 = vpack.c.b16 %v786, %v762
      %v811 = vpack.c.b16 %v787, %v763
      %v812 = vpack.c.b16 %v788, %v764
      %v813 = vpack.c.b16 %v789, %v765
      %v814 = vpack.c.b16 %v790, %v766
      %v815 = vpack.c.b16 %v791, %v767
      %v816 = vpack.c.b16 %v792, %v768
      %v817 = vpack.c.b16 %v793, %v769
      %v818 = vpack.c.b16 %v794, %v770
      %v819 = vpack.c.b16 %v795, %v771
      %v820 = vpack.c.b16 %v796, %v772
      %v821 = vpack.c.b16 %v797, %v773
      %v822 = vpack.c.b16 %v798, %v774
      %v1231 = vunpack.c.l.b16 %v331
      %v1232 = vunpack.c.h.b16 %v331
      %v1233 = vunpack.c.l.b16 %v332
      %v1234 = vunpack.c.h.b16 %v332
      %v1235 = vunpack.c.l.b16 %v333
      %v1236 = vunpack.c.h.b16 %v333
      %v1237 = vunpack.c.l.b16 %v334
      %v1238 = vunpack.c.h.b16 %v334
      %v1239 = vunpack.c.l.b16 %v335
      %v1240 = vunpack.c.h.b16 %v335
      %v1241 = vunpack.c.l.b16 %v336
      %v1242 = vunpack.c.h.b16 %v336
      %v1243 = vunpack.c.l.b16 %v337
      %v1244 = vunpack.c.h.b16 %v337
      %v1245 = vunpack.c.l.b16 %v338
      %v1246 = vunpack.c.h.b16 %v338
      %v1247 = vunpack.c.l.b16 %v339
      %v1248 = vunpack.c.h.b16 %v339
      %v1249 = vunpack.c.l.b16 %v340
      %v1250 = vunpack.c.h.b16 %v340
      %v1251 = vunpack.c.l.b16 %v341
      %v1252 = vunpack.c.h.b16 %v341
      %v1253 = vunpack.c.l.b16 %v342
      %v1254 = vunpack.c.h.b16 %v342
      %v1255 = vunpack.c.l.b16 %v343
      %v1256 = vunpack.c.h.b16 %v343
      %v1257 = vunpack.c.l.b16 %v344
      %v1258 = vunpack.c.h.b16 %v344
      %v1259 = vunpack.c.l.b16 %v345
      %v1260 = vunpack.c.h.b16 %v345
      %v1261 = vunpack.c.l.b16 %v346
      %v1262 = vunpack.c.h.b16 %v346
      %v1263 = vunpack.c.l.b16 %v347
      %v1264 = vunpack.c.h.b16 %v347
      %v1265 = vunpack.c.l.b16 %v348
      %v1266 = vunpack.c.h.b16 %v348
      %v1267 = vunpack.c.l.b16 %v349
      %v1268 = vunpack.c.h.b16 %v349
      %v1269 = vunpack.c.l.b16 %v350
      %v1270 = vunpack.c.h.b16 %v350
      %v1271 = vunpack.c.l.b16 %v351
      %v1272 = vunpack.c.h.b16 %v351
      %v1273 = vunpack.c.l.b16 %v352
      %v1274 = vunpack.c.h.b16 %v352
      %v1275 = vunpack.c.l.b16 %v353
      %v1276 = vunpack.c.h.b16 %v353
      %v1277 = vunpack.c.l.b16 %v354
      %v1278 = vunpack.c.h.b16 %v354
      %v1279 = vunpack.c.l.b16 %v355
      %v1280 = vunpack.c.h.b16 %v355
      %v1281 = vunpack.c.l.b16 %v356
      %v1282 = vunpack.c.h.b16 %v356
      %v1283 = vunpack.c.l.b16 %v357
      %v1284 = vunpack.c.h.b16 %v357
      %v1285 = vunpack.c.l.b16 %v358
      %v1286 = vunpack.c.h.b16 %v358
      %v1287 = vunpack.c.l.b16 %v359
      %v1288 = vunpack.c.h.b16 %v359
      %v1289 = vunpack.c.l.b16 %v360
      %v1290 = vunpack.c.h.b16 %v360
      %v1291 = vunpack.c.l.b16 %v361
      %v1292 = vunpack.c.h.b16 %v361
      %v1293 = vunpack.c.l.b16 %v362
      %v1294 = vunpack.c.h.b16 %v362
      %v1295 = vunpack.c.l.b16 %v363
      %v1296 = vunpack.c.h.b16 %v363
      %v1297 = vunpack.c.l.b16 %v364
      %v1298 = vunpack.c.h.b16 %v364
      %v1299 = vunpack.c.l.b16 %v365
      %v1300 = vunpack.c.h.b16 %v365
      %v1301 = vunpack.c.l.b16 %v366
      %v1302 = vunpack.c.h.b16 %v366
      %v1303 = vunpack.c.l.b16 %v367
      %v1304 = vunpack.c.h.b16 %v367
      %v1305 = vunpack.c.l.b16 %v368
      %v1306 = vunpack.c.h.b16 %v368
      %v1307 = vunpack.c.l.b16 %v369
      %v1308 = vunpack.c.h.b16 %v369
      %v1309 = vunpack.c.l.b16 %v370
      %v1310 = vunpack.c.h.b16 %v370
      %v1311 = vunpack.c.l.b16 %v371
      %v1312 = vunpack.c.h.b16 %v371
      %v1313 = vunpack.c.l.b16 %v372
      %v1314 = vunpack.c.h.b16 %v372
      %v1315 = vunpack.c.l.b16 %v373
      %v1316 = vunpack.c.h.b16 %v373
      %v1317 = vunpack.c.l.b16 %v374
      %v1318 = vunpack.c.h.b16 %v374
      %v1319 = vunpack.c.l.b16 %v375
      %v1320 = vunpack.c.h.b16 %v375
      %v1321 = vunpack.c.l.b16 %v376
      %v1322 = vunpack.c.h.b16 %v376
      %v1323 = vunpack.c.l.b16 %v377
      %v1324 = vunpack.c.h.b16 %v377
      %v1325 = vunpack.c.l.b16 %v378
      %v1326 = vunpack.c.h.b16 %v378
      %v1327 = vunpack.c.l.b16 %v379
      %v1328 = vunpack.c.h.b16 %v379
      %v1329 = vunpack.c.l.b16 %v380
      %v1330 = vunpack.c.h.b16 %v380
      %v1331 = vunpack.c.l.b16 %v381
      %v1332 = vunpack.c.h.b16 %v381
      %v1333 = vunpack.c.l.b16 %v382
      %v1334 = vunpack.c.h.b16 %v382
      %v1335 = vunpack.c.l.b16 %v383
      %v1336 = vunpack.c.h.b16 %v383
      %v1337 = vunpack.c.l.b16 %v384
      %v1338 = vunpack.c.h.b16 %v384
      %v1339 = vunpack.c.l.b16 %v385
      %v1340 = vunpack.c.h.b16 %v385
      %v1341 = vunpack.c.l.b16 %v386
      %v1342 = vunpack.c.h.b16 %v386
      %v1343 = vunpack.c.l.b16 %v387
      %v1344 = vunpack.c.h.b16 %v387
      %v1345 = vunpack.c.l.b16 %v388
      %v1346 = vunpack.c.h.b16 %v388
      %v1347 = vunpack.c.l.b16 %v389
      %v1348 = vunpack.c.h.b16 %v389
      %v1349 = vunpack.c.l.b16 %v390
      %v1350 = vunpack.c.h.b16 %v390
      %v1351 = vunpack.c.l.b16 %v391
      %v1352 = vunpack.c.h.b16 %v391
      %v1353 = vunpack.c.l.b16 %v392
      %v1354 = vunpack.c.h.b16 %v392
      %v1355 = vunpack.c.l.b16 %v393
      %v1356 = vunpack.c.h.b16 %v393
      %v1357 = vunpack.c.l.b16 %v394
      %v1358 = vunpack.c.h.b16 %v394
      %v1359 = vunpack.c.l.b16 %v395
      %v1360 = vunpack.c.h.b16 %v395
      %v1361 = vunpack.c.l.b16 %v396
      %v1362 = vunpack.c.h.b16 %v396
      %v1363 = vunpack.c.l.b16 %v397
      %v1364 = vunpack.c.h.b16 %v397
      %v1365 = vunpack.c.l.b16 %v398
      %v1366 = vunpack.c.h.b16 %v398
      %v1367 = vunpack.c.l.b16 %v399
      %v1368 = vunpack.c.h.b16 %v399
      %v1369 = vunpack.c.l.b16 %v400
      %v1370 = vunpack.c.h.b16 %v400
      %v1371 = vunpack.c.l.b16 %v401
      %v1372 = vunpack.c.h.b16 %v401
      %v1373 = vunpack.c.l.b16 %v402
      %v1374 = vunpack.c.h.b16 %v402
      %v1375 = vunpack.c.l.b16 %v403
      %v1376 = vunpack.c.h.b16 %v403
      %v1377 = vunpack.c.l.b16 %v404
      %v1378 = vunpack.c.h.b16 %v404
      %v1379 = vunpack.c.l.b16 %v405
      %v1380 = vunpack.c.h.b16 %v405
      %v1381 = vunpack.c.l.b16 %v406
      %v1382 = vunpack.c.h.b16 %v406
      %v1383 = vunpack.c.l.b16 %v407
      %v1384 = vunpack.c.h.b16 %v407
      %v1385 = vunpack.c.l.b16 %v408
      %v1386 = vunpack.c.h.b16 %v408
      %v1387 = vunpack.c.l.b16 %v409
      %v1388 = vunpack.c.h.b16 %v409
      %v1389 = vunpack.c.l.b16 %v410
      %v1390 = vunpack.c.h.b16 %v410
      %v1391 = vunpack.c.l.b16 %v411
      %v1392 = vunpack.c.h.b16 %v411
      %v1393 = vunpack.c.l.b16 %v412
      %v1394 = vunpack.c.h.b16 %v412
      %v1395 = vunpack.c.l.b16 %v413
      %v1396 = vunpack.c.h.b16 %v413
      %v1397 = vunpack.c.l.b16 %v414
      %v1398 = vunpack.c.h.b16 %v414
      %v1399 = vunpack.c.l.b16 %v415
      %v1400 = vunpack.c.h.b16 %v415
      %v1401 = vunpack.c.l.b16 %v416
      %v1402 = vunpack.c.h.b16 %v416
      %v1403 = vunpack.c.l.b16 %v417
      %v1404 = vunpack.c.h.b16 %v417
      %v1405 = vunpack.c.l.b16 %v418
      %v1406 = vunpack.c.h.b16 %v418
      %v1407 = vunpack.c.l.b16 %v419
      %v1408 = vunpack.c.h.b16 %v419
      %v1409 = vunpack.c.l.b16 %v420
      %v1410 = vunpack.c.h.b16 %v420
      %v1411 = vunpack.c.l.b16 %v421
      %v1412 = vunpack.c.h.b16 %v421
      %v1413 = vunpack.c.l.b16 %v422
      %v1414 = vunpack.c.h.b16 %v422
      %v1415 = vunpack.c.l.b16 %v423
      %v1416 = vunpack.c.h.b16 %v423
      %v1417 = vunpack.c.l.b16 %v424
      %v1418 = vunpack.c.h.b16 %v424
      %v1419 = vunpack.c.l.b16 %v425
      %v1420 = vunpack.c.h.b16 %v425
      %v1421 = vunpack.c.l.b16 %v426
      %v1422 = vunpack.c.h.b16 %v426
      %v1423 = vunpack.c.l.b16 %v427
      %v1424 = vunpack.c.h.b16 %v427
      %v1425 = vunpack.c.l.b16 %v428
      %v1426 = vunpack.c.h.b16 %v428
      %v1427 = vunpack.c.l.b16 %v429
      %v1428 = vunpack.c.h.b16 %v429
      %v1429 = vunpack.c.l.b16 %v430
      %v1430 = vunpack.c.h.b16 %v430
      %v1431 = vunpack.c.l.b16 %v431
      %v1432 = vunpack.c.h.b16 %v431
      %v1433 = vunpack.c.l.b16 %v432
      %v1434 = vunpack.c.h.b16 %v432
      %v1435 = vunpack.c.l.b16 %v433
      %v1436 = vunpack.c.h.b16 %v433
      %v1437 = vunpack.c.l.b16 %v434
      %v1438 = vunpack.c.h.b16 %v434
      %v1439 = vunpack.c.l.b16 %v435
      %v1440 = vunpack.c.h.b16 %v435
      %v1441 = vunpack.c.l.b16 %v436
      %v1442 = vunpack.c.h.b16 %v436
      %v1443 = vunpack.c.l.b16 %v437
      %v1444 = vunpack.c.h.b16 %v437
      %v1445 = vunpack.c.l.b16 %v438
      %v1446 = vunpack.c.h.b16 %v438
      %v1447 = vunpack.c.l.b16 %v439
      %v1448 = vunpack.c.h.b16 %v439
      %v1449 = vunpack.c.l.b16 %v440
      %v1450 = vunpack.c.h.b16 %v440
      %v1451 = vunpack.c.l.b16 %v441
      %v1452 = vunpack.c.h.b16 %v441
      %v1453 = vunpack.c.l.b16 %v442
      %v1454 = vunpack.c.h.b16 %v442
      %v1455 = vunpack.c.l.b16 %v443
      %v1456 = vunpack.c.h.b16 %v443
      %v1457 = vunpack.c.l.b16 %v444
      %v1458 = vunpack.c.h.b16 %v444
      %v1459 = vunpack.c.l.b16 %v445
      %v1460 = vunpack.c.h.b16 %v445
      %v1461 = vunpack.c.l.b16 %v446
      %v1462 = vunpack.c.h.b16 %v446
      %v1463 = vunpack.c.l.b16 %v447
      %v1464 = vunpack.c.h.b16 %v447
      %v1465 = vunpack.c.l.b16 %v448
      %v1466 = vunpack.c.h.b16 %v448
      %v1467 = vunpack.c.l.b16 %v449
      %v1468 = vunpack.c.h.b16 %v449
      %v1469 = vunpack.c.l.b16 %v450
      %v1470 = vunpack.c.h.b16 %v450
      %v1471 = vunpack.c.l.b16 %v451
      %v1472 = vunpack.c.h.b16 %v451
      %v1473 = vunpack.c.l.b16 %v452
      %v1474 = vunpack.c.h.b16 %v452
      %v1475 = vunpack.c.l.b16 %v453
      %v1476 = vunpack.c.h.b16 %v453
      %v1477 = vunpack.c.l.b16 %v454
      %v1478 = vunpack.c.h.b16 %v454
      %v1479 = vunpack.c.l.b16 %v455
      %v1480 = vunpack.c.h.b16 %v455
      %v1481 = vunpack.c.l.b16 %v456
      %v1482 = vunpack.c.h.b16 %v456
      %v1483 = vunpack.c.l.b16 %v457
      %v1484 = vunpack.c.h.b16 %v457
      %v1485 = vunpack.c.l.b16 %v458
      %v1486 = vunpack.c.h.b16 %v458
      %v1487 = vunpack.c.l.b16 %v459
      %v1488 = vunpack.c.h.b16 %v459
      %v1489 = vunpack.c.l.b16 %v460
      %v1490 = vunpack.c.h.b16 %v460
      %v1491 = vunpack.c.l.b16 %v461
      %v1492 = vunpack.c.h.b16 %v461
      %v1493 = vunpack.c.l.b16 %v462
      %v1494 = vunpack.c.h.b16 %v462
      %v1495 = vunpack.c.l.b16 %v463
      %v1496 = vunpack.c.h.b16 %v463
      %v1497 = vunpack.c.l.b16 %v464
      %v1498 = vunpack.c.h.b16 %v464
      %v1499 = vunpack.c.l.b16 %v465
      %v1500 = vunpack.c.h.b16 %v465
      %v1501 = vunpack.c.l.b16 %v466
      %v1502 = vunpack.c.h.b16 %v466
      %v1503 = vunpack.c.l.b16 %v467
      %v1504 = vunpack.c.h.b16 %v467
      %v1505 = vunpack.c.l.b16 %v468
      %v1506 = vunpack.c.h.b16 %v468
      %v1507 = vunpack.c.l.b16 %v469
      %v1508 = vunpack.c.h.b16 %v469
      %v1509 = vunpack.c.l.b16 %v470
      %v1510 = vunpack.c.h.b16 %v470
      %v1511 = vunpack.c.l.b16 %v471
      %v1512 = vunpack.c.h.b16 %v471
      %v1513 = vunpack.c.l.b16 %v472
      %v1514 = vunpack.c.h.b16 %v472
      %v1515 = vunpack.c.l.b16 %v473
      %v1516 = vunpack.c.h.b16 %v473
      %v1517 = vunpack.c.l.b16 %v474
      %v1518 = vunpack.c.h.b16 %v474
      %v1519 = vunpack.c.l.b16 %v475
      %v1520 = vunpack.c.h.b16 %v475
      %v1521 = vunpack.c.l.b16 %v476
      %v1522 = vunpack.c.h.b16 %v476
      %v1523 = vunpack.c.l.b16 %v477
      %v1524 = vunpack.c.h.b16 %v477
      %v1525 = vunpack.c.l.b16 %v478
      %v1526 = vunpack.c.h.b16 %v478
      %v1527 = vunpack.c.l.b16 %v479
      %v1528 = vunpack.c.h.b16 %v479
      %v1529 = vunpack.c.l.b16 %v480
      %v1530 = vunpack.c.h.b16 %v480
      %v1531 = vunpack.c.l.b16 %v481
      %v1532 = vunpack.c.h.b16 %v481
      %v1533 = vunpack.c.l.b16 %v482
      %v1534 = vunpack.c.h.b16 %v482
      %v1535 = vunpack.c.l.b16 %v483
      %v1536 = vunpack.c.h.b16 %v483
      %v1537 = vunpack.c.l.b16 %v484
      %v1538 = vunpack.c.h.b16 %v484
      %v1539 = vunpack.c.l.b16 %v485
      %v1540 = vunpack.c.h.b16 %v485
      %v1541 = vunpack.c.l.b16 %v486
      %v1542 = vunpack.c.h.b16 %v486
      %v1543 = vunpack.c.l.b16 %v487
      %v1544 = vunpack.c.h.b16 %v487
      %v1545 = vunpack.c.l.b16 %v488
      %v1546 = vunpack.c.h.b16 %v488
      %v1547 = vunpack.c.l.b16 %v489
      %v1548 = vunpack.c.h.b16 %v489
      %v1549 = vunpack.c.l.b16 %v490
      %v1550 = vunpack.c.h.b16 %v490
      %v1551 = vunpack.c.l.b16 %v491
      %v1552 = vunpack.c.h.b16 %v491
      %v1553 = vunpack.c.l.b16 %v492
      %v1554 = vunpack.c.h.b16 %v492
      %v1555 = vunpack.c.l.b16 %v493
      %v1556 = vunpack.c.h.b16 %v493
      %v1557 = vunpack.c.l.b16 %v494
      %v1558 = vunpack.c.h.b16 %v494
      %v1559 = vunpack.c.l.b16 %v495
      %v1560 = vunpack.c.h.b16 %v495
      %v1561 = vunpack.c.l.b16 %v496
      %v1562 = vunpack.c.h.b16 %v496
      %v1563 = vunpack.c.l.b16 %v497
      %v1564 = vunpack.c.h.b16 %v497
      %v1565 = vunpack.c.l.b16 %v498
      %v1566 = vunpack.c.h.b16 %v498
      %v1567 = vunpack.c.l.b16 %v499
      %v1568 = vunpack.c.h.b16 %v499
      %v1569 = vunpack.c.l.b16 %v500
      %v1570 = vunpack.c.h.b16 %v500
      %v1571 = vunpack.c.l.b16 %v501
      %v1572 = vunpack.c.h.b16 %v501
      %v1573 = vunpack.c.l.b16 %v502
      %v1574 = vunpack.c.h.b16 %v502
      %v1575 = vunpack.c.l.b16 %v503
      %v1576 = vunpack.c.h.b16 %v503
      %v1577 = vunpack.c.l.b16 %v504
      %v1578 = vunpack.c.h.b16 %v504
      %v1579 = vunpack.c.l.b16 %v505
      %v1580 = vunpack.c.h.b16 %v505
      %v1581 = vunpack.c.l.b16 %v506
      %v1582 = vunpack.c.h.b16 %v506
      %v1583 = vunpack.c.l.b16 %v507
      %v1584 = vunpack.c.h.b16 %v507
      %v1585 = vunpack.c.l.b16 %v508
      %v1586 = vunpack.c.h.b16 %v508
      %v1587 = vunpack.c.l.b16 %v509
      %v1588 = vunpack.c.h.b16 %v509
      %v1589 = vunpack.c.l.b16 %v510
      %v1590 = vunpack.c.h.b16 %v510
      %v1591 = vunpack.c.l.b16 %v511
      %v1592 = vunpack.c.h.b16 %v511
      %v1593 = vunpack.c.l.b16 %v512
      %v1594 = vunpack.c.h.b16 %v512
      %v1595 = vunpack.c.l.b16 %v513
      %v1596 = vunpack.c.h.b16 %v513
      %v1597 = vunpack.c.l.b16 %v514
      %v1598 = vunpack.c.h.b16 %v514
      %v1599 = vunpack.c.l.b16 %v515
      %v1600 = vunpack.c.h.b16 %v515
      %v1601 = vunpack.c.l.b16 %v516
      %v1602 = vunpack.c.h.b16 %v516
      %v1603 = vunpack.c.l.b16 %v517
      %v1604 = vunpack.c.h.b16 %v517
      %v1605 = vunpack.c.l.b16 %v518
      %v1606 = vunpack.c.h.b16 %v518
      %v1607 = vunpack.c.l.b16 %v519
      %v1608 = vunpack.c.h.b16 %v519
      %v1609 = vunpack.c.l.b16 %v520
      %v1610 = vunpack.c.h.b16 %v520
      %v1611 = vunpack.c.l.b16 %v521
      %v1612 = vunpack.c.h.b16 %v521
      %v1613 = vunpack.c.l.b16 %v522
      %v1614 = vunpack.c.h.b16 %v522
      %v1615 = vunpack.c.l.b16 %v523
      %v1616 = vunpack.c.h.b16 %v523
      %v1617 = vunpack.c.l.b16 %v524
      %v1618 = vunpack.c.h.b16 %v524
      %v1619 = vunpack.c.l.b16 %v525
      %v1620 = vunpack.c.h.b16 %v525
      %v1621 = vunpack.c.l.b16 %v526
      %v1622 = vunpack.c.h.b16 %v526
      %v1623 = vunpack.c.l.b16 %v527
      %v1624 = vunpack.c.h.b16 %v527
      %v1625 = vunpack.c.l.b16 %v528
      %v1626 = vunpack.c.h.b16 %v528
      %v1627 = vunpack.c.l.b16 %v529
      %v1628 = vunpack.c.h.b16 %v529
      %v1629 = vunpack.c.l.b16 %v530
      %v1630 = vunpack.c.h.b16 %v530
      %v1631 = vunpack.c.l.b16 %v531
      %v1632 = vunpack.c.h.b16 %v531
      %v1633 = vunpack.c.l.b16 %v532
      %v1634 = vunpack.c.h.b16 %v532
      %v1635 = vunpack.c.l.b16 %v533
      %v1636 = vunpack.c.h.b16 %v533
      %v1637 = vunpack.c.l.b16 %v534
      %v1638 = vunpack.c.h.b16 %v534
      %v1639 = vunpack.c.l.b16 %v535
      %v1640 = vunpack.c.h.b16 %v535
      %v1641 = vunpack.c.l.b16 %v536
      %v1642 = vunpack.c.h.b16 %v536
      %v1643 = vunpack.c.l.b16 %v537
      %v1644 = vunpack.c.h.b16 %v537
      %v1645 = vunpack.c.l.b16 %v538
      %v1646 = vunpack.c.h.b16 %v538
      %v1647 = vunpack.c.l.b16 %v539
      %v1648 = vunpack.c.h.b16 %v539
      %v1649 = vunpack.c.l.b16 %v540
      %v1650 = vunpack.c.h.b16 %v540
      %v1651 = vunpack.c.l.b16 %v541
      %v1652 = vunpack.c.h.b16 %v541
      %v1653 = vunpack.c.l.b16 %v542
      %v1654 = vunpack.c.h.b16 %v542
      %v1655 = vunpack.c.l.b16 %v543
      %v1656 = vunpack.c.h.b16 %v543
      %v1657 = vunpack.c.l.b16 %v544
      %v1658 = vunpack.c.h.b16 %v544
      %v1659 = vunpack.c.l.b16 %v545
      %v1660 = vunpack.c.h.b16 %v545
      %v1661 = vunpack.c.l.b16 %v546
      %v1662 = vunpack.c.h.b16 %v546
      %v1663 = vunpack.c.l.b16 %v547
      %v1664 = vunpack.c.h.b16 %v547
      %v1665 = vunpack.c.l.b16 %v548
      %v1666 = vunpack.c.h.b16 %v548
      %v1667 = vunpack.c.l.b16 %v549
      %v1668 = vunpack.c.h.b16 %v549
      %v1669 = vunpack.c.l.b16 %v550
      %v1670 = vunpack.c.h.b16 %v550
      %v1671 = vunpack.c.l.b16 %v551
      %v1672 = vunpack.c.h.b16 %v551
      %v1673 = vunpack.c.l.b16 %v552
      %v1674 = vunpack.c.h.b16 %v552
      %v1675 = vunpack.c.l.b16 %v553
      %v1676 = vunpack.c.h.b16 %v553
      %v1677 = vunpack.c.l.b16 %v554
      %v1678 = vunpack.c.h.b16 %v554
      %v1679 = vunpack.c.l.b16 %v555
      %v1680 = vunpack.c.h.b16 %v555
      %v1681 = vunpack.c.l.b16 %v556
      %v1682 = vunpack.c.h.b16 %v556
      %v1683 = vunpack.c.l.b16 %v557
      %v1684 = vunpack.c.h.b16 %v557
      %v1685 = vunpack.c.l.b16 %v558
      %v1686 = vunpack.c.h.b16 %v558
      %v1687 = vunpack.c.l.b16 %v559
      %v1688 = vunpack.c.h.b16 %v559
      %v1689 = vunpack.c.l.b16 %v560
      %v1690 = vunpack.c.h.b16 %v560
      %v1691 = vunpack.c.l.b16 %v561
      %v1692 = vunpack.c.h.b16 %v561
      %v1693 = vunpack.c.l.b16 %v562
      %v1694 = vunpack.c.h.b16 %v562
      %v1695 = vunpack.c.l.b16 %v563
      %v1696 = vunpack.c.h.b16 %v563
      %v1697 = vunpack.c.l.b16 %v564
      %v1698 = vunpack.c.h.b16 %v564
      %v1699 = vunpack.c.l.b16 %v565
      %v1700 = vunpack.c.h.b16 %v565
      %v1701 = vunpack.c.l.b16 %v566
      %v1702 = vunpack.c.h.b16 %v566
      %v1703 = vunpack.c.l.b16 %v567
      %v1704 = vunpack.c.h.b16 %v567
      %v1705 = vunpack.c.l.b16 %v568
      %v1706 = vunpack.c.h.b16 %v568
      %v1707 = vunpack.c.l.b16 %v569
      %v1708 = vunpack.c.h.b16 %v569
      %v1709 = vunpack.c.l.b16 %v570
      %v1710 = vunpack.c.h.b16 %v570
      %v1711 = vunpack.c.l.b16 %v571
      %v1712 = vunpack.c.h.b16 %v571
      %v1713 = vunpack.c.l.b16 %v572
      %v1714 = vunpack.c.h.b16 %v572
      %v1715 = vunpack.c.l.b16 %v573
      %v1716 = vunpack.c.h.b16 %v573
      %v1717 = vunpack.c.l.b16 %v574
      %v1718 = vunpack.c.h.b16 %v574
      %v1719 = vunpack.c.l.b16 %v575
      %v1720 = vunpack.c.h.b16 %v575
      %v1721 = vunpack.c.l.b16 %v576
      %v1722 = vunpack.c.h.b16 %v576
      %v1723 = vunpack.c.l.b16 %v577
      %v1724 = vunpack.c.h.b16 %v577
      %v1725 = vunpack.c.l.b16 %v578
      %v1726 = vunpack.c.h.b16 %v578
      %v1727 = vunpack.c.l.b16 %v579
      %v1728 = vunpack.c.h.b16 %v579
      %v1729 = vunpack.c.l.b16 %v580
      %v1730 = vunpack.c.h.b16 %v580
      %v1731 = vunpack.c.l.b16 %v581
      %v1732 = vunpack.c.h.b16 %v581
      %v1733 = vunpack.c.l.b16 %v582
      %v1734 = vunpack.c.h.b16 %v582
      %v1735 = vunpack.c.l.b16 %v583
      %v1736 = vunpack.c.h.b16 %v583
      %v1737 = vunpack.c.l.b16 %v584
      %v1738 = vunpack.c.h.b16 %v584
      %v1739 = vunpack.c.l.b16 %v585
      %v1740 = vunpack.c.h.b16 %v585
      %v1741 = vunpack.c.l.b16 %v586
      %v1742 = vunpack.c.h.b16 %v586
      %v1743 = vunpack.c.l.b16 %v587
      %v1744 = vunpack.c.h.b16 %v587
      %v1745 = vunpack.c.l.b16 %v588
      %v1746 = vunpack.c.h.b16 %v588
      %v1747 = vunpack.c.l.b16 %v589
      %v1748 = vunpack.c.h.b16 %v589
      %v1749 = vunpack.c.l.b16 %v590
      %v1750 = vunpack.c.h.b16 %v590
      %v1751 = vunpack.c.l.b16 %v591
      %v1752 = vunpack.c.h.b16 %v591
      %v1753 = vunpack.c.l.b16 %v592
      %v1754 = vunpack.c.h.b16 %v592
      %v1755 = vunpack.c.l.b16 %v593
      %v1756 = vunpack.c.h.b16 %v593
      %v1757 = vunpack.c.l.b16 %v594
      %v1758 = vunpack.c.h.b16 %v594
      %v1759 = vunpack.c.l.b16 %v595
      %v1760 = vunpack.c.h.b16 %v595
      %v1761 = vunpack.c.l.b16 %v596
      %v1762 = vunpack.c.h.b16 %v596
      %v1763 = vunpack.c.l.b16 %v597
      %v1764 = vunpack.c.h.b16 %v597
      %v1765 = vunpack.c.l.b16 %v598
      %v1766 = vunpack.c.h.b16 %v598
      %v1767 = vunpack.c.l.b16 %v599
      %v1768 = vunpack.c.h.b16 %v599
      %v1769 = vunpack.c.l.b16 %v600
      %v1770 = vunpack.c.h.b16 %v600
      %v1771 = vunpack.c.l.b16 %v601
      %v1772 = vunpack.c.h.b16 %v601
      %v1773 = vunpack.c.l.b16 %v602
      %v1774 = vunpack.c.h.b16 %v602
      %v1775 = vunpack.c.l.b16 %v603
      %v1776 = vunpack.c.h.b16 %v603
      %v1777 = vunpack.c.l.b16 %v604
      %v1778 = vunpack.c.h.b16 %v604
      %v1779 = vunpack.c.l.b16 %v605
      %v1780 = vunpack.c.h.b16 %v605
      %v1781 = vunpack.c.l.b16 %v606
      %v1782 = vunpack.c.h.b16 %v606
      %v1783 = vunpack.c.l.b16 %v607
      %v1784 = vunpack.c.h.b16 %v607
      %v1785 = vunpack.c.l.b16 %v608
      %v1786 = vunpack.c.h.b16 %v608
      %v1787 = vunpack.c.l.b16 %v609
      %v1788 = vunpack.c.h.b16 %v609
      %v1789 = vunpack.c.l.b16 %v610
      %v1790 = vunpack.c.h.b16 %v610
      %v1791 = vunpack.c.l.b16 %v611
      %v1792 = vunpack.c.h.b16 %v611
      %v1793 = vunpack.c.l.b16 %v612
      %v1794 = vunpack.c.h.b16 %v612
      %v1795 = vunpack.c.l.b16 %v613
      %v1796 = vunpack.c.h.b16 %v613
      %v1797 = vunpack.c.l.b16 %v614
      %v1798 = vunpack.c.h.b16 %v614
      %v1799 = vunpack.c.l.b16 %v615
      %v1800 = vunpack.c.h.b16 %v615
      %v1801 = vunpack.c.l.b16 %v616
      %v1802 = vunpack.c.h.b16 %v616
      %v1803 = vunpack.c.l.b16 %v617
      %v1804 = vunpack.c.h.b16 %v617
      %v1805 = vunpack.c.l.b16 %v618
      %v1806 = vunpack.c.h.b16 %v618
      %v1807 = vunpack.c.l.b16 %v619
      %v1808 = vunpack.c.h.b16 %v619
      %v1809 = vunpack.c.l.b16 %v620
      %v1810 = vunpack.c.h.b16 %v620
      %v1811 = vunpack.c.l.b16 %v621
      %v1812 = vunpack.c.h.b16 %v621
      %v1813 = vunpack.c.l.b16 %v622
      %v1814 = vunpack.c.h.b16 %v622
      %v1815 = vunpack.c.l.b16 %v623
      %v1816 = vunpack.c.h.b16 %v623
      %v1817 = vunpack.c.l.b16 %v624
      %v1818 = vunpack.c.h.b16 %v624
      %v1819 = vunpack.c.l.b16 %v625
      %v1820 = vunpack.c.h.b16 %v625
      %v1821 = vunpack.c.l.b16 %v626
      %v1822 = vunpack.c.h.b16 %v626
      %v1823 = vunpack.c.l.b16 %v627
      %v1824 = vunpack.c.h.b16 %v627
      %v1825 = vunpack.c.l.b16 %v628
      %v1826 = vunpack.c.h.b16 %v628
      %v1827 = vunpack.c.l.b16 %v629
      %v1828 = vunpack.c.h.b16 %v629
      %v1829 = vunpack.c.l.b16 %v630
      %v1830 = vunpack.c.h.b16 %v630
      %v1831 = vunpack.c.l.b16 %v631
      %v1832 = vunpack.c.h.b16 %v631
      %v1833 = vunpack.c.l.b16 %v632
      %v1834 = vunpack.c.h.b16 %v632
      %v1835 = vunpack.c.l.b16 %v633
      %v1836 = vunpack.c.h.b16 %v633
      %v1837 = vunpack.c.l.b16 %v634
      %v1838 = vunpack.c.h.b16 %v634
      %v1839 = vunpack.c.l.b16 %v635
      %v1840 = vunpack.c.h.b16 %v635
      %v1841 = vunpack.c.l.b16 %v636
      %v1842 = vunpack.c.h.b16 %v636
      %v1843 = vunpack.c.l.b16 %v637
      %v1844 = vunpack.c.h.b16 %v637
      %v1845 = vunpack.c.l.b16 %v638
      %v1846 = vunpack.c.h.b16 %v638
      %v1847 = vunpack.c.l.b16 %v639
      %v1848 = vunpack.c.h.b16 %v639
      %v1849 = vunpack.c.l.b16 %v640
      %v1850 = vunpack.c.h.b16 %v640
      %v1851 = vunpack.c.l.b16 %v641
      %v1852 = vunpack.c.h.b16 %v641
      %v1853 = vunpack.c.l.b16 %v642
      %v1854 = vunpack.c.h.b16 %v642
      %v1855 = vunpack.c.l.b16 %v643
      %v1856 = vunpack.c.h.b16 %v643
      %v1857 = vunpack.c.l.b16 %v644
      %v1858 = vunpack.c.h.b16 %v644
      %v1859 = vunpack.c.l.b16 %v645
      %v1860 = vunpack.c.h.b16 %v645
      %v1861 = vunpack.c.l.b16 %v646
      %v1862 = vunpack.c.h.b16 %v646
      %v1863 = vunpack.c.l.b16 %v647
      %v1864 = vunpack.c.h.b16 %v647
      %v1865 = vunpack.c.l.b16 %v648
      %v1866 = vunpack.c.h.b16 %v648
      %v1867 = vunpack.c.l.b16 %v649
      %v1868 = vunpack.c.h.b16 %v649
      %v1869 = vunpack.c.l.b16 %v650
      %v1870 = vunpack.c.h.b16 %v650
      %v1871 = vunpack.c.l.b16 %v651
      %v1872 = vunpack.c.h.b16 %v651
      %v1873 = vunpack.c.l.b16 %v652
      %v1874 = vunpack.c.h.b16 %v652
      %v1875 = vunpack.c.l.b16 %v653
      %v1876 = vunpack.c.h.b16 %v653
      %v1877 = vunpack.c.l.b16 %v654
      %v1878 = vunpack.c.h.b16 %v654
      %v1879 = vunpack.c.l.b16 %v655
      %v1880 = vunpack.c.h.b16 %v655
      %v1881 = vunpack.c.l.b16 %v656
      %v1882 = vunpack.c.h.b16 %v656
      %v1883 = vunpack.c.l.b16 %v657
      %v1884 = vunpack.c.h.b16 %v657
      %v1885 = vunpack.c.l.b16 %v658
      %v1886 = vunpack.c.h.b16 %v658
      %v1887 = vunpack.c.l.b16 %v659
      %v1888 = vunpack.c.h.b16 %v659
      %v1889 = vunpack.c.l.b16 %v660
      %v1890 = vunpack.c.h.b16 %v660
      %v1891 = vunpack.c.l.b16 %v661
      %v1892 = vunpack.c.h.b16 %v661
      %v1893 = vunpack.c.l.b16 %v662
      %v1894 = vunpack.c.h.b16 %v662
      %v1895 = vunpack.c.l.b16 %v663
      %v1896 = vunpack.c.h.b16 %v663
      %v1897 = vunpack.c.l.b16 %v664
      %v1898 = vunpack.c.h.b16 %v664
      %v1899 = vunpack.c.l.b16 %v665
      %v1900 = vunpack.c.h.b16 %v665
      %v1901 = vunpack.c.l.b16 %v666
      %v1902 = vunpack.c.h.b16 %v666
      %v1903 = vunpack.c.l.b16 %v667
      %v1904 = vunpack.c.h.b16 %v667
      %v1905 = vunpack.c.l.b16 %v668
      %v1906 = vunpack.c.h.b16 %v668
      %v1907 = vunpack.c.l.b16 %v669
      %v1908 = vunpack.c.h.b16 %v669
      %v1909 = vunpack.c.l.b16 %v670
      %v1910 = vunpack.c.h.b16 %v670
      %v1911 = vunpack.c.l.b16 %v671
      %v1912 = vunpack.c.h.b16 %v671
      %v1913 = vunpack.c.l.b16 %v672
      %v1914 = vunpack.c.h.b16 %v672
      %v1915 = vunpack.c.l.b16 %v673
      %v1916 = vunpack.c.h.b16 %v673
      %v1917 = vunpack.c.l.b16 %v674
      %v1918 = vunpack.c.h.b16 %v674
      %v1919 = vunpack.c.l.b16 %v675
      %v1920 = vunpack.c.h.b16 %v675
      %v1921 = vunpack.c.l.b16 %v676
      %v1922 = vunpack.c.h.b16 %v676
      %v1923 = vunpack.c.l.b16 %v677
      %v1924 = vunpack.c.h.b16 %v677
      %v1925 = vunpack.c.l.b16 %v678
      %v1926 = vunpack.c.h.b16 %v678
      %v1927 = vunpack.c.l.b16 %v679
      %v1928 = vunpack.c.h.b16 %v679
      %v1929 = vunpack.c.l.b16 %v680
      %v1930 = vunpack.c.h.b16 %v680
      %v1931 = vunpack.c.l.b16 %v681
      %v1932 = vunpack.c.h.b16 %v681
      %v1933 = vunpack.c.l.b16 %v682
      %v1934 = vunpack.c.h.b16 %v682
      %v1935 = vunpack.c.l.b16 %v683
      %v1936 = vunpack.c.h.b16 %v683
      %v1937 = vunpack.c.l.b16 %v684
      %v1938 = vunpack.c.h.b16 %v684
      %v1939 = vunpack.c.l.b16 %v685
      %v1940 = vunpack.c.h.b16 %v685
      %v1941 = vunpack.c.l.b16 %v686
      %v1942 = vunpack.c.h.b16 %v686
      %v1943 = vunpack.c.l.b16 %v687
      %v1944 = vunpack.c.h.b16 %v687
      %v1945 = vunpack.c.l.b16 %v688
      %v1946 = vunpack.c.h.b16 %v688
      %v1947 = vunpack.c.l.b16 %v689
      %v1948 = vunpack.c.h.b16 %v689
      %v1949 = vunpack.c.l.b16 %v690
      %v1950 = vunpack.c.h.b16 %v690
      %v1951 = vunpack.c.l.b16 %v691
      %v1952 = vunpack.c.h.b16 %v691
      %v1953 = vunpack.c.l.b16 %v692
      %v1954 = vunpack.c.h.b16 %v692
      %v1955 = vunpack.c.l.b16 %v693
      %v1956 = vunpack.c.h.b16 %v693
      %v1957 = vunpack.c.l.b16 %v694
      %v1958 = vunpack.c.h.b16 %v694
      %v1959 = vunpack.c.l.b16 %v695
      %v1960 = vunpack.c.h.b16 %v695
      %v1961 = vunpack.c.l.b16 %v696
      %v1962 = vunpack.c.h.b16 %v696
      %v1963 = vunpack.c.l.b16 %v697
      %v1964 = vunpack.c.h.b16 %v697
      %v1965 = vunpack.c.l.b16 %v698
      %v1966 = vunpack.c.h.b16 %v698
      %v1967 = vunpack.c.l.b16 %v699
      %v1968 = vunpack.c.h.b16 %v699
      %v1969 = vunpack.c.l.b16 %v700
      %v1970 = vunpack.c.h.b16 %v700
      %v1971 = vunpack.c.l.b16 %v701
      %v1972 = vunpack.c.h.b16 %v701
      %v1973 = vunpack.c.l.b16 %v702
      %v1974 = vunpack.c.h.b16 %v702
      %v1975 = vunpack.c.l.b16 %v703
      %v1976 = vunpack.c.h.b16 %v703
      %v1977 = vunpack.c.l.b16 %v704
      %v1978 = vunpack.c.h.b16 %v704
      %v1979 = vunpack.c.l.b16 %v705
      %v1980 = vunpack.c.h.b16 %v705
      %v1981 = vunpack.c.l.b16 %v706
      %v1982 = vunpack.c.h.b16 %v706
      %v1983 = vunpack.c.l.b16 %v707
      %v1984 = vunpack.c.h.b16 %v707
      %v1985 = vunpack.c.l.b16 %v708
      %v1986 = vunpack.c.h.b16 %v708
      %v1987 = vunpack.c.l.b16 %v709
      %v1988 = vunpack.c.h.b16 %v709
      %v1989 = vunpack.c.l.b16 %v710
      %v1990 = vunpack.c.h.b16 %v710
      %v1991 = vunpack.c.l.b16 %v711
      %v1992 = vunpack.c.h.b16 %v711
      %v1993 = vunpack.c.l.b16 %v712
      %v1994 = vunpack.c.h.b16 %v712
      %v1995 = vunpack.c.l.b16 %v713
      %v1996 = vunpack.c.h.b16 %v713
      %v1997 = vunpack.c.l.b16 %v714
      %v1998 = vunpack.c.h.b16 %v714
      %v1999 = vpack.c.b16 %v1233, %v1231
      %v2000 = vpack.c.b16 %v1234, %v1232
      %v2001 = vpack.c.b16 %v1237, %v1235
      %v2002 = vpack.c.b16 %v1238, %v1236
      %v2003 = vpack.c.b16 %v1241, %v1239
      %v2004 = vpack.c.b16 %v1242, %v1240
      %v2005 = vpack.c.b16 %v1245, %v1243
      %v2006 = vpack.c.b16 %v1246, %v1244
      %v2007 = vpack.c.b16 %v1249, %v1247
      %v2008 = vpack.c.b16 %v1250, %v1248
      %v2009 = vpack.c.b16 %v1253, %v1251
      %v2010 = vpack.c.b16 %v1254, %v1252
      %v2011 = vpack.c.b16 %v1257, %v1255
      %v2012 = vpack.c.b16 %v1258, %v1256
      %v2013 = vpack.c.b16 %v1261, %v1259
      %v2014 = vpack.c.b16 %v1262, %v1260
      %v2015 = vpack.c.b16 %v1265, %v1263
      %v2016 = vpack.c.b16 %v1266, %v1264
      %v2017 = vpack.c.b16 %v1269, %v1267
      %v2018 = vpack.c.b16 %v1270, %v1268
      %v2019 = vpack.c.b16 %v1273, %v1271
      %v2020 = vpack.c.b16 %v1274, %v1272
      %v2021 = vpack.c.b16 %v1277, %v1275
      %v2022 = vpack.c.b16 %v1278, %v1276
      %v2023 = vpack.c.b16 %v1281, %v1279
      %v2024 = vpack.c.b16 %v1282, %v1280
      %v2025 = vpack.c.b16 %v1285, %v1283
      %v2026 = vpack.c.b16 %v1286, %v1284
      %v2027 = vpack.c.b16 %v1289, %v1287
      %v2028 = vpack.c.b16 %v1290, %v1288
      %v2029 = vpack.c.b16 %v1293, %v1291
      %v2030 = vpack.c.b16 %v1294, %v1292
      %v2031 = vpack.c.b16 %v1297, %v1295
      %v2032 = vpack.c.b16 %v1298, %v1296
      %v2033 = vpack.c.b16 %v1301, %v1299
      %v2034 = vpack.c.b16 %v1302, %v1300
      %v2035 = vpack.c.b16 %v1305, %v1303
      %v2036 = vpack.c.b16 %v1306, %v1304
      %v2037 = vpack.c.b16 %v1309, %v1307
      %v2038 = vpack.c.b16 %v1310, %v1308
      %v2039 = vpack.c.b16 %v1313, %v1311
      %v2040 = vpack.c.b16 %v1314, %v1312
      %v2041 = vpack.c.b16 %v1317, %v1315
      %v2042 = vpack.c.b16 %v1318, %v1316
      %v2043 = vpack.c.b16 %v1321, %v1319
      %v2044 = vpack.c.b16 %v1322, %v1320
      %v2045 = vpack.c.b16 %v1325, %v1323
      %v2046 = vpack.c.b16 %v1326, %v1324
      %v2047 = vpack.c.b16 %v1329, %v1327
      %v2048 = vpack.c.b16 %v1330, %v1328
      %v2049 = vpack.c.b16 %v1333, %v1331
      %v2050 = vpack.c.b16 %v1334, %v1332
      %v2051 = vpack.c.b16 %v1337, %v1335
      %v2052 = vpack.c.b16 %v1338, %v1336
      %v2053 = vpack.c.b16 %v1341, %v1339
      %v2054 = vpack.c.b16 %v1342, %v1340
      %v2055 = vpack.c.b16 %v1345, %v1343
      %v2056 = vpack.c.b16 %v1346, %v1344
      %v2057 = vpack.c.b16 %v1349, %v1347
      %v2058 = vpack.c.b16 %v1350, %v1348
      %v2059 = vpack.c.b16 %v1353, %v1351
      %v2060 = vpack.c.b16 %v1354, %v1352
      %v2061 = vpack.c.b16 %v1357, %v1355
      %v2062 = vpack.c.b16 %v1358, %v1356
      %v2063 = vpack.c.b16 %v1361, %v1359
      %v2064 = vpack.c.b16 %v1362, %v1360
      %v2065 = vpack.c.b16 %v1365, %v1363
      %v2066 = vpack.c.b16 %v1366, %v1364
      %v2067 = vpack.c.b16 %v1369, %v1367
      %v2068 = vpack.c.b16 %v1370, %v1368
      %v2069 = vpack.c.b16 %v1373, %v1371
      %v2070 = vpack.c.b16 %v1374, %v1372
      %v2071 = vpack.c.b16 %v1377, %v1375
      %v2072 = vpack.c.b16 %v1378, %v1376
      %v2073 = vpack.c.b16 %v1381, %v1379
      %v2074 = vpack.c.b16 %v1382, %v1380
      %v2075 = vpack.c.b16 %v1385, %v1383
      %v2076 = vpack.c.b16 %v1386, %v1384
      %v2077 = vpack.c.b16 %v1389, %v1387
      %v2078 = vpack.c.b16 %v1390, %v1388
      %v2079 = vpack.c.b16 %v1393, %v1391
      %v2080 = vpack.c.b16 %v1394, %v1392
      %v2081 = vpack.c.b16 %v1397, %v1395
      %v2082 = vpack.c.b16 %v1398, %v1396
      %v2083 = vpack.c.b16 %v1401, %v1399
      %v2084 = vpack.c.b16 %v1402, %v1400
      %v2085 = vpack.c.b16 %v1405, %v1403
      %v2086 = vpack.c.b16 %v1406, %v1404
      %v2087 = vpack.c.b16 %v1409, %v1407
      %v2088 = vpack.c.b16 %v1410, %v1408
      %v2089 = vpack.c.b16 %v1413, %v1411
      %v2090 = vpack.c.b16 %v1414, %v1412
      %v2091 = vpack.c.b16 %v1417, %v1415
      %v2092 = vpack.c.b16 %v1418, %v1416
      %v2093 = vpack.c.b16 %v1421, %v1419
      %v2094 = vpack.c.b16 %v1422, %v1420
      %v2095 = vpack.c.b16 %v1425, %v1423
      %v2096 = vpack.c.b16 %v1426, %v1424
      %v2097 = vpack.c.b16 %v1429, %v1427
      %v2098 = vpack.c.b16 %v1430, %v1428
      %v2099 = vpack.c.b16 %v1433, %v1431
      %v2100 = vpack.c.b16 %v1434, %v1432
      %v2101 = vpack.c.b16 %v1437, %v1435
      %v2102 = vpack.c.b16 %v1438, %v1436
      %v2103 = vpack.c.b16 %v1441, %v1439
      %v2104 = vpack.c.b16 %v1442, %v1440
      %v2105 = vpack.c.b16 %v1445, %v1443
      %v2106 = vpack.c.b16 %v1446, %v1444
      %v2107 = vpack.c.b16 %v1449, %v1447
      %v2108 = vpack.c.b16 %v1450, %v1448
      %v2109 = vpack.c.b16 %v1453, %v1451
      %v2110 = vpack.c.b16 %v1454, %v1452
      %v2111 = vpack.c.b16 %v1457, %v1455
      %v2112 = vpack.c.b16 %v1458, %v1456
      %v2113 = vpack.c.b16 %v1461, %v1459
      %v2114 = vpack.c.b16 %v1462, %v1460
      %v2115 = vpack.c.b16 %v1465, %v1463
      %v2116 = vpack.c.b16 %v1466, %v1464
      %v2117 = vpack.c.b16 %v1469, %v1467
      %v2118 = vpack.c.b16 %v1470, %v1468
      %v2119 = vpack.c.b16 %v1473, %v1471
      %v2120 = vpack.c.b16 %v1474, %v1472
      %v2121 = vpack.c.b16 %v1477, %v1475
      %v2122 = vpack.c.b16 %v1478, %v1476
      %v2123 = vpack.c.b16 %v1481, %v1479
      %v2124 = vpack.c.b16 %v1482, %v1480
      %v2125 = vpack.c.b16 %v1485, %v1483
      %v2126 = vpack.c.b16 %v1486, %v1484
      %v2127 = vpack.c.b16 %v1489, %v1487
      %v2128 = vpack.c.b16 %v1490, %v1488
      %v2129 = vpack.c.b16 %v1493, %v1491
      %v2130 = vpack.c.b16 %v1494, %v1492
      %v2131 = vpack.c.b16 %v1497, %v1495
      %v2132 = vpack.c.b16 %v1498, %v1496
      %v2133 = vpack.c.b16 %v1501, %v1499
      %v2134 = vpack.c.b16 %v1502, %v1500
      %v2135 = vpack.c.b16 %v1505, %v1503
      %v2136 = vpack.c.b16 %v1506, %v1504
      %v2137 = vpack.c.b16 %v1509, %v1507
      %v2138 = vpack.c.b16 %v1510, %v1508
      %v2139 = vpack.c.b16 %v1513, %v1511
      %v2140 = vpack.c.b16 %v1514, %v1512
      %v2141 = vpack.c.b16 %v1517, %v1515
      %v2142 = vpack.c.b16 %v1518, %v1516
      %v2143 = vpack.c.b16 %v1521, %v1519
      %v2144 = vpack.c.b16 %v1522, %v1520
      %v2145 = vpack.c.b16 %v1525, %v1523
      %v2146 = vpack.c.b16 %v1526, %v1524
      %v2147 = vpack.c.b16 %v1529, %v1527
      %v2148 = vpack.c.b16 %v1530, %v1528
      %v2149 = vpack.c.b16 %v1533, %v1531
      %v2150 = vpack.c.b16 %v1534, %v1532
      %v2151 = vpack.c.b16 %v1537, %v1535
      %v2152 = vpack.c.b16 %v1538, %v1536
      %v2153 = vpack.c.b16 %v1541, %v1539
      %v2154 = vpack.c.b16 %v1542, %v1540
      %v2155 = vpack.c.b16 %v1545, %v1543
      %v2156 = vpack.c.b16 %v1546, %v1544
      %v2157 = vpack.c.b16 %v1549, %v1547
      %v2158 = vpack.c.b16 %v1550, %v1548
      %v2159 = vpack.c.b16 %v1553, %v1551
      %v2160 = vpack.c.b16 %v1554, %v1552
      %v2161 = vpack.c.b16 %v1557, %v1555
      %v2162 = vpack.c.b16 %v1558, %v1556
      %v2163 = vpack.c.b16 %v1561, %v1559
      %v2164 = vpack.c.b16 %v1562, %v1560
      %v2165 = vpack.c.b16 %v1565, %v1563
      %v2166 = vpack.c.b16 %v1566, %v1564
      %v2167 = vpack.c.b16 %v1569, %v1567
      %v2168 = vpack.c.b16 %v1570, %v1568
      %v2169 = vpack.c.b16 %v1573, %v1571
      %v2170 = vpack.c.b16 %v1574, %v1572
      %v2171 = vpack.c.b16 %v1577, %v1575
      %v2172 = vpack.c.b16 %v1578, %v1576
      %v2173 = vpack.c.b16 %v1581, %v1579
      %v2174 = vpack.c.b16 %v1582, %v1580
      %v2175 = vpack.c.b16 %v1585, %v1583
      %v2176 = vpack.c.b16 %v1586, %v1584
      %v2177 = vpack.c.b16 %v1589, %v1587
      %v2178 = vpack.c.b16 %v1590, %v1588
      %v2179 = vpack.c.b16 %v1593, %v1591
      %v2180 = vpack.c.b16 %v1594, %v1592
      %v2181 = vpack.c.b16 %v1597, %v1595
      %v2182 = vpack.c.b16 %v1598, %v1596
      %v2183 = vpack.c.b16 %v1601, %v1599
      %v2184 = vpack.c.b16 %v1602, %v1600
      %v2185 = vpack.c.b16 %v1605, %v1603
      %v2186 = vpack.c.b16 %v1606, %v1604
      %v2187 = vpack.c.b16 %v1609, %v1607
      %v2188 = vpack.c.b16 %v1610, %v1608
      %v2189 = vpack.c.b16 %v1613, %v1611
      %v2190 = vpack.c.b16 %v1614, %v1612
      %v2191 = vpack.c.b16 %v1617, %v1615
      %v2192 = vpack.c.b16 %v1618, %v1616
      %v2193 = vpack.c.b16 %v1621, %v1619
      %v2194 = vpack.c.b16 %v1622, %v1620
      %v2195 = vpack.c.b16 %v1625, %v1623
      %v2196 = vpack.c.b16 %v1626, %v1624
      %v2197 = vpack.c.b16 %v1629, %v1627
      %v2198 = vpack.c.b16 %v1630, %v1628
      %v2199 = vpack.c.b16 %v1633, %v1631
      %v2200 = vpack.c.b16 %v1634, %v1632
      %v2201 = vpack.c.b16 %v1637, %v1635
      %v2202 = vpack.c.b16 %v1638, %v1636
      %v2203 = vpack.c.b16 %v1641, %v1639
      %v2204 = vpack.c.b16 %v1642, %v1640
      %v2205 = vpack.c.b16 %v1645, %v1643
      %v2206 = vpack.c.b16 %v1646, %v1644
      %v2207 = vpack.c.b16 %v1649, %v1647
      %v2208 = vpack.c.b16 %v1650, %v1648
      %v2209 = vpack.c.b16 %v1653, %v1651
      %v2210 = vpack.c.b16 %v1654, %v1652
      %v2211 = vpack.c.b16 %v1657, %v1655
      %v2212 = vpack.c.b16 %v1658, %v1656
      %v2213 = vpack.c.b16 %v1661, %v1659
      %v2214 = vpack.c.b16 %v1662, %v1660
      %v2215 = vpack.c.b16 %v1665, %v1663
      %v2216 = vpack.c.b16 %v1666, %v1664
      %v2217 = vpack.c.b16 %v1669, %v1667
      %v2218 = vpack.c.b16 %v1670, %v1668
      %v2219 = vpack.c.b16 %v1673, %v1671
      %v2220 = vpack.c.b16 %v1674, %v1672
      %v2221 = vpack.c.b16 %v1677, %v1675
      %v2222 = vpack.c.b16 %v1678, %v1676
      %v2223 = vpack.c.b16 %v1681, %v1679
      %v2224 = vpack.c.b16 %v1682, %v1680
      %v2225 = vpack.c.b16 %v1685, %v1683
      %v2226 = vpack.c.b16 %v1686, %v1684
      %v2227 = vpack.c.b16 %v1689, %v1687
      %v2228 = vpack.c.b16 %v1690, %v1688
      %v2229 = vpack.c.b16 %v1693, %v1691
      %v2230 = vpack.c.b16 %v1694, %v1692
      %v2231 = vpack.c.b16 %v1697, %v1695
      %v2232 = vpack.c.b16 %v1698, %v1696
      %v2233 = vpack.c.b16 %v1701, %v1699
      %v2234 = vpack.c.b16 %v1702, %v1700
      %v2235 = vpack.c.b16 %v1705, %v1703
      %v2236 = vpack.c.b16 %v1706, %v1704
      %v2237 = vpack.c.b16 %v1709, %v1707
      %v2238 = vpack.c.b16 %v1710, %v1708
      %v2239 = vpack.c.b16 %v1713, %v1711
      %v2240 = vpack.c.b16 %v1714, %v1712
      %v2241 = vpack.c.b16 %v1717, %v1715
      %v2242 = vpack.c.b16 %v1718, %v1716
      %v2243 = vpack.c.b16 %v1721, %v1719
      %v2244 = vpack.c.b16 %v1722, %v1720
      %v2245 = vpack.c.b16 %v1725, %v1723
      %v2246 = vpack.c.b16 %v1726, %v1724
      %v2247 = vpack.c.b16 %v1729, %v1727
      %v2248 = vpack.c.b16 %v1730, %v1728
      %v2249 = vpack.c.b16 %v1733, %v1731
      %v2250 = vpack.c.b16 %v1734, %v1732
      %v2251 = vpack.c.b16 %v1737, %v1735
      %v2252 = vpack.c.b16 %v1738, %v1736
      %v2253 = vpack.c.b16 %v1741, %v1739
      %v2254 = vpack.c.b16 %v1742, %v1740
      %v2255 = vpack.c.b16 %v1745, %v1743
      %v2256 = vpack.c.b16 %v1746, %v1744
      %v2257 = vpack.c.b16 %v1749, %v1747
      %v2258 = vpack.c.b16 %v1750, %v1748
      %v2259 = vpack.c.b16 %v1753, %v1751
      %v2260 = vpack.c.b16 %v1754, %v1752
      %v2261 = vpack.c.b16 %v1757, %v1755
      %v2262 = vpack.c.b16 %v1758, %v1756
      %v2263 = vpack.c.b16 %v1761, %v1759
      %v2264 = vpack.c.b16 %v1762, %v1760
      %v2265 = vpack.c.b16 %v1765, %v1763
      %v2266 = vpack.c.b16 %v1766, %v1764
      %v2267 = vpack.c.b16 %v1769, %v1767
      %v2268 = vpack.c.b16 %v1770, %v1768
      %v2269 = vpack.c.b16 %v1773, %v1771
      %v2270 = vpack.c.b16 %v1774, %v1772
      %v2271 = vpack.c.b16 %v1777, %v1775
      %v2272 = vpack.c.b16 %v1778, %v1776
      %v2273 = vpack.c.b16 %v1781, %v1779
      %v2274 = vpack.c.b16 %v1782, %v1780
      %v2275 = vpack.c.b16 %v1785, %v1783
      %v2276 = vpack.c.b16 %v1786, %v1784
      %v2277 = vpack.c.b16 %v1789, %v1787
      %v2278 = vpack.c.b16 %v1790, %v1788
      %v2279 = vpack.c.b16 %v1793, %v1791
      %v2280 = vpack.c.b16 %v1794, %v1792
      %v2281 = vpack.c.b16 %v1797, %v1795
      %v2282 = vpack.c.b16 %v1798, %v1796
      %v2283 = vpack.c.b16 %v1801, %v1799
      %v2284 = vpack.c.b16 %v1802, %v1800
      %v2285 = vpack.c.b16 %v1805, %v1803
      %v2286 = vpack.c.b16 %v1806, %v1804
      %v2287 = vpack.c.b16 %v1809, %v1807
      %v2288 = vpack.c.b16 %v1810, %v1808
      %v2289 = vpack.c.b16 %v1813, %v1811
      %v2290 = vpack.c.b16 %v1814, %v1812
      %v2291 = vpack.c.b16 %v1817, %v1815
      %v2292 = vpack.c.b16 %v1818, %v1816
      %v2293 = vpack.c.b16 %v1821, %v1819
      %v2294 = vpack.c.b16 %v1822, %v1820
      %v2295 = vpack.c.b16 %v1825, %v1823
      %v2296 = vpack.c.b16 %v1826, %v1824
      %v2297 = vpack.c.b16 %v1829, %v1827
      %v2298 = vpack.c.b16 %v1830, %v1828
      %v2299 = vpack.c.b16 %v1833, %v1831
      %v2300 = vpack.c.b16 %v1834, %v1832
      %v2301 = vpack.c.b16 %v1837, %v1835
      %v2302 = vpack.c.b16 %v1838, %v1836
      %v2303 = vpack.c.b16 %v1841, %v1839
      %v2304 = vpack.c.b16 %v1842, %v1840
      %v2305 = vpack.c.b16 %v1845, %v1843
      %v2306 = vpack.c.b16 %v1846, %v1844
      %v2307 = vpack.c.b16 %v1849, %v1847
      %v2308 = vpack.c.b16 %v1850, %v1848
      %v2309 = vpack.c.b16 %v1853, %v1851
      %v2310 = vpack.c.b16 %v1854, %v1852
      %v2311 = vpack.c.b16 %v1857, %v1855
      %v2312 = vpack.c.b16 %v1858, %v1856
      %v2313 = vpack.c.b16 %v1861, %v1859
      %v2314 = vpack.c.b16 %v1862, %v1860
      %v2315 = vpack.c.b16 %v1865, %v1863
      %v2316 = vpack.c.b16 %v1866, %v1864
      %v2317 = vpack.c.b16 %v1869, %v1867
      %v2318 = vpack.c.b16 %v1870, %v1868
      %v2319 = vpack.c.b16 %v1873, %v1871
      %v2320 = vpack.c.b16 %v1874, %v1872
      %v2321 = vpack.c.b16 %v1877, %v1875
      %v2322 = vpack.c.b16 %v1878, %v1876
      %v2323 = vpack.c.b16 %v1881, %v1879
      %v2324 = vpack.c.b16 %v1882, %v1880
      %v2325 = vpack.c.b16 %v1885, %v1883
      %v2326 = vpack.c.b16 %v1886, %v1884
      %v2327 = vpack.c.b16 %v1889, %v1887
      %v2328 = vpack.c.b16 %v1890, %v1888
      %v2329 = vpack.c.b16 %v1893, %v1891
      %v2330 = vpack.c.b16 %v1894, %v1892
      %v2331 = vpack.c.b16 %v1897, %v1895
      %v2332 = vpack.c.b16 %v1898, %v1896
      %v2333 = vpack.c.b16 %v1901, %v1899
      %v2334 = vpack.c.b16 %v1902, %v1900
      %v2335 = vpack.c.b16 %v1905, %v1903
      %v2336 = vpack.c.b16 %v1906, %v1904
      %v2337 = vpack.c.b16 %v1909, %v1907
      %v2338 = vpack.c.b16 %v1910, %v1908
      %v2339 = vpack.c.b16 %v1913, %v1911
      %v2340 = vpack.c.b16 %v1914, %v1912
      %v2341 = vpack.c.b16 %v1917, %v1915
      %v2342 = vpack.c.b16 %v1918, %v1916
      %v2343 = vpack.c.b16 %v1921, %v1919
      %v2344 = vpack.c.b16 %v1922, %v1920
      %v2345 = vpack.c.b16 %v1925, %v1923
      %v2346 = vpack.c.b16 %v1926, %v1924
      %v2347 = vpack.c.b16 %v1929, %v1927
      %v2348 = vpack.c.b16 %v1930, %v1928
      %v2349 = vpack.c.b16 %v1933, %v1931
      %v2350 = vpack.c.b16 %v1934, %v1932
      %v2351 = vpack.c.b16 %v1937, %v1935
      %v2352 = vpack.c.b16 %v1938, %v1936
      %v2353 = vpack.c.b16 %v1941, %v1939
      %v2354 = vpack.c.b16 %v1942, %v1940
      %v2355 = vpack.c.b16 %v1945, %v1943
      %v2356 = vpack.c.b16 %v1946, %v1944
      %v2357 = vpack.c.b16 %v1949, %v1947
      %v2358 = vpack.c.b16 %v1950, %v1948
      %v2359 = vpack.c.b16 %v1953, %v1951
      %v2360 = vpack.c.b16 %v1954, %v1952
      %v2361 = vpack.c.b16 %v1957, %v1955
      %v2362 = vpack.c.b16 %v1958, %v1956
      %v2363 = vpack.c.b16 %v1961, %v1959
      %v2364 = vpack.c.b16 %v1962, %v1960
      %v2365 = vpack.c.b16 %v1965, %v1963
      %v2366 = vpack.c.b16 %v1966, %v1964
      %v2367 = vpack.c.b16 %v1969, %v1967
      %v2368 = vpack.c.b16 %v1970, %v1968
      %v2369 = vpack.c.b16 %v1973, %v1971
      %v2370 = vpack.c.b16 %v1974, %v1972
      %v2371 = vpack.c.b16 %v1977, %v1975
      %v2372 = vpack.c.b16 %v1978, %v1976
      %v2373 = vpack.c.b16 %v1981, %v1979
      %v2374 = vpack.c.b16 %v1982, %v1980
      %v2375 = vpack.c.b16 %v1985, %v1983
      %v2376 = vpack.c.b16 %v1986, %v1984
      %v2377 = vpack.c.b16 %v1989, %v1987
      %v2378 = vpack.c.b16 %v1990, %v1988
      %v2379 = vpack.c.b16 %v1993, %v1991
      %v2380 = vpack.c.b16 %v1994, %v1992
      %v2381 = vpack.c.b16 %v1997, %v1995
      %v2382 = vpack.c.b16 %v1998, %v1996
      %2767 = vmatprep.subr.bf16.mxu0 %v2000
      %2768 = vmatpush1.bf16.msra.mxu0 %v1999
      %2769 = vmatprep.subr.bf16.mxu0 %v2002
      %2770 = vmatpush1.bf16.msra.mxu0 %v2001
      %2771 = vmatprep.subr.bf16.mxu0 %v2004
      %2772 = vmatpush1.bf16.msra.mxu0 %v2003
      %2773 = vmatprep.subr.bf16.mxu0 %v2006
      %2774 = vmatpush1.bf16.msra.mxu0 %v2005
      %2775 = vmatprep.subr.bf16.mxu0 %v2008
      %2776 = vmatpush1.bf16.msra.mxu0 %v2007
      %2777 = vmatprep.subr.bf16.mxu0 %v2010
      %2778 = vmatpush1.bf16.msra.mxu0 %v2009
      %2779 = vmatprep.subr.bf16.mxu0 %v2012
      %2780 = vmatpush1.bf16.msra.mxu0 %v2011
      %2781 = vmatprep.subr.bf16.mxu0 %v2014
      %2782 = vmatpush1.bf16.msra.mxu0 %v2013
      %2783 = vmatprep.subr.bf16.mxu0 %v2016
      %2784 = vmatpush1.bf16.msra.mxu0 %v2015
      %2785 = vmatprep.subr.bf16.mxu0 %v2018
      %2786 = vmatpush1.bf16.msra.mxu0 %v2017
      %2787 = vmatprep.subr.bf16.mxu0 %v2020
      %2788 = vmatpush1.bf16.msra.mxu0 %v2019
      %2789 = vmatprep.subr.bf16.mxu0 %v2022
      %2790 = vmatpush1.bf16.msra.mxu0 %v2021
      %2791 = vmatprep.subr.bf16.mxu0 %v2024
      %2792 = vmatpush1.bf16.msra.mxu0 %v2023
      %2793 = vmatprep.subr.bf16.mxu0 %v2026
      %2794 = vmatpush1.bf16.msra.mxu0 %v2025
      %2795 = vmatprep.subr.bf16.mxu0 %v2028
      %2796 = vmatpush1.bf16.msra.mxu0 %v2027
      %2797 = vmatprep.subr.bf16.mxu0 %v2030
      %2798 = vmatpush1.bf16.msra.mxu0 %v2029
      %2799 = vmatprep.mubr.bf16.mxu0 %v800
      %2800 = vmatmul.mubr.bf16.gmra.mrb[0].mxu0 %v799
      %v2801 = vpop.f32.mrb[0].mxu0
      %v2802 = vadd.f32 %v720, %v2801
      %v2803 = vpop.f32.mrb[0].mxu0
      %v2804 = vadd.f32 %v724, %v2803
      %v2805 = vpop.f32.mrb[0].mxu0
      %v2806 = vadd.f32 %v720, %v2805
      %v2807 = vpop.f32.mrb[0].mxu0
      %v2808 = vadd.f32 %v724, %v2807
      %2809 = vdwg.mxu0
      %2810 = vmatprep.subr.bf16.mxu0 %v2032
      %2811 = vmatpush1.bf16.msra.mxu0 %v2031
      %2812 = vmatprep.subr.bf16.mxu0 %v2034
      %2813 = vmatpush1.bf16.msra.mxu0 %v2033
      %2814 = vmatprep.subr.bf16.mxu0 %v2036
      %2815 = vmatpush1.bf16.msra.mxu0 %v2035
      %2816 = vmatprep.subr.bf16.mxu0 %v2038
      %2817 = vmatpush1.bf16.msra.mxu0 %v2037
      %2818 = vmatprep.subr.bf16.mxu0 %v2040
      %2819 = vmatpush1.bf16.msra.mxu0 %v2039
      %2820 = vmatprep.subr.bf16.mxu0 %v2042
      %2821 = vmatpush1.bf16.msra.mxu0 %v2041
      %2822 = vmatprep.subr.bf16.mxu0 %v2044
      %2823 = vmatpush1.bf16.msra.mxu0 %v2043
      %2824 = vmatprep.subr.bf16.mxu0 %v2046
      %2825 = vmatpush1.bf16.msra.mxu0 %v2045
      %2826 = vmatprep.subr.bf16.mxu0 %v2048
      %2827 = vmatpush1.bf16.msra.mxu0 %v2047
      %2828 = vmatprep.subr.bf16.mxu0 %v2050
      %2829 = vmatpush1.bf16.msra.mxu0 %v2049
      %2830 = vmatprep.subr.bf16.mxu0 %v2052
      %2831 = vmatpush1.bf16.msra.mxu0 %v2051
      %2832 = vmatprep.subr.bf16.mxu0 %v2054
      %2833 = vmatpush1.bf16.msra.mxu0 %v2053
      %2834 = vmatprep.subr.bf16.mxu0 %v2056
      %2835 = vmatpush1.bf16.msra.mxu0 %v2055
      %2836 = vmatprep.subr.bf16.mxu0 %v2058
      %2837 = vmatpush1.bf16.msra.mxu0 %v2057
      %2838 = vmatprep.subr.bf16.mxu0 %v2060
      %2839 = vmatpush1.bf16.msra.mxu0 %v2059
      %2840 = vmatprep.subr.bf16.mxu0 %v2062
      %2841 = vmatpush1.bf16.msra.mxu0 %v2061
      %2842 = vmatprep.mubr.bf16.mxu0 %v802
      %2843 = vmatmul.mubr.bf16.gmra.mrb[0].mxu0 %v801
      %v2844 = vpop.f32.mrb[0].mxu0
      %v2845 = vadd.f32 %v2802, %v2844
      %v2846 = vpop.f32.mrb[0].mxu0
      %v2847 = vadd.f32 %v2804, %v2846
      %v2848 = vpop.f32.mrb[0].mxu0
      %v2849 = vadd.f32 %v2806, %v2848
      %v2850 = vpop.f32.mrb[0].mxu0
      %v2851 = vadd.f32 %v2808, %v2850
      %2852 = vdwg.mxu0
      %2853 = vmatprep.subr.bf16.mxu0 %v2064
      %2854 = vmatpush1.bf16.msra.mxu0 %v2063
      %2855 = vmatprep.subr.bf16.mxu0 %v2066
      %2856 = vmatpush1.bf16.msra.mxu0 %v2065
      %2857 = vmatprep.subr.bf16.mxu0 %v2068
      %2858 = vmatpush1.bf16.msra.mxu0 %v2067
      %2859 = vmatprep.subr.bf16.mxu0 %v2070
      %2860 = vmatpush1.bf16.msra.mxu0 %v2069
      %2861 = vmatprep.subr.bf16.mxu0 %v2072
      %2862 = vmatpush1.bf16.msra.mxu0 %v2071
      %2863 = vmatprep.subr.bf16.mxu0 %v2074
      %2864 = vmatpush1.bf16.msra.mxu0 %v2073
      %2865 = vmatprep.subr.bf16.mxu0 %v2076
      %2866 = vmatpush1.bf16.msra.mxu0 %v2075
      %2867 = vmatprep.subr.bf16.mxu0 %v2078
      %2868 = vmatpush1.bf16.msra.mxu0 %v2077
      %2869 = vmatprep.subr.bf16.mxu0 %v2080
      %2870 = vmatpush1.bf16.msra.mxu0 %v2079
      %2871 = vmatprep.subr.bf16.mxu0 %v2082
      %2872 = vmatpush1.bf16.msra.mxu0 %v2081
      %2873 = vmatprep.subr.bf16.mxu0 %v2084
      %2874 = vmatpush1.bf16.msra.mxu0 %v2083
      %2875 = vmatprep.subr.bf16.mxu0 %v2086
      %2876 = vmatpush1.bf16.msra.mxu0 %v2085
      %2877 = vmatprep.subr.bf16.mxu0 %v2088
      %2878 = vmatpush1.bf16.msra.mxu0 %v2087
      %2879 = vmatprep.subr.bf16.mxu0 %v2090
      %2880 = vmatpush1.bf16.msra.mxu0 %v2089
      %2881 = vmatprep.subr.bf16.mxu0 %v2092
      %2882 = vmatpush1.bf16.msra.mxu0 %v2091
      %2883 = vmatprep.subr.bf16.mxu0 %v2094
      %2884 = vmatpush1.bf16.msra.mxu0 %v2093
      %2885 = vmatprep.mubr.bf16.mxu0 %v804
      %2886 = vmatmul.mubr.bf16.gmra.mrb[0].mxu0 %v803
      %v2887 = vpop.f32.mrb[0].mxu0
      %v2888 = vadd.f32 %v2845, %v2887
      %v2889 = vpop.f32.mrb[0].mxu0
      %v2890 = vadd.f32 %v2847, %v2889
      %v2891 = vpop.f32.mrb[0].mxu0
      %v2892 = vadd.f32 %v2849, %v2891
      %v2893 = vpop.f32.mrb[0].mxu0
      %v2894 = vadd.f32 %v2851, %v2893
      %2895 = vdwg.mxu0
      %2896 = vmatprep.subr.bf16.mxu0 %v2096
      %2897 = vmatpush1.bf16.msra.mxu0 %v2095
      %2898 = vmatprep.subr.bf16.mxu0 %v2098
      %2899 = vmatpush1.bf16.msra.mxu0 %v2097
      %2900 = vmatprep.subr.bf16.mxu0 %v2100
      %2901 = vmatpush1.bf16.msra.mxu0 %v2099
      %2902 = vmatprep.subr.bf16.mxu0 %v2102
      %2903 = vmatpush1.bf16.msra.mxu0 %v2101
      %2904 = vmatprep.subr.bf16.mxu0 %v2104
      %2905 = vmatpush1.bf16.msra.mxu0 %v2103
      %2906 = vmatprep.subr.bf16.mxu0 %v2106
      %2907 = vmatpush1.bf16.msra.mxu0 %v2105
      %2908 = vmatprep.subr.bf16.mxu0 %v2108
      %2909 = vmatpush1.bf16.msra.mxu0 %v2107
      %2910 = vmatprep.subr.bf16.mxu0 %v2110
      %2911 = vmatpush1.bf16.msra.mxu0 %v2109
      %2912 = vmatprep.subr.bf16.mxu0 %v2112
      %2913 = vmatpush1.bf16.msra.mxu0 %v2111
      %2914 = vmatprep.subr.bf16.mxu0 %v2114
      %2915 = vmatpush1.bf16.msra.mxu0 %v2113
      %2916 = vmatprep.subr.bf16.mxu0 %v2116
      %2917 = vmatpush1.bf16.msra.mxu0 %v2115
      %2918 = vmatprep.subr.bf16.mxu0 %v2118
      %2919 = vmatpush1.bf16.msra.mxu0 %v2117
      %2920 = vmatprep.subr.bf16.mxu0 %v2120
      %2921 = vmatpush1.bf16.msra.mxu0 %v2119
      %2922 = vmatprep.subr.bf16.mxu0 %v2122
      %2923 = vmatpush1.bf16.msra.mxu0 %v2121
      %2924 = vmatprep.subr.bf16.mxu0 %v2124
      %2925 = vmatpush1.bf16.msra.mxu0 %v2123
      %2926 = vmatprep.subr.bf16.mxu0 %v2126
      %2927 = vmatpush1.bf16.msra.mxu0 %v2125
      %2928 = vmatprep.mubr.bf16.mxu0 %v806
      %2929 = vmatmul.mubr.bf16.gmra.mrb[0].mxu0 %v805
      %v2930 = vpop.f32.mrb[0].mxu0
      %v2931 = vadd.f32 %v2888, %v2930
      %v2932 = vpop.f32.mrb[0].mxu0
      %v2933 = vadd.f32 %v2890, %v2932
      %v2934 = vpop.f32.mrb[0].mxu0
      %v2935 = vadd.f32 %v2892, %v2934
      %v2936 = vpop.f32.mrb[0].mxu0
      %v2937 = vadd.f32 %v2894, %v2936
      %2938 = vdwg.mxu0
      %2939 = vmatprep.subr.bf16.mxu0 %v2128
      %2940 = vmatpush1.bf16.msra.mxu0 %v2127
      %2941 = vmatprep.subr.bf16.mxu0 %v2130
      %2942 = vmatpush1.bf16.msra.mxu0 %v2129
      %2943 = vmatprep.subr.bf16.mxu0 %v2132
      %2944 = vmatpush1.bf16.msra.mxu0 %v2131
      %2945 = vmatprep.subr.bf16.mxu0 %v2134
      %2946 = vmatpush1.bf16.msra.mxu0 %v2133
      %2947 = vmatprep.subr.bf16.mxu0 %v2136
      %2948 = vmatpush1.bf16.msra.mxu0 %v2135
      %2949 = vmatprep.subr.bf16.mxu0 %v2138
      %2950 = vmatpush1.bf16.msra.mxu0 %v2137
      %2951 = vmatprep.subr.bf16.mxu0 %v2140
      %2952 = vmatpush1.bf16.msra.mxu0 %v2139
      %2953 = vmatprep.subr.bf16.mxu0 %v2142
      %2954 = vmatpush1.bf16.msra.mxu0 %v2141
      %2955 = vmatprep.subr.bf16.mxu0 %v2144
      %2956 = vmatpush1.bf16.msra.mxu0 %v2143
      %2957 = vmatprep.subr.bf16.mxu0 %v2146
      %2958 = vmatpush1.bf16.msra.mxu0 %v2145
      %2959 = vmatprep.subr.bf16.mxu0 %v2148
      %2960 = vmatpush1.bf16.msra.mxu0 %v2147
      %2961 = vmatprep.subr.bf16.mxu0 %v2150
      %2962 = vmatpush1.bf16.msra.mxu0 %v2149
      %2963 = vmatprep.subr.bf16.mxu0 %v2152
      %2964 = vmatpush1.bf16.msra.mxu0 %v2151
      %2965 = vmatprep.subr.bf16.mxu0 %v2154
      %2966 = vmatpush1.bf16.msra.mxu0 %v2153
      %2967 = vmatprep.subr.bf16.mxu0 %v2156
      %2968 = vmatpush1.bf16.msra.mxu0 %v2155
      %2969 = vmatprep.subr.bf16.mxu0 %v2158
      %2970 = vmatpush1.bf16.msra.mxu0 %v2157
      %2971 = vmatprep.mubr.bf16.mxu0 %v808
      %2972 = vmatmul.mubr.bf16.gmra.mrb[0].mxu0 %v807
      %v2973 = vpop.f32.mrb[0].mxu0
      %v2974 = vadd.f32 %v2931, %v2973
      %v2975 = vpop.f32.mrb[0].mxu0
      %v2976 = vadd.f32 %v2933, %v2975
      %v2977 = vpop.f32.mrb[0].mxu0
      %v2978 = vadd.f32 %v2935, %v2977
      %v2979 = vpop.f32.mrb[0].mxu0
      %v2980 = vadd.f32 %v2937, %v2979
      %2981 = vdwg.mxu0
      %2982 = vmatprep.subr.bf16.mxu0 %v2160
      %2983 = vmatpush1.bf16.msra.mxu0 %v2159
      %2984 = vmatprep.subr.bf16.mxu0 %v2162
      %2985 = vmatpush1.bf16.msra.mxu0 %v2161
      %2986 = vmatprep.subr.bf16.mxu0 %v2164
      %2987 = vmatpush1.bf16.msra.mxu0 %v2163
      %2988 = vmatprep.subr.bf16.mxu0 %v2166
      %2989 = vmatpush1.bf16.msra.mxu0 %v2165
      %2990 = vmatprep.subr.bf16.mxu0 %v2168
      %2991 = vmatpush1.bf16.msra.mxu0 %v2167
      %2992 = vmatprep.subr.bf16.mxu0 %v2170
      %2993 = vmatpush1.bf16.msra.mxu0 %v2169
      %2994 = vmatprep.subr.bf16.mxu0 %v2172
      %2995 = vmatpush1.bf16.msra.mxu0 %v2171
      %2996 = vmatprep.subr.bf16.mxu0 %v2174
      %2997 = vmatpush1.bf16.msra.mxu0 %v2173
      %2998 = vmatprep.subr.bf16.mxu0 %v2176
      %2999 = vmatpush1.bf16.msra.mxu0 %v2175
      %3000 = vmatprep.subr.bf16.mxu0 %v2178
      %3001 = vmatpush1.bf16.msra.mxu0 %v2177
      %3002 = vmatprep.subr.bf16.mxu0 %v2180
      %3003 = vmatpush1.bf16.msra.mxu0 %v2179
      %3004 = vmatprep.subr.bf16.mxu0 %v2182
      %3005 = vmatpush1.bf16.msra.mxu0 %v2181
      %3006 = vmatprep.subr.bf16.mxu0 %v2184
      %3007 = vmatpush1.bf16.msra.mxu0 %v2183
      %3008 = vmatprep.subr.bf16.mxu0 %v2186
      %3009 = vmatpush1.bf16.msra.mxu0 %v2185
      %3010 = vmatprep.subr.bf16.mxu0 %v2188
      %3011 = vmatpush1.bf16.msra.mxu0 %v2187
      %3012 = vmatprep.subr.bf16.mxu0 %v2190
      %3013 = vmatpush1.bf16.msra.mxu0 %v2189
      %3014 = vmatprep.mubr.bf16.mxu0 %v810
      %3015 = vmatmul.mubr.bf16.gmra.mrb[0].mxu0 %v809
      %v3016 = vpop.f32.mrb[0].mxu0
      %v3017 = vadd.f32 %v2974, %v3016
      %v3018 = vpop.f32.mrb[0].mxu0
      %v3019 = vadd.f32 %v2976, %v3018
      %v3020 = vpop.f32.mrb[0].mxu0
      %v3021 = vadd.f32 %v2978, %v3020
      %v3022 = vpop.f32.mrb[0].mxu0
      %v3023 = vadd.f32 %v2980, %v3022
      %3024 = vdwg.mxu0
      %3025 = vmatprep.subr.bf16.mxu0 %v2192
      %3026 = vmatpush1.bf16.msra.mxu0 %v2191
      %3027 = vmatprep.subr.bf16.mxu0 %v2194
      %3028 = vmatpush1.bf16.msra.mxu0 %v2193
      %3029 = vmatprep.subr.bf16.mxu0 %v2196
      %3030 = vmatpush1.bf16.msra.mxu0 %v2195
      %3031 = vmatprep.subr.bf16.mxu0 %v2198
      %3032 = vmatpush1.bf16.msra.mxu0 %v2197
      %3033 = vmatprep.subr.bf16.mxu0 %v2200
      %3034 = vmatpush1.bf16.msra.mxu0 %v2199
      %3035 = vmatprep.subr.bf16.mxu0 %v2202
      %3036 = vmatpush1.bf16.msra.mxu0 %v2201
      %3037 = vmatprep.subr.bf16.mxu0 %v2204
      %3038 = vmatpush1.bf16.msra.mxu0 %v2203
      %3039 = vmatprep.subr.bf16.mxu0 %v2206
      %3040 = vmatpush1.bf16.msra.mxu0 %v2205
      %3041 = vmatprep.subr.bf16.mxu0 %v2208
      %3042 = vmatpush1.bf16.msra.mxu0 %v2207
      %3043 = vmatprep.subr.bf16.mxu0 %v2210
      %3044 = vmatpush1.bf16.msra.mxu0 %v2209
      %3045 = vmatprep.subr.bf16.mxu0 %v2212
      %3046 = vmatpush1.bf16.msra.mxu0 %v2211
      %3047 = vmatprep.subr.bf16.mxu0 %v2214
      %3048 = vmatpush1.bf16.msra.mxu0 %v2213
      %3049 = vmatprep.subr.bf16.mxu0 %v2216
      %3050 = vmatpush1.bf16.msra.mxu0 %v2215
      %3051 = vmatprep.subr.bf16.mxu0 %v2218
      %3052 = vmatpush1.bf16.msra.mxu0 %v2217
      %3053 = vmatprep.subr.bf16.mxu0 %v2220
      %3054 = vmatpush1.bf16.msra.mxu0 %v2219
      %3055 = vmatprep.subr.bf16.mxu0 %v2222
      %3056 = vmatpush1.bf16.msra.mxu0 %v2221
      %3057 = vmatprep.mubr.bf16.mxu0 %v812
      %3058 = vmatmul.mubr.bf16.gmra.mrb[0].mxu0 %v811
      %v3059 = vpop.f32.mrb[0].mxu0
      %v3060 = vadd.f32 %v3017, %v3059
      %v3061 = vpop.f32.mrb[0].mxu0
      %v3062 = vadd.f32 %v3019, %v3061
      %v3063 = vpop.f32.mrb[0].mxu0
      %v3064 = vadd.f32 %v3021, %v3063
      %v3065 = vpop.f32.mrb[0].mxu0
      %v3066 = vadd.f32 %v3023, %v3065
      %3067 = vdwg.mxu0
      %3068 = vmatprep.subr.bf16.mxu0 %v2224
      %3069 = vmatpush1.bf16.msra.mxu0 %v2223
      %3070 = vmatprep.subr.bf16.mxu0 %v2226
      %3071 = vmatpush1.bf16.msra.mxu0 %v2225
      %3072 = vmatprep.subr.bf16.mxu0 %v2228
      %3073 = vmatpush1.bf16.msra.mxu0 %v2227
      %3074 = vmatprep.subr.bf16.mxu0 %v2230
      %3075 = vmatpush1.bf16.msra.mxu0 %v2229
      %3076 = vmatprep.subr.bf16.mxu0 %v2232
      %3077 = vmatpush1.bf16.msra.mxu0 %v2231
      %3078 = vmatprep.subr.bf16.mxu0 %v2234
      %3079 = vmatpush1.bf16.msra.mxu0 %v2233
      %3080 = vmatprep.subr.bf16.mxu0 %v2236
      %3081 = vmatpush1.bf16.msra.mxu0 %v2235
      %3082 = vmatprep.subr.bf16.mxu0 %v2238
      %3083 = vmatpush1.bf16.msra.mxu0 %v2237
      %3084 = vmatprep.subr.bf16.mxu0 %v2240
      %3085 = vmatpush1.bf16.msra.mxu0 %v2239
      %3086 = vmatprep.subr.bf16.mxu0 %v2242
      %3087 = vmatpush1.bf16.msra.mxu0 %v2241
      %3088 = vmatprep.subr.bf16.mxu0 %v2244
      %3089 = vmatpush1.bf16.msra.mxu0 %v2243
      %3090 = vmatprep.subr.bf16.mxu0 %v2246
      %3091 = vmatpush1.bf16.msra.mxu0 %v2245
      %3092 = vmatprep.subr.bf16.mxu0 %v2248
      %3093 = vmatpush1.bf16.msra.mxu0 %v2247
      %3094 = vmatprep.subr.bf16.mxu0 %v2250
      %3095 = vmatpush1.bf16.msra.mxu0 %v2249
      %3096 = vmatprep.subr.bf16.mxu0 %v2252
      %3097 = vmatpush1.bf16.msra.mxu0 %v2251
      %3098 = vmatprep.subr.bf16.mxu0 %v2254
      %3099 = vmatpush1.bf16.msra.mxu0 %v2253
      %3100 = vmatprep.mubr.bf16.mxu0 %v814
      %3101 = vmatmul.mubr.bf16.gmra.mrb[0].mxu0 %v813
      %v3102 = vpop.f32.mrb[0].mxu0
      %v3103 = vadd.f32 %v3060, %v3102
      %v3104 = vpop.f32.mrb[0].mxu0
      %v3105 = vadd.f32 %v3062, %v3104
      %v3106 = vpop.f32.mrb[0].mxu0
      %v3107 = vadd.f32 %v3064, %v3106
      %v3108 = vpop.f32.mrb[0].mxu0
      %v3109 = vadd.f32 %v3066, %v3108
      %3110 = vdwg.mxu0
      %3111 = vmatprep.subr.bf16.mxu0 %v2256
      %3112 = vmatpush1.bf16.msra.mxu0 %v2255
      %3113 = vmatprep.subr.bf16.mxu0 %v2258
      %3114 = vmatpush1.bf16.msra.mxu0 %v2257
      %3115 = vmatprep.subr.bf16.mxu0 %v2260
      %3116 = vmatpush1.bf16.msra.mxu0 %v2259
      %3117 = vmatprep.subr.bf16.mxu0 %v2262
      %3118 = vmatpush1.bf16.msra.mxu0 %v2261
      %3119 = vmatprep.subr.bf16.mxu0 %v2264
      %3120 = vmatpush1.bf16.msra.mxu0 %v2263
      %3121 = vmatprep.subr.bf16.mxu0 %v2266
      %3122 = vmatpush1.bf16.msra.mxu0 %v2265
      %3123 = vmatprep.subr.bf16.mxu0 %v2268
      %3124 = vmatpush1.bf16.msra.mxu0 %v2267
      %3125 = vmatprep.subr.bf16.mxu0 %v2270
      %3126 = vmatpush1.bf16.msra.mxu0 %v2269
      %3127 = vmatprep.subr.bf16.mxu0 %v2272
      %3128 = vmatpush1.bf16.msra.mxu0 %v2271
      %3129 = vmatprep.subr.bf16.mxu0 %v2274
      %3130 = vmatpush1.bf16.msra.mxu0 %v2273
      %3131 = vmatprep.subr.bf16.mxu0 %v2276
      %3132 = vmatpush1.bf16.msra.mxu0 %v2275
      %3133 = vmatprep.subr.bf16.mxu0 %v2278
      %3134 = vmatpush1.bf16.msra.mxu0 %v2277
      %3135 = vmatprep.subr.bf16.mxu0 %v2280
      %3136 = vmatpush1.bf16.msra.mxu0 %v2279
      %3137 = vmatprep.subr.bf16.mxu0 %v2282
      %3138 = vmatpush1.bf16.msra.mxu0 %v2281
      %3139 = vmatprep.subr.bf16.mxu0 %v2284
      %3140 = vmatpush1.bf16.msra.mxu0 %v2283
      %3141 = vmatprep.subr.bf16.mxu0 %v2286
      %3142 = vmatpush1.bf16.msra.mxu0 %v2285
      %3143 = vmatprep.mubr.bf16.mxu0 %v816
      %3144 = vmatmul.mubr.bf16.gmra.mrb[0].mxu0 %v815
      %v3145 = vpop.f32.mrb[0].mxu0
      %v3146 = vadd.f32 %v3103, %v3145
      %v3147 = vpop.f32.mrb[0].mxu0
      %v3148 = vadd.f32 %v3105, %v3147
      %v3149 = vpop.f32.mrb[0].mxu0
      %v3150 = vadd.f32 %v3107, %v3149
      %v3151 = vpop.f32.mrb[0].mxu0
      %v3152 = vadd.f32 %v3109, %v3151
      %3153 = vdwg.mxu0
      %3154 = vmatprep.subr.bf16.mxu0 %v2288
      %3155 = vmatpush1.bf16.msra.mxu0 %v2287
      %3156 = vmatprep.subr.bf16.mxu0 %v2290
      %3157 = vmatpush1.bf16.msra.mxu0 %v2289
      %3158 = vmatprep.subr.bf16.mxu0 %v2292
      %3159 = vmatpush1.bf16.msra.mxu0 %v2291
      %3160 = vmatprep.subr.bf16.mxu0 %v2294
      %3161 = vmatpush1.bf16.msra.mxu0 %v2293
      %3162 = vmatprep.subr.bf16.mxu0 %v2296
      %3163 = vmatpush1.bf16.msra.mxu0 %v2295
      %3164 = vmatprep.subr.bf16.mxu0 %v2298
      %3165 = vmatpush1.bf16.msra.mxu0 %v2297
      %3166 = vmatprep.subr.bf16.mxu0 %v2300
      %3167 = vmatpush1.bf16.msra.mxu0 %v2299
      %3168 = vmatprep.subr.bf16.mxu0 %v2302
      %3169 = vmatpush1.bf16.msra.mxu0 %v2301
      %3170 = vmatprep.subr.bf16.mxu0 %v2304
      %3171 = vmatpush1.bf16.msra.mxu0 %v2303
      %3172 = vmatprep.subr.bf16.mxu0 %v2306
      %3173 = vmatpush1.bf16.msra.mxu0 %v2305
      %3174 = vmatprep.subr.bf16.mxu0 %v2308
      %3175 = vmatpush1.bf16.msra.mxu0 %v2307
      %3176 = vmatprep.subr.bf16.mxu0 %v2310
      %3177 = vmatpush1.bf16.msra.mxu0 %v2309
      %3178 = vmatprep.subr.bf16.mxu0 %v2312
      %3179 = vmatpush1.bf16.msra.mxu0 %v2311
      %3180 = vmatprep.subr.bf16.mxu0 %v2314
      %3181 = vmatpush1.bf16.msra.mxu0 %v2313
      %3182 = vmatprep.subr.bf16.mxu0 %v2316
      %3183 = vmatpush1.bf16.msra.mxu0 %v2315
      %3184 = vmatprep.subr.bf16.mxu0 %v2318
      %3185 = vmatpush1.bf16.msra.mxu0 %v2317
      %3186 = vmatprep.mubr.bf16.mxu0 %v818
      %3187 = vmatmul.mubr.bf16.gmra.mrb[0].mxu0 %v817
      %v3188 = vpop.f32.mrb[0].mxu0
      %v3189 = vadd.f32 %v3146, %v3188
      %v3190 = vpop.f32.mrb[0].mxu0
      %v3191 = vadd.f32 %v3148, %v3190
      %v3192 = vpop.f32.mrb[0].mxu0
      %v3193 = vadd.f32 %v3150, %v3192
      %v3194 = vpop.f32.mrb[0].mxu0
      %v3195 = vadd.f32 %v3152, %v3194
      %3196 = vdwg.mxu0
      %3197 = vmatprep.subr.bf16.mxu0 %v2320
      %3198 = vmatpush1.bf16.msra.mxu0 %v2319
      %3199 = vmatprep.subr.bf16.mxu0 %v2322
      %3200 = vmatpush1.bf16.msra.mxu0 %v2321
      %3201 = vmatprep.subr.bf16.mxu0 %v2324
      %3202 = vmatpush1.bf16.msra.mxu0 %v2323
      %3203 = vmatprep.subr.bf16.mxu0 %v2326
      %3204 = vmatpush1.bf16.msra.mxu0 %v2325
      %3205 = vmatprep.subr.bf16.mxu0 %v2328
      %3206 = vmatpush1.bf16.msra.mxu0 %v2327
      %3207 = vmatprep.subr.bf16.mxu0 %v2330
      %3208 = vmatpush1.bf16.msra.mxu0 %v2329
      %3209 = vmatprep.subr.bf16.mxu0 %v2332
      %3210 = vmatpush1.bf16.msra.mxu0 %v2331
      %3211 = vmatprep.subr.bf16.mxu0 %v2334
      %3212 = vmatpush1.bf16.msra.mxu0 %v2333
      %3213 = vmatprep.subr.bf16.mxu0 %v2336
      %3214 = vmatpush1.bf16.msra.mxu0 %v2335
      %3215 = vmatprep.subr.bf16.mxu0 %v2338
      %3216 = vmatpush1.bf16.msra.mxu0 %v2337
      %3217 = vmatprep.subr.bf16.mxu0 %v2340
      %3218 = vmatpush1.bf16.msra.mxu0 %v2339
      %3219 = vmatprep.subr.bf16.mxu0 %v2342
      %3220 = vmatpush1.bf16.msra.mxu0 %v2341
      %3221 = vmatprep.subr.bf16.mxu0 %v2344
      %3222 = vmatpush1.bf16.msra.mxu0 %v2343
      %3223 = vmatprep.subr.bf16.mxu0 %v2346
      %3224 = vmatpush1.bf16.msra.mxu0 %v2345
      %3225 = vmatprep.subr.bf16.mxu0 %v2348
      %3226 = vmatpush1.bf16.msra.mxu0 %v2347
      %3227 = vmatprep.subr.bf16.mxu0 %v2350
      %3228 = vmatpush1.bf16.msra.mxu0 %v2349
      %3229 = vmatprep.mubr.bf16.mxu0 %v820
      %3230 = vmatmul.mubr.bf16.gmra.mrb[0].mxu0 %v819
      %v3231 = vpop.f32.mrb[0].mxu0
      %v3232 = vadd.f32 %v3189, %v3231
      %v3233 = vpop.f32.mrb[0].mxu0
      %v3234 = vadd.f32 %v3191, %v3233
      %v3235 = vpop.f32.mrb[0].mxu0
      %v3236 = vadd.f32 %v3193, %v3235
      %v3237 = vpop.f32.mrb[0].mxu0
      %v3238 = vadd.f32 %v3195, %v3237
      %3239 = vdwg.mxu0
      %3240 = vmatprep.subr.bf16.mxu0 %v2352
      %3241 = vmatpush1.bf16.msra.mxu0 %v2351
      %3242 = vmatprep.subr.bf16.mxu0 %v2354
      %3243 = vmatpush1.bf16.msra.mxu0 %v2353
      %3244 = vmatprep.subr.bf16.mxu0 %v2356
      %3245 = vmatpush1.bf16.msra.mxu0 %v2355
      %3246 = vmatprep.subr.bf16.mxu0 %v2358
      %3247 = vmatpush1.bf16.msra.mxu0 %v2357
      %3248 = vmatprep.subr.bf16.mxu0 %v2360
      %3249 = vmatpush1.bf16.msra.mxu0 %v2359
      %3250 = vmatprep.subr.bf16.mxu0 %v2362
      %3251 = vmatpush1.bf16.msra.mxu0 %v2361
      %3252 = vmatprep.subr.bf16.mxu0 %v2364
      %3253 = vmatpush1.bf16.msra.mxu0 %v2363
      %3254 = vmatprep.subr.bf16.mxu0 %v2366
      %3255 = vmatpush1.bf16.msra.mxu0 %v2365
      %3256 = vmatprep.subr.bf16.mxu0 %v2368
      %3257 = vmatpush1.bf16.msra.mxu0 %v2367
      %3258 = vmatprep.subr.bf16.mxu0 %v2370
      %3259 = vmatpush1.bf16.msra.mxu0 %v2369
      %3260 = vmatprep.subr.bf16.mxu0 %v2372
      %3261 = vmatpush1.bf16.msra.mxu0 %v2371
      %3262 = vmatprep.subr.bf16.mxu0 %v2374
      %3263 = vmatpush1.bf16.msra.mxu0 %v2373
      %3264 = vmatprep.subr.bf16.mxu0 %v2376
      %3265 = vmatpush1.bf16.msra.mxu0 %v2375
      %3266 = vmatprep.subr.bf16.mxu0 %v2378
      %3267 = vmatpush1.bf16.msra.mxu0 %v2377
      %3268 = vmatprep.subr.bf16.mxu0 %v2380
      %3269 = vmatpush1.bf16.msra.mxu0 %v2379
      %3270 = vmatprep.subr.bf16.mxu0 %v2382
      %3271 = vmatpush1.bf16.msra.mxu0 %v2381
      %3272 = vmatprep.mubr.bf16.mxu0 %v822
      %3273 = vmatmul.mubr.bf16.gmra.mrb[0].mxu0 %v821
      %v3274 = vpop.f32.mrb[0].mxu0
      %v3275 = vadd.f32 %v3232, %v3274
      %v3276 = vpop.f32.mrb[0].mxu0
      %v3277 = vadd.f32 %v3234, %v3276
      %v3278 = vpop.f32.mrb[0].mxu0
      %v3279 = vadd.f32 %v3236, %v3278
      %v3280 = vpop.f32.mrb[0].mxu0
      %v3281 = vadd.f32 %v3238, %v3280
      %3282 = vdwg.mxu0
      %v3283 = vmax.f32 %v3275, 0.0
      %v3284 = vmax.f32 %v3277, 0.0
      %v3285 = vmax.f32 %v3279, 0.0
      %v3286 = vmax.f32 %v3281, 0.0
      %3287 = vst [vmem:[#allocation2] sm:$0xff] 0.0
      %3288 = vst [vmem:[#allocation2 + $0x8] sm:$0xff] 0.0
      %3289 = vst [vmem:[#allocation2 + $0x10] sm:$0xff] 0.0
      %3290 = vst [vmem:[#allocation2 + $0x18] sm:$0xff] 0.0
      %3291 = vst [vmem:[#allocation2 + $0x20] sm:$0xff] 0.0
      %3292 = vst [vmem:[#allocation2 + $0x28] sm:$0xff] 0.0
      %3293 = vst [vmem:[#allocation2 + $0x30] sm:$0xff] 0.0
      %3294 = vst [vmem:[#allocation2 + $0x38] sm:$0xff] 0.0
      %3295 = vst [vmem:[#allocation2 + $0x40] sm:$0xff] 0.0
      %3296 = vst [vmem:[#allocation2 + $0x48] sm:$0xff] 0.0
      %3297 = vst [vmem:[#allocation2 + $0x50] sm:$0xff] 0.0
      %3298 = vst [vmem:[#allocation2 + $0x58] sm:$0xff] 0.0
      %3299 = vst [vmem:[#allocation2 + $0x60] sm:$0xff] 0.0
      %3300 = vst [vmem:[#allocation2 + $0x68] sm:$0xff] 0.0
      %3301 = vst [vmem:[#allocation2 + $0x70] sm:$0xff] 0.0
      %3302 = vst [vmem:[#allocation2 + $0x78] sm:$0xff] 0.0
      %3303 = vst [vmem:[#allocation2 + $0x80] sm:$0xff] 0.0
      %3304 = vst [vmem:[#allocation2 + $0x88] sm:$0xff] 0.0
      %3305 = vst [vmem:[#allocation2 + $0x90] sm:$0xff] 0.0
      %3306 = vst [vmem:[#allocation2 + $0x98] sm:$0xff] 0.0
      %3307 = vst [vmem:[#allocation2 + $0xa0] sm:$0xff] 0.0
      %3308 = vst [vmem:[#allocation2 + $0xa8] sm:$0xff] 0.0
      %3309 = vst [vmem:[#allocation2 + $0xb0] sm:$0xff] 0.0
      %3310 = vst [vmem:[#allocation2 + $0xb8] sm:$0xff] 0.0
      %3311 = vst [vmem:[#allocation2 + $0xc0] sm:$0xff] 0.0
      %3312 = vst [vmem:[#allocation2 + $0xc8] sm:$0xff] 0.0
      %3313 = vst [vmem:[#allocation2 + $0xd0] sm:$0xff] 0.0
      %3314 = vst [vmem:[#allocation2 + $0xd8] sm:$0xff] 0.0
      %3315 = vst [vmem:[#allocation2 + $0xe0] sm:$0xff] 0.0
      %3316 = vst [vmem:[#allocation2 + $0xe8] sm:$0xff] 0.0
      %3317 = vst [vmem:[#allocation2 + $0xf0] sm:$0xff] 0.0
      %3318 = vst [vmem:[#allocation2 + $0xf8] sm:$0xff] 0.0
      %3319 = vst [vmem:[#allocation2 + $0x100] sm:$0xff] 0.0
      %3320 = vst [vmem:[#allocation2 + $0x108] sm:$0xff] 0.0
      %3321 = vst [vmem:[#allocation2 + $0x110] sm:$0xff] 0.0
      %3322 = vst [vmem:[#allocation2 + $0x118] sm:$0xff] 0.0
      %v3325 = vrot.slane %v3283, 3
      %v3326 = vrot.slane %v3284, 3
      %3329 = vst [vmem:[#allocation2] sm:$0xe0] %v3325
      %3330 = vst [vmem:[#allocation2 + $0x8] sm:$0xe0] %v3326
      %3331 = vst [vmem:[#allocation2 + $0x90] sm:$0xe] %v3325
      %3332 = vst [vmem:[#allocation2 + $0x98] sm:$0xe] %v3326
      %v3335 = vrot.slane %v3285, 3
      %v3336 = vrot.slane %v3286, 3
      %3339 = vst [vmem:[#allocation2 + $0x90] sm:$0xe0] %v3335
      %3340 = vst [vmem:[#allocation2 + $0x98] sm:$0xe0] %v3336
      %v3341 = vrot.slane %v3283, 4
      %v3342 = vrot.slane %v3284, 4
      %3345 = vst [vmem:[#allocation2 + $0x10] sm:$0xf0] %v3341
      %3346 = vst [vmem:[#allocation2 + $0x18] sm:$0xf0] %v3342
      %3347 = vst [vmem:[#allocation2 + $0xa0] sm:$0xf] %v3341
      %3348 = vst [vmem:[#allocation2 + $0xa8] sm:$0xf] %v3342
      %v3349 = vrot.slane %v3285, 4
      %v3350 = vrot.slane %v3286, 4
      %3353 = vst [vmem:[#allocation2 + $0xa0] sm:$0xf0] %v3349
      %3354 = vst [vmem:[#allocation2 + $0xa8] sm:$0xf0] %v3350
      %v3355 = vrot.slane %v3283, 5
      %v3356 = vrot.slane %v3284, 5
      %3359 = vst [vmem:[#allocation2 + $0x20] sm:$0x70] %v3355
      %3360 = vst [vmem:[#allocation2 + $0x28] sm:$0x70] %v3356
      %3361 = vst [vmem:[#allocation2 + $0xb0] sm:$0x7] %v3355
      %3362 = vst [vmem:[#allocation2 + $0xb8] sm:$0x7] %v3356
      %v3363 = vrot.slane %v3285, 5
      %v3364 = vrot.slane %v3286, 5
      %3367 = vst [vmem:[#allocation2 + $0xb0] sm:$0x70] %v3363
      %3368 = vst [vmem:[#allocation2 + $0xb8] sm:$0x70] %v3364
      %v3369 = vrot.slane %v3283, 7
      %v3370 = vrot.slane %v3284, 7
      %3373 = vst [vmem:[#allocation2 + $0x30] sm:$0xe] %v3369
      %3374 = vst [vmem:[#allocation2 + $0x38] sm:$0xe] %v3370
      %3375 = vst [vmem:[#allocation2 + $0x30] sm:$0xe0] %v3369
      %3376 = vst [vmem:[#allocation2 + $0x38] sm:$0xe0] %v3370
      %v3377 = vrot.slane %v3285, 7
      %v3378 = vrot.slane %v3286, 7
      %3381 = vst [vmem:[#allocation2 + $0xc0] sm:$0xe] %v3377
      %3382 = vst [vmem:[#allocation2 + $0xc8] sm:$0xe] %v3378
      %3383 = vst [vmem:[#allocation2 + $0xc0] sm:$0xe0] %v3377
      %3384 = vst [vmem:[#allocation2 + $0xc8] sm:$0xe0] %v3378
      %3385 = vst [vmem:[#allocation2 + $0x40] sm:$0xf] %v3283
      %3386 = vst [vmem:[#allocation2 + $0x48] sm:$0xf] %v3284
      %3387 = vst [vmem:[#allocation2 + $0x40] sm:$0xf0] %v3283
      %3388 = vst [vmem:[#allocation2 + $0x48] sm:$0xf0] %v3284
      %3389 = vst [vmem:[#allocation2 + $0xd0] sm:$0xf] %v3285
      %3390 = vst [vmem:[#allocation2 + $0xd8] sm:$0xf] %v3286
      %3391 = vst [vmem:[#allocation2 + $0xd0] sm:$0xf0] %v3285
      %3392 = vst [vmem:[#allocation2 + $0xd8] sm:$0xf0] %v3286
      %v3393 = vrot.slane %v3283, 1
      %v3394 = vrot.slane %v3284, 1
      %3397 = vst [vmem:[#allocation2 + $0x50] sm:$0x7] %v3393
      %3398 = vst [vmem:[#allocation2 + $0x58] sm:$0x7] %v3394
      %3399 = vst [vmem:[#allocation2 + $0x50] sm:$0x70] %v3393
      %3400 = vst [vmem:[#allocation2 + $0x58] sm:$0x70] %v3394
      %v3401 = vrot.slane %v3285, 1
      %v3402 = vrot.slane %v3286, 1
      %3405 = vst [vmem:[#allocation2 + $0xe0] sm:$0x7] %v3401
      %3406 = vst [vmem:[#allocation2 + $0xe8] sm:$0x7] %v3402
      %3407 = vst [vmem:[#allocation2 + $0xe0] sm:$0x70] %v3401
      %3408 = vst [vmem:[#allocation2 + $0xe8] sm:$0x70] %v3402
      %3409 = vst [vmem:[#allocation2 + $0x60] sm:$0xe] %v3325
      %3410 = vst [vmem:[#allocation2 + $0x68] sm:$0xe] %v3326
      %3411 = vst [vmem:[#allocation2 + $0x60] sm:$0xe0] %v3335
      %3412 = vst [vmem:[#allocation2 + $0x68] sm:$0xe0] %v3336
      %3413 = vst [vmem:[#allocation2 + $0xf0] sm:$0xe] %v3335
      %3414 = vst [vmem:[#allocation2 + $0xf8] sm:$0xe] %v3336
      %3415 = vst [vmem:[#allocation2 + $0x70] sm:$0xf] %v3341
      %3416 = vst [vmem:[#allocation2 + $0x78] sm:$0xf] %v3342
      %3417 = vst [vmem:[#allocation2 + $0x70] sm:$0xf0] %v3349
      %3418 = vst [vmem:[#allocation2 + $0x78] sm:$0xf0] %v3350
      %3419 = vst [vmem:[#allocation2 + $0x100] sm:$0xf] %v3349
      %3420 = vst [vmem:[#allocation2 + $0x108] sm:$0xf] %v3350
      %3421 = vst [vmem:[#allocation2 + $0x80] sm:$0x7] %v3355
      %3422 = vst [vmem:[#allocation2 + $0x88] sm:$0x7] %v3356
      %3423 = vst [vmem:[#allocation2 + $0x80] sm:$0x70] %v3363
      %3424 = vst [vmem:[#allocation2 + $0x88] sm:$0x70] %v3364
      %3425 = vst [vmem:[#allocation2 + $0x110] sm:$0x7] %v3363
      %3426 = vst [vmem:[#allocation2 + $0x118] sm:$0x7] %v3364
      %v3427 = vld [vmem:[#allocation2] sm:$0xff]
      %v3428 = vld [vmem:[#allocation2 + $0x8] sm:$0xff]
      %v3429 = vld [vmem:[#allocation2 + $0x10] sm:$0xff]
      %v3430 = vld [vmem:[#allocation2 + $0x18] sm:$0xff]
      %v3431 = vld [vmem:[#allocation2 + $0x20] sm:$0xff]
      %v3432 = vld [vmem:[#allocation2 + $0x28] sm:$0xff]
      %v3433 = vld [vmem:[#allocation2 + $0x30] sm:$0xff]
      %v3434 = vld [vmem:[#allocation2 + $0x38] sm:$0xff]
      %v3435 = vld [vmem:[#allocation2 + $0x40] sm:$0xff]
      %v3436 = vld [vmem:[#allocation2 + $0x48] sm:$0xff]
      %v3437 = vld [vmem:[#allocation2 + $0x50] sm:$0xff]
      %v3438 = vld [vmem:[#allocation2 + $0x58] sm:$0xff]
      %v3439 = vld [vmem:[#allocation2 + $0x60] sm:$0xff]
      %v3440 = vld [vmem:[#allocation2 + $0x68] sm:$0xff]
      %v3441 = vld [vmem:[#allocation2 + $0x70] sm:$0xff]
      %v3442 = vld [vmem:[#allocation2 + $0x78] sm:$0xff]
      %v3443 = vld [vmem:[#allocation2 + $0x80] sm:$0xff]
      %v3444 = vld [vmem:[#allocation2 + $0x88] sm:$0xff]
      %v3445 = vld [vmem:[#allocation2 + $0x90] sm:$0xff]
      %v3446 = vld [vmem:[#allocation2 + $0x98] sm:$0xff]
      %v3447 = vld [vmem:[#allocation2 + $0xa0] sm:$0xff]
      %v3448 = vld [vmem:[#allocation2 + $0xa8] sm:$0xff]
      %v3449 = vld [vmem:[#allocation2 + $0xb0] sm:$0xff]
      %v3450 = vld [vmem:[#allocation2 + $0xb8] sm:$0xff]
      %v3451 = vld [vmem:[#allocation2 + $0xc0] sm:$0xff]
      %v3452 = vld [vmem:[#allocation2 + $0xc8] sm:$0xff]
      %v3453 = vld [vmem:[#allocation2 + $0xd0] sm:$0xff]
      %v3454 = vld [vmem:[#allocation2 + $0xd8] sm:$0xff]
      %v3455 = vld [vmem:[#allocation2 + $0xe0] sm:$0xff]
      %v3456 = vld [vmem:[#allocation2 + $0xe8] sm:$0xff]
      %v3457 = vld [vmem:[#allocation2 + $0xf0] sm:$0xff]
      %v3458 = vld [vmem:[#allocation2 + $0xf8] sm:$0xff]
      %v3459 = vld [vmem:[#allocation2 + $0x100] sm:$0xff]
      %v3460 = vld [vmem:[#allocation2 + $0x108] sm:$0xff]
      %v3461 = vld [vmem:[#allocation2 + $0x110] sm:$0xff]
      %v3462 = vld [vmem:[#allocation2 + $0x118] sm:$0xff]
      %v3463 = vpack.c.bf16 %v3445, %v3427
      %v3464 = vpack.c.bf16 %v3446, %v3428
      %v3465 = vpack.c.bf16 %v3447, %v3429
      %v3466 = vpack.c.bf16 %v3448, %v3430
      %v3467 = vpack.c.bf16 %v3449, %v3431
      %v3468 = vpack.c.bf16 %v3450, %v3432
      %v3469 = vpack.c.bf16 %v3451, %v3433
      %v3470 = vpack.c.bf16 %v3452, %v3434
      %v3471 = vpack.c.bf16 %v3453, %v3435
      %v3472 = vpack.c.bf16 %v3454, %v3436
      %v3473 = vpack.c.bf16 %v3455, %v3437
      %v3474 = vpack.c.bf16 %v3456, %v3438
      %v3475 = vpack.c.bf16 %v3457, %v3439
      %v3476 = vpack.c.bf16 %v3458, %v3440
      %v3477 = vpack.c.bf16 %v3459, %v3441
      %v3478 = vpack.c.bf16 %v3460, %v3442
      %v3479 = vpack.c.bf16 %v3461, %v3443
      %v3480 = vpack.c.bf16 %v3462, %v3444
      %v3481 = vld [vmem:[%s3] sm:$0xf]
      %v3482 = vld [vmem:[%s3 + $0x4] sm:$0xf]
      %v3483 = vld [vmem:[%s3 + $0x8] sm:$0xf]
      %v3484 = vld [vmem:[%s3 + $0xc] sm:$0xf]
      %v3485 = vld [vmem:[%s3 + $0x10] sm:$0xf]
      %v3486 = vld [vmem:[%s3 + $0x14] sm:$0xf]
      %v3487 = vld [vmem:[%s3 + $0x18] sm:$0xf]
      %v3488 = vld [vmem:[%s3 + $0x1c] sm:$0xf]
      %v3489 = vld [vmem:[%s3 + $0x20] sm:$0xf]
      %v3490 = vld [vmem:[%s3 + $0x24] sm:$0xf]
      %v3491 = vld [vmem:[%s3 + $0x28] sm:$0xf]
      %v3492 = vld [vmem:[%s3 + $0x2c] sm:$0xf]
      %v3493 = vld [vmem:[%s3 + $0x30] sm:$0xf]
      %v3494 = vld [vmem:[%s3 + $0x34] sm:$0xf]
      %v3495 = vld [vmem:[%s3 + $0x38] sm:$0xf]
      %v3496 = vld [vmem:[%s3 + $0x3c] sm:$0xf]
      %v3497 = vld [vmem:[%s3 + $0x40] sm:$0xf]
      %v3498 = vld [vmem:[%s3 + $0x44] sm:$0xf]
      %v3499 = vld [vmem:[%s3 + $0x48] sm:$0xf]
      %v3500 = vld [vmem:[%s3 + $0x4c] sm:$0xf]
      %v3501 = vld [vmem:[%s3 + $0x50] sm:$0xf]
      %v3502 = vld [vmem:[%s3 + $0x54] sm:$0xf]
      %v3503 = vld [vmem:[%s3 + $0x58] sm:$0xf]
      %v3504 = vld [vmem:[%s3 + $0x5c] sm:$0xf]
      %v3505 = vld [vmem:[%s3 + $0x60] sm:$0xf]
      %v3506 = vld [vmem:[%s3 + $0x64] sm:$0xf]
      %v3507 = vld [vmem:[%s3 + $0x68] sm:$0xf]
      %v3508 = vld [vmem:[%s3 + $0x6c] sm:$0xf]
      %v3509 = vld [vmem:[%s3 + $0x70] sm:$0xf]
      %v3510 = vld [vmem:[%s3 + $0x74] sm:$0xf]
      %v3511 = vld [vmem:[%s3 + $0x78] sm:$0xf]
      %v3512 = vld [vmem:[%s3 + $0x7c] sm:$0xf]
      %v3513 = vld [vmem:[%s3 + $0x80] sm:$0xf]
      %v3514 = vld [vmem:[%s3 + $0x84] sm:$0xf]
      %v3515 = vld [vmem:[%s3 + $0x88] sm:$0xf]
      %v3516 = vld [vmem:[%s3 + $0x8c] sm:$0xf]
      %v3517 = vld [vmem:[%s3 + $0x90] sm:$0xf]
      %v3518 = vld [vmem:[%s3 + $0x94] sm:$0xf]
      %v3519 = vld [vmem:[%s3 + $0x98] sm:$0xf]
      %v3520 = vld [vmem:[%s3 + $0x9c] sm:$0xf]
      %v3521 = vld [vmem:[%s3 + $0xa0] sm:$0xf]
      %v3522 = vld [vmem:[%s3 + $0xa4] sm:$0xf]
      %v3523 = vld [vmem:[%s3 + $0xa8] sm:$0xf]
      %v3524 = vld [vmem:[%s3 + $0xac] sm:$0xf]
      %v3525 = vld [vmem:[%s3 + $0xb0] sm:$0xf]
      %v3526 = vld [vmem:[%s3 + $0xb4] sm:$0xf]
      %v3527 = vld [vmem:[%s3 + $0xb8] sm:$0xf]
      %v3528 = vld [vmem:[%s3 + $0xbc] sm:$0xf]
      %v3529 = vld [vmem:[%s3 + $0xc0] sm:$0xf]
      %v3530 = vld [vmem:[%s3 + $0xc4] sm:$0xf]
      %v3531 = vld [vmem:[%s3 + $0xc8] sm:$0xf]
      %v3532 = vld [vmem:[%s3 + $0xcc] sm:$0xf]
      %v3533 = vld [vmem:[%s3 + $0xd0] sm:$0xf]
      %v3534 = vld [vmem:[%s3 + $0xd4] sm:$0xf]
      %v3535 = vld [vmem:[%s3 + $0xd8] sm:$0xf]
      %v3536 = vld [vmem:[%s3 + $0xdc] sm:$0xf]
      %v3537 = vld [vmem:[%s3 + $0xe0] sm:$0xf]
      %v3538 = vld [vmem:[%s3 + $0xe4] sm:$0xf]
      %v3539 = vld [vmem:[%s3 + $0xe8] sm:$0xf]
      %v3540 = vld [vmem:[%s3 + $0xec] sm:$0xf]
      %v3541 = vld [vmem:[%s3 + $0xf0] sm:$0xf]
      %v3542 = vld [vmem:[%s3 + $0xf4] sm:$0xf]
      %v3543 = vld [vmem:[%s3 + $0xf8] sm:$0xf]
      %v3544 = vld [vmem:[%s3 + $0xfc] sm:$0xf]
      %v3545 = vld [vmem:[%s3 + $0x100] sm:$0xf]
      %v3546 = vld [vmem:[%s3 + $0x104] sm:$0xf]
      %v3547 = vld [vmem:[%s3 + $0x108] sm:$0xf]
      %v3548 = vld [vmem:[%s3 + $0x10c] sm:$0xf]
      %v3549 = vld [vmem:[%s3 + $0x110] sm:$0xf]
      %v3550 = vld [vmem:[%s3 + $0x114] sm:$0xf]
      %v3551 = vld [vmem:[%s3 + $0x118] sm:$0xf]
      %v3552 = vld [vmem:[%s3 + $0x11c] sm:$0xf]
      %v3553 = vld [vmem:[%s3 + $0x120] sm:$0xf]
      %v3554 = vld [vmem:[%s3 + $0x124] sm:$0xf]
      %v3555 = vld [vmem:[%s3 + $0x128] sm:$0xf]
      %v3556 = vld [vmem:[%s3 + $0x12c] sm:$0xf]
      %v3557 = vld [vmem:[%s3 + $0x130] sm:$0xf]
      %v3558 = vld [vmem:[%s3 + $0x134] sm:$0xf]
      %v3559 = vld [vmem:[%s3 + $0x138] sm:$0xf]
      %v3560 = vld [vmem:[%s3 + $0x13c] sm:$0xf]
      %v3561 = vld [vmem:[%s3 + $0x140] sm:$0xf]
      %v3562 = vld [vmem:[%s3 + $0x144] sm:$0xf]
      %v3563 = vld [vmem:[%s3 + $0x148] sm:$0xf]
      %v3564 = vld [vmem:[%s3 + $0x14c] sm:$0xf]
      %v3565 = vld [vmem:[%s3 + $0x150] sm:$0xf]
      %v3566 = vld [vmem:[%s3 + $0x154] sm:$0xf]
      %v3567 = vld [vmem:[%s3 + $0x158] sm:$0xf]
      %v3568 = vld [vmem:[%s3 + $0x15c] sm:$0xf]
      %v3569 = vld [vmem:[%s3 + $0x160] sm:$0xf]
      %v3570 = vld [vmem:[%s3 + $0x164] sm:$0xf]
      %v3571 = vld [vmem:[%s3 + $0x168] sm:$0xf]
      %v3572 = vld [vmem:[%s3 + $0x16c] sm:$0xf]
      %v3573 = vld [vmem:[%s3 + $0x170] sm:$0xf]
      %v3574 = vld [vmem:[%s3 + $0x174] sm:$0xf]
      %v3575 = vld [vmem:[%s3 + $0x178] sm:$0xf]
      %v3576 = vld [vmem:[%s3 + $0x17c] sm:$0xf]
      %v3577 = vld [vmem:[%s3 + $0x180] sm:$0xf]
      %v3578 = vld [vmem:[%s3 + $0x184] sm:$0xf]
      %v3579 = vld [vmem:[%s3 + $0x188] sm:$0xf]
      %v3580 = vld [vmem:[%s3 + $0x18c] sm:$0xf]
      %v3581 = vld [vmem:[%s3 + $0x190] sm:$0xf]
      %v3582 = vld [vmem:[%s3 + $0x194] sm:$0xf]
      %v3583 = vld [vmem:[%s3 + $0x198] sm:$0xf]
      %v3584 = vld [vmem:[%s3 + $0x19c] sm:$0xf]
      %v3585 = vld [vmem:[%s3 + $0x1a0] sm:$0xf]
      %v3586 = vld [vmem:[%s3 + $0x1a4] sm:$0xf]
      %v3587 = vld [vmem:[%s3 + $0x1a8] sm:$0xf]
      %v3588 = vld [vmem:[%s3 + $0x1ac] sm:$0xf]
      %v3589 = vld [vmem:[%s3 + $0x1b0] sm:$0xf]
      %v3590 = vld [vmem:[%s3 + $0x1b4] sm:$0xf]
      %v3591 = vld [vmem:[%s3 + $0x1b8] sm:$0xf]
      %v3592 = vld [vmem:[%s3 + $0x1bc] sm:$0xf]
      %v3593 = vld [vmem:[%s3 + $0x1c0] sm:$0xf]
      %v3594 = vld [vmem:[%s3 + $0x1c4] sm:$0xf]
      %v3595 = vld [vmem:[%s3 + $0x1c8] sm:$0xf]
      %v3596 = vld [vmem:[%s3 + $0x1cc] sm:$0xf]
      %v3597 = vld [vmem:[%s3 + $0x1d0] sm:$0xf]
      %v3598 = vld [vmem:[%s3 + $0x1d4] sm:$0xf]
      %v3599 = vld [vmem:[%s3 + $0x1d8] sm:$0xf]
      %v3600 = vld [vmem:[%s3 + $0x1dc] sm:$0xf]
      %v3601 = vld [vmem:[%s3 + $0x1e0] sm:$0xf]
      %v3602 = vld [vmem:[%s3 + $0x1e4] sm:$0xf]
      %v3603 = vld [vmem:[%s3 + $0x1e8] sm:$0xf]
      %v3604 = vld [vmem:[%s3 + $0x1ec] sm:$0xf]
      %v3605 = vld [vmem:[%s3 + $0x1f0] sm:$0xf]
      %v3606 = vld [vmem:[%s3 + $0x1f4] sm:$0xf]
      %v3607 = vld [vmem:[%s3 + $0x1f8] sm:$0xf]
      %v3608 = vld [vmem:[%s3 + $0x1fc] sm:$0xf]
      %v3609 = vld [vmem:[%s3 + $0x200] sm:$0xf]
      %v3610 = vld [vmem:[%s3 + $0x204] sm:$0xf]
      %v3611 = vld [vmem:[%s3 + $0x208] sm:$0xf]
      %v3612 = vld [vmem:[%s3 + $0x20c] sm:$0xf]
      %v3613 = vld [vmem:[%s3 + $0x210] sm:$0xf]
      %v3614 = vld [vmem:[%s3 + $0x214] sm:$0xf]
      %v3615 = vld [vmem:[%s3 + $0x218] sm:$0xf]
      %v3616 = vld [vmem:[%s3 + $0x21c] sm:$0xf]
      %v3617 = vld [vmem:[%s3 + $0x220] sm:$0xf]
      %v3618 = vld [vmem:[%s3 + $0x224] sm:$0xf]
      %v3619 = vld [vmem:[%s3 + $0x228] sm:$0xf]
      %v3620 = vld [vmem:[%s3 + $0x22c] sm:$0xf]
      %v3621 = vld [vmem:[%s3 + $0x230] sm:$0xf]
      %v3622 = vld [vmem:[%s3 + $0x234] sm:$0xf]
      %v3623 = vld [vmem:[%s3 + $0x238] sm:$0xf]
      %v3624 = vld [vmem:[%s3 + $0x23c] sm:$0xf]
      %v3625 = vld [vmem:[%s3 + $0x240] sm:$0xf]
      %v3626 = vld [vmem:[%s3 + $0x244] sm:$0xf]
      %v3627 = vld [vmem:[%s3 + $0x248] sm:$0xf]
      %v3628 = vld [vmem:[%s3 + $0x24c] sm:$0xf]
      %v3629 = vld [vmem:[%s3 + $0x250] sm:$0xf]
      %v3630 = vld [vmem:[%s3 + $0x254] sm:$0xf]
      %v3631 = vld [vmem:[%s3 + $0x258] sm:$0xf]
      %v3632 = vld [vmem:[%s3 + $0x25c] sm:$0xf]
      %v3633 = vld [vmem:[%s3 + $0x260] sm:$0xf]
      %v3634 = vld [vmem:[%s3 + $0x264] sm:$0xf]
      %v3635 = vld [vmem:[%s3 + $0x268] sm:$0xf]
      %v3636 = vld [vmem:[%s3 + $0x26c] sm:$0xf]
      %v3637 = vld [vmem:[%s3 + $0x270] sm:$0xf]
      %v3638 = vld [vmem:[%s3 + $0x274] sm:$0xf]
      %v3639 = vld [vmem:[%s3 + $0x278] sm:$0xf]
      %v3640 = vld [vmem:[%s3 + $0x27c] sm:$0xf]
      %v3641 = vld [vmem:[%s3 + $0x280] sm:$0xf]
      %v3642 = vld [vmem:[%s3 + $0x284] sm:$0xf]
      %v3643 = vld [vmem:[%s3 + $0x288] sm:$0xf]
      %v3644 = vld [vmem:[%s3 + $0x28c] sm:$0xf]
      %v3645 = vld [vmem:[%s3 + $0x290] sm:$0xf]
      %v3646 = vld [vmem:[%s3 + $0x294] sm:$0xf]
      %v3647 = vld [vmem:[%s3 + $0x298] sm:$0xf]
      %v3648 = vld [vmem:[%s3 + $0x29c] sm:$0xf]
      %v3649 = vld [vmem:[%s3 + $0x2a0] sm:$0xf]
      %v3650 = vld [vmem:[%s3 + $0x2a4] sm:$0xf]
      %v3651 = vld [vmem:[%s3 + $0x2a8] sm:$0xf]
      %v3652 = vld [vmem:[%s3 + $0x2ac] sm:$0xf]
      %v3653 = vld [vmem:[%s3 + $0x2b0] sm:$0xf]
      %v3654 = vld [vmem:[%s3 + $0x2b4] sm:$0xf]
      %v3655 = vld [vmem:[%s3 + $0x2b8] sm:$0xf]
      %v3656 = vld [vmem:[%s3 + $0x2bc] sm:$0xf]
      %v3657 = vld [vmem:[%s3 + $0x2c0] sm:$0xf]
      %v3658 = vld [vmem:[%s3 + $0x2c4] sm:$0xf]
      %v3659 = vld [vmem:[%s3 + $0x2c8] sm:$0xf]
      %v3660 = vld [vmem:[%s3 + $0x2cc] sm:$0xf]
      %v3661 = vld [vmem:[%s3 + $0x2d0] sm:$0xf]
      %v3662 = vld [vmem:[%s3 + $0x2d4] sm:$0xf]
      %v3663 = vld [vmem:[%s3 + $0x2d8] sm:$0xf]
      %v3664 = vld [vmem:[%s3 + $0x2dc] sm:$0xf]
      %v3665 = vld [vmem:[%s3 + $0x2e0] sm:$0xf]
      %v3666 = vld [vmem:[%s3 + $0x2e4] sm:$0xf]
      %v3667 = vld [vmem:[%s3 + $0x2e8] sm:$0xf]
      %v3668 = vld [vmem:[%s3 + $0x2ec] sm:$0xf]
      %v3669 = vld [vmem:[%s3 + $0x2f0] sm:$0xf]
      %v3670 = vld [vmem:[%s3 + $0x2f4] sm:$0xf]
      %v3671 = vld [vmem:[%s3 + $0x2f8] sm:$0xf]
      %v3672 = vld [vmem:[%s3 + $0x2fc] sm:$0xf]
      %v3673 = vld [vmem:[%s3 + $0x300] sm:$0xf]
      %v3674 = vld [vmem:[%s3 + $0x304] sm:$0xf]
      %v3675 = vld [vmem:[%s3 + $0x308] sm:$0xf]
      %v3676 = vld [vmem:[%s3 + $0x30c] sm:$0xf]
      %v3677 = vld [vmem:[%s3 + $0x310] sm:$0xf]
      %v3678 = vld [vmem:[%s3 + $0x314] sm:$0xf]
      %v3679 = vld [vmem:[%s3 + $0x318] sm:$0xf]
      %v3680 = vld [vmem:[%s3 + $0x31c] sm:$0xf]
      %v3681 = vld [vmem:[%s3 + $0x320] sm:$0xf]
      %v3682 = vld [vmem:[%s3 + $0x324] sm:$0xf]
      %v3683 = vld [vmem:[%s3 + $0x328] sm:$0xf]
      %v3684 = vld [vmem:[%s3 + $0x32c] sm:$0xf]
      %v3685 = vld [vmem:[%s3 + $0x330] sm:$0xf]
      %v3686 = vld [vmem:[%s3 + $0x334] sm:$0xf]
      %v3687 = vld [vmem:[%s3 + $0x338] sm:$0xf]
      %v3688 = vld [vmem:[%s3 + $0x33c] sm:$0xf]
      %v3689 = vld [vmem:[%s3 + $0x340] sm:$0xf]
      %v3690 = vld [vmem:[%s3 + $0x344] sm:$0xf]
      %v3691 = vld [vmem:[%s3 + $0x348] sm:$0xf]
      %v3692 = vld [vmem:[%s3 + $0x34c] sm:$0xf]
      %v3693 = vld [vmem:[%s3 + $0x350] sm:$0xf]
      %v3694 = vld [vmem:[%s3 + $0x354] sm:$0xf]
      %v3695 = vld [vmem:[%s3 + $0x358] sm:$0xf]
      %v3696 = vld [vmem:[%s3 + $0x35c] sm:$0xf]
      %v3697 = vld [vmem:[%s3 + $0x360] sm:$0xf]
      %v3698 = vld [vmem:[%s3 + $0x364] sm:$0xf]
      %v3699 = vld [vmem:[%s3 + $0x368] sm:$0xf]
      %v3700 = vld [vmem:[%s3 + $0x36c] sm:$0xf]
      %v3701 = vld [vmem:[%s3 + $0x370] sm:$0xf]
      %v3702 = vld [vmem:[%s3 + $0x374] sm:$0xf]
      %v3703 = vld [vmem:[%s3 + $0x378] sm:$0xf]
      %v3704 = vld [vmem:[%s3 + $0x37c] sm:$0xf]
      %v3705 = vld [vmem:[%s3 + $0x380] sm:$0xf]
      %v3706 = vld [vmem:[%s3 + $0x384] sm:$0xf]
      %v3707 = vld [vmem:[%s3 + $0x388] sm:$0xf]
      %v3708 = vld [vmem:[%s3 + $0x38c] sm:$0xf]
      %v3709 = vld [vmem:[%s3 + $0x390] sm:$0xf]
      %v3710 = vld [vmem:[%s3 + $0x394] sm:$0xf]
      %v3711 = vld [vmem:[%s3 + $0x398] sm:$0xf]
      %v3712 = vld [vmem:[%s3 + $0x39c] sm:$0xf]
      %v3713 = vld [vmem:[%s3 + $0x3a0] sm:$0xf]
      %v3714 = vld [vmem:[%s3 + $0x3a4] sm:$0xf]
      %v3715 = vld [vmem:[%s3 + $0x3a8] sm:$0xf]
      %v3716 = vld [vmem:[%s3 + $0x3ac] sm:$0xf]
      %v3717 = vld [vmem:[%s3 + $0x3b0] sm:$0xf]
      %v3718 = vld [vmem:[%s3 + $0x3b4] sm:$0xf]
      %v3719 = vld [vmem:[%s3 + $0x3b8] sm:$0xf]
      %v3720 = vld [vmem:[%s3 + $0x3bc] sm:$0xf]
      %v3721 = vld [vmem:[%s3 + $0x3c0] sm:$0xf]
      %v3722 = vld [vmem:[%s3 + $0x3c4] sm:$0xf]
      %v3723 = vld [vmem:[%s3 + $0x3c8] sm:$0xf]
      %v3724 = vld [vmem:[%s3 + $0x3cc] sm:$0xf]
      %v3725 = vld [vmem:[%s3 + $0x3d0] sm:$0xf]
      %v3726 = vld [vmem:[%s3 + $0x3d4] sm:$0xf]
      %v3727 = vld [vmem:[%s3 + $0x3d8] sm:$0xf]
      %v3728 = vld [vmem:[%s3 + $0x3dc] sm:$0xf]
      %v3729 = vld [vmem:[%s3 + $0x3e0] sm:$0xf]
      %v3730 = vld [vmem:[%s3 + $0x3e4] sm:$0xf]
      %v3731 = vld [vmem:[%s3 + $0x3e8] sm:$0xf]
      %v3732 = vld [vmem:[%s3 + $0x3ec] sm:$0xf]
      %v3733 = vld [vmem:[%s3 + $0x3f0] sm:$0xf]
      %v3734 = vld [vmem:[%s3 + $0x3f4] sm:$0xf]
      %v3735 = vld [vmem:[%s3 + $0x3f8] sm:$0xf]
      %v3736 = vld [vmem:[%s3 + $0x3fc] sm:$0xf]
      %v3737 = vld [vmem:[%s3 + $0x400] sm:$0xf]
      %v3738 = vld [vmem:[%s3 + $0x404] sm:$0xf]
      %v3739 = vld [vmem:[%s3 + $0x408] sm:$0xf]
      %v3740 = vld [vmem:[%s3 + $0x40c] sm:$0xf]
      %v3741 = vld [vmem:[%s3 + $0x410] sm:$0xf]
      %v3742 = vld [vmem:[%s3 + $0x414] sm:$0xf]
      %v3743 = vld [vmem:[%s3 + $0x418] sm:$0xf]
      %v3744 = vld [vmem:[%s3 + $0x41c] sm:$0xf]
      %v3745 = vld [vmem:[%s3 + $0x420] sm:$0xf]
      %v3746 = vld [vmem:[%s3 + $0x424] sm:$0xf]
      %v3747 = vld [vmem:[%s3 + $0x428] sm:$0xf]
      %v3748 = vld [vmem:[%s3 + $0x42c] sm:$0xf]
      %v3749 = vld [vmem:[%s3 + $0x430] sm:$0xf]
      %v3750 = vld [vmem:[%s3 + $0x434] sm:$0xf]
      %v3751 = vld [vmem:[%s3 + $0x438] sm:$0xf]
      %v3752 = vld [vmem:[%s3 + $0x43c] sm:$0xf]
      %v3753 = vld [vmem:[%s3 + $0x440] sm:$0xf]
      %v3754 = vld [vmem:[%s3 + $0x444] sm:$0xf]
      %v3755 = vld [vmem:[%s3 + $0x448] sm:$0xf]
      %v3756 = vld [vmem:[%s3 + $0x44c] sm:$0xf]
      %v3757 = vld [vmem:[%s3 + $0x450] sm:$0xf]
      %v3758 = vld [vmem:[%s3 + $0x454] sm:$0xf]
      %v3759 = vld [vmem:[%s3 + $0x458] sm:$0xf]
      %v3760 = vld [vmem:[%s3 + $0x45c] sm:$0xf]
      %v3761 = vld [vmem:[%s3 + $0x460] sm:$0xf]
      %v3762 = vld [vmem:[%s3 + $0x464] sm:$0xf]
      %v3763 = vld [vmem:[%s3 + $0x468] sm:$0xf]
      %v3764 = vld [vmem:[%s3 + $0x46c] sm:$0xf]
      %v3765 = vld [vmem:[%s3 + $0x470] sm:$0xf]
      %v3766 = vld [vmem:[%s3 + $0x474] sm:$0xf]
      %v3767 = vld [vmem:[%s3 + $0x478] sm:$0xf]
      %v3768 = vld [vmem:[%s3 + $0x47c] sm:$0xf]
      %v4057 = vunpack.c.l.b16 %v3481
      %v4058 = vunpack.c.l.b16 %v3482
      %v4059 = vunpack.c.l.b16 %v3483
      %v4060 = vunpack.c.l.b16 %v3484
      %v4061 = vunpack.c.l.b16 %v3485
      %v4062 = vunpack.c.l.b16 %v3486
      %v4063 = vunpack.c.l.b16 %v3487
      %v4064 = vunpack.c.l.b16 %v3488
      %v4065 = vunpack.c.l.b16 %v3489
      %v4066 = vunpack.c.l.b16 %v3490
      %v4067 = vunpack.c.l.b16 %v3491
      %v4068 = vunpack.c.l.b16 %v3492
      %v4069 = vunpack.c.l.b16 %v3493
      %v4070 = vunpack.c.l.b16 %v3494
      %v4071 = vunpack.c.l.b16 %v3495
      %v4072 = vunpack.c.l.b16 %v3496
      %v4073 = vunpack.c.l.b16 %v3497
      %v4074 = vunpack.c.l.b16 %v3498
      %v4075 = vunpack.c.l.b16 %v3499
      %v4076 = vunpack.c.l.b16 %v3500
      %v4077 = vunpack.c.l.b16 %v3501
      %v4078 = vunpack.c.l.b16 %v3502
      %v4079 = vunpack.c.l.b16 %v3503
      %v4080 = vunpack.c.l.b16 %v3504
      %v4081 = vunpack.c.l.b16 %v3505
      %v4082 = vunpack.c.l.b16 %v3506
      %v4083 = vunpack.c.l.b16 %v3507
      %v4084 = vunpack.c.l.b16 %v3508
      %v4085 = vunpack.c.l.b16 %v3509
      %v4086 = vunpack.c.l.b16 %v3510
      %v4087 = vunpack.c.l.b16 %v3511
      %v4088 = vunpack.c.l.b16 %v3512
      %v4089 = vunpack.c.l.b16 %v3513
      %v4090 = vunpack.c.l.b16 %v3514
      %v4091 = vunpack.c.l.b16 %v3515
      %v4092 = vunpack.c.l.b16 %v3516
      %v4093 = vunpack.c.l.b16 %v3517
      %v4094 = vunpack.c.l.b16 %v3518
      %v4095 = vunpack.c.l.b16 %v3519
      %v4096 = vunpack.c.l.b16 %v3520
      %v4097 = vunpack.c.l.b16 %v3521
      %v4098 = vunpack.c.l.b16 %v3522
      %v4099 = vunpack.c.l.b16 %v3523
      %v4100 = vunpack.c.l.b16 %v3524
      %v4101 = vunpack.c.l.b16 %v3525
      %v4102 = vunpack.c.l.b16 %v3526
      %v4103 = vunpack.c.l.b16 %v3527
      %v4104 = vunpack.c.l.b16 %v3528
      %v4105 = vunpack.c.l.b16 %v3529
      %v4106 = vunpack.c.l.b16 %v3530
      %v4107 = vunpack.c.l.b16 %v3531
      %v4108 = vunpack.c.l.b16 %v3532
      %v4109 = vunpack.c.l.b16 %v3533
      %v4110 = vunpack.c.l.b16 %v3534
      %v4111 = vunpack.c.l.b16 %v3535
      %v4112 = vunpack.c.l.b16 %v3536
      %v4113 = vunpack.c.l.b16 %v3537
      %v4114 = vunpack.c.l.b16 %v3538
      %v4115 = vunpack.c.l.b16 %v3539
      %v4116 = vunpack.c.l.b16 %v3540
      %v4117 = vunpack.c.l.b16 %v3541
      %v4118 = vunpack.c.l.b16 %v3542
      %v4119 = vunpack.c.l.b16 %v3543
      %v4120 = vunpack.c.l.b16 %v3544
      %v4121 = vunpack.c.l.b16 %v3545
      %v4122 = vunpack.c.l.b16 %v3546
      %v4123 = vunpack.c.l.b16 %v3547
      %v4124 = vunpack.c.l.b16 %v3548
      %v4125 = vunpack.c.l.b16 %v3549
      %v4126 = vunpack.c.l.b16 %v3550
      %v4127 = vunpack.c.l.b16 %v3551
      %v4128 = vunpack.c.l.b16 %v3552
      %v4129 = vunpack.c.l.b16 %v3553
      %v4130 = vunpack.c.l.b16 %v3554
      %v4131 = vunpack.c.l.b16 %v3555
      %v4132 = vunpack.c.l.b16 %v3556
      %v4133 = vunpack.c.l.b16 %v3557
      %v4134 = vunpack.c.l.b16 %v3558
      %v4135 = vunpack.c.l.b16 %v3559
      %v4136 = vunpack.c.l.b16 %v3560
      %v4137 = vunpack.c.l.b16 %v3561
      %v4138 = vunpack.c.l.b16 %v3562
      %v4139 = vunpack.c.l.b16 %v3563
      %v4140 = vunpack.c.l.b16 %v3564
      %v4141 = vunpack.c.l.b16 %v3565
      %v4142 = vunpack.c.l.b16 %v3566
      %v4143 = vunpack.c.l.b16 %v3567
      %v4144 = vunpack.c.l.b16 %v3568
      %v4145 = vunpack.c.l.b16 %v3569
      %v4146 = vunpack.c.l.b16 %v3570
      %v4147 = vunpack.c.l.b16 %v3571
      %v4148 = vunpack.c.l.b16 %v3572
      %v4149 = vunpack.c.l.b16 %v3573
      %v4150 = vunpack.c.l.b16 %v3574
      %v4151 = vunpack.c.l.b16 %v3575
      %v4152 = vunpack.c.l.b16 %v3576
      %v4153 = vunpack.c.l.b16 %v3577
      %v4154 = vunpack.c.l.b16 %v3578
      %v4155 = vunpack.c.l.b16 %v3579
      %v4156 = vunpack.c.l.b16 %v3580
      %v4157 = vunpack.c.l.b16 %v3581
      %v4158 = vunpack.c.l.b16 %v3582
      %v4159 = vunpack.c.l.b16 %v3583
      %v4160 = vunpack.c.l.b16 %v3584
      %v4161 = vunpack.c.l.b16 %v3585
      %v4162 = vunpack.c.l.b16 %v3586
      %v4163 = vunpack.c.l.b16 %v3587
      %v4164 = vunpack.c.l.b16 %v3588
      %v4165 = vunpack.c.l.b16 %v3589
      %v4166 = vunpack.c.l.b16 %v3590
      %v4167 = vunpack.c.l.b16 %v3591
      %v4168 = vunpack.c.l.b16 %v3592
      %v4169 = vunpack.c.l.b16 %v3593
      %v4170 = vunpack.c.l.b16 %v3594
      %v4171 = vunpack.c.l.b16 %v3595
      %v4172 = vunpack.c.l.b16 %v3596
      %v4173 = vunpack.c.l.b16 %v3597
      %v4174 = vunpack.c.l.b16 %v3598
      %v4175 = vunpack.c.l.b16 %v3599
      %v4176 = vunpack.c.l.b16 %v3600
      %v4177 = vunpack.c.l.b16 %v3601
      %v4178 = vunpack.c.l.b16 %v3602
      %v4179 = vunpack.c.l.b16 %v3603
      %v4180 = vunpack.c.l.b16 %v3604
      %v4181 = vunpack.c.l.b16 %v3605
      %v4182 = vunpack.c.l.b16 %v3606
      %v4183 = vunpack.c.l.b16 %v3607
      %v4184 = vunpack.c.l.b16 %v3608
      %v4185 = vunpack.c.l.b16 %v3609
      %v4186 = vunpack.c.l.b16 %v3610
      %v4187 = vunpack.c.l.b16 %v3611
      %v4188 = vunpack.c.l.b16 %v3612
      %v4189 = vunpack.c.l.b16 %v3613
      %v4190 = vunpack.c.l.b16 %v3614
      %v4191 = vunpack.c.l.b16 %v3615
      %v4192 = vunpack.c.l.b16 %v3616
      %v4193 = vunpack.c.l.b16 %v3617
      %v4194 = vunpack.c.l.b16 %v3618
      %v4195 = vunpack.c.l.b16 %v3619
      %v4196 = vunpack.c.l.b16 %v3620
      %v4197 = vunpack.c.l.b16 %v3621
      %v4198 = vunpack.c.l.b16 %v3622
      %v4199 = vunpack.c.l.b16 %v3623
      %v4200 = vunpack.c.l.b16 %v3624
      %v4201 = vunpack.c.l.b16 %v3625
      %v4202 = vunpack.c.l.b16 %v3626
      %v4203 = vunpack.c.l.b16 %v3627
      %v4204 = vunpack.c.l.b16 %v3628
      %v4205 = vunpack.c.l.b16 %v3629
      %v4206 = vunpack.c.l.b16 %v3630
      %v4207 = vunpack.c.l.b16 %v3631
      %v4208 = vunpack.c.l.b16 %v3632
      %v4209 = vunpack.c.l.b16 %v3633
      %v4210 = vunpack.c.l.b16 %v3634
      %v4211 = vunpack.c.l.b16 %v3635
      %v4212 = vunpack.c.l.b16 %v3636
      %v4213 = vunpack.c.l.b16 %v3637
      %v4214 = vunpack.c.l.b16 %v3638
      %v4215 = vunpack.c.l.b16 %v3639
      %v4216 = vunpack.c.l.b16 %v3640
      %v4217 = vunpack.c.l.b16 %v3641
      %v4218 = vunpack.c.l.b16 %v3642
      %v4219 = vunpack.c.l.b16 %v3643
      %v4220 = vunpack.c.l.b16 %v3644
      %v4221 = vunpack.c.l.b16 %v3645
      %v4222 = vunpack.c.l.b16 %v3646
      %v4223 = vunpack.c.l.b16 %v3647
      %v4224 = vunpack.c.l.b16 %v3648
      %v4225 = vunpack.c.l.b16 %v3649
      %v4226 = vunpack.c.l.b16 %v3650
      %v4227 = vunpack.c.l.b16 %v3651
      %v4228 = vunpack.c.l.b16 %v3652
      %v4229 = vunpack.c.l.b16 %v3653
      %v4230 = vunpack.c.l.b16 %v3654
      %v4231 = vunpack.c.l.b16 %v3655
      %v4232 = vunpack.c.l.b16 %v3656
      %v4233 = vunpack.c.l.b16 %v3657
      %v4234 = vunpack.c.l.b16 %v3658
      %v4235 = vunpack.c.l.b16 %v3659
      %v4236 = vunpack.c.l.b16 %v3660
      %v4237 = vunpack.c.l.b16 %v3661
      %v4238 = vunpack.c.l.b16 %v3662
      %v4239 = vunpack.c.l.b16 %v3663
      %v4240 = vunpack.c.l.b16 %v3664
      %v4241 = vunpack.c.l.b16 %v3665
      %v4242 = vunpack.c.l.b16 %v3666
      %v4243 = vunpack.c.l.b16 %v3667
      %v4244 = vunpack.c.l.b16 %v3668
      %v4245 = vunpack.c.l.b16 %v3669
      %v4246 = vunpack.c.l.b16 %v3670
      %v4247 = vunpack.c.l.b16 %v3671
      %v4248 = vunpack.c.l.b16 %v3672
      %v4249 = vunpack.c.l.b16 %v3673
      %v4250 = vunpack.c.l.b16 %v3674
      %v4251 = vunpack.c.l.b16 %v3675
      %v4252 = vunpack.c.l.b16 %v3676
      %v4253 = vunpack.c.l.b16 %v3677
      %v4254 = vunpack.c.l.b16 %v3678
      %v4255 = vunpack.c.l.b16 %v3679
      %v4256 = vunpack.c.l.b16 %v3680
      %v4257 = vunpack.c.l.b16 %v3681
      %v4258 = vunpack.c.l.b16 %v3682
      %v4259 = vunpack.c.l.b16 %v3683
      %v4260 = vunpack.c.l.b16 %v3684
      %v4261 = vunpack.c.l.b16 %v3685
      %v4262 = vunpack.c.l.b16 %v3686
      %v4263 = vunpack.c.l.b16 %v3687
      %v4264 = vunpack.c.l.b16 %v3688
      %v4265 = vunpack.c.l.b16 %v3689
      %v4266 = vunpack.c.l.b16 %v3690
      %v4267 = vunpack.c.l.b16 %v3691
      %v4268 = vunpack.c.l.b16 %v3692
      %v4269 = vunpack.c.l.b16 %v3693
      %v4270 = vunpack.c.l.b16 %v3694
      %v4271 = vunpack.c.l.b16 %v3695
      %v4272 = vunpack.c.l.b16 %v3696
      %v4273 = vunpack.c.l.b16 %v3697
      %v4274 = vunpack.c.l.b16 %v3698
      %v4275 = vunpack.c.l.b16 %v3699
      %v4276 = vunpack.c.l.b16 %v3700
      %v4277 = vunpack.c.l.b16 %v3701
      %v4278 = vunpack.c.l.b16 %v3702
      %v4279 = vunpack.c.l.b16 %v3703
      %v4280 = vunpack.c.l.b16 %v3704
      %v4281 = vunpack.c.l.b16 %v3705
      %v4282 = vunpack.c.l.b16 %v3706
      %v4283 = vunpack.c.l.b16 %v3707
      %v4284 = vunpack.c.l.b16 %v3708
      %v4285 = vunpack.c.l.b16 %v3709
      %v4286 = vunpack.c.l.b16 %v3710
      %v4287 = vunpack.c.l.b16 %v3711
      %v4288 = vunpack.c.l.b16 %v3712
      %v4289 = vunpack.c.l.b16 %v3713
      %v4290 = vunpack.c.l.b16 %v3714
      %v4291 = vunpack.c.l.b16 %v3715
      %v4292 = vunpack.c.l.b16 %v3716
      %v4293 = vunpack.c.l.b16 %v3717
      %v4294 = vunpack.c.l.b16 %v3718
      %v4295 = vunpack.c.l.b16 %v3719
      %v4296 = vunpack.c.l.b16 %v3720
      %v4297 = vunpack.c.l.b16 %v3721
      %v4298 = vunpack.c.l.b16 %v3722
      %v4299 = vunpack.c.l.b16 %v3723
      %v4300 = vunpack.c.l.b16 %v3724
      %v4301 = vunpack.c.l.b16 %v3725
      %v4302 = vunpack.c.l.b16 %v3726
      %v4303 = vunpack.c.l.b16 %v3727
      %v4304 = vunpack.c.l.b16 %v3728
      %v4305 = vunpack.c.l.b16 %v3729
      %v4306 = vunpack.c.l.b16 %v3730
      %v4307 = vunpack.c.l.b16 %v3731
      %v4308 = vunpack.c.l.b16 %v3732
      %v4309 = vunpack.c.l.b16 %v3733
      %v4310 = vunpack.c.l.b16 %v3734
      %v4311 = vunpack.c.l.b16 %v3735
      %v4312 = vunpack.c.l.b16 %v3736
      %v4313 = vunpack.c.l.b16 %v3737
      %v4314 = vunpack.c.l.b16 %v3738
      %v4315 = vunpack.c.l.b16 %v3739
      %v4316 = vunpack.c.l.b16 %v3740
      %v4317 = vunpack.c.l.b16 %v3741
      %v4318 = vunpack.c.l.b16 %v3742
      %v4319 = vunpack.c.l.b16 %v3743
      %v4320 = vunpack.c.l.b16 %v3744
      %v4321 = vunpack.c.l.b16 %v3745
      %v4322 = vunpack.c.l.b16 %v3746
      %v4323 = vunpack.c.l.b16 %v3747
      %v4324 = vunpack.c.l.b16 %v3748
      %v4325 = vunpack.c.l.b16 %v3749
      %v4326 = vunpack.c.l.b16 %v3750
      %v4327 = vunpack.c.l.b16 %v3751
      %v4328 = vunpack.c.l.b16 %v3752
      %v4329 = vunpack.c.l.b16 %v3753
      %v4330 = vunpack.c.l.b16 %v3754
      %v4331 = vunpack.c.l.b16 %v3755
      %v4332 = vunpack.c.l.b16 %v3756
      %v4333 = vunpack.c.l.b16 %v3757
      %v4334 = vunpack.c.l.b16 %v3758
      %v4335 = vunpack.c.l.b16 %v3759
      %v4336 = vunpack.c.l.b16 %v3760
      %v4337 = vunpack.c.l.b16 %v3761
      %v4338 = vunpack.c.l.b16 %v3762
      %v4339 = vunpack.c.l.b16 %v3763
      %v4340 = vunpack.c.l.b16 %v3764
      %v4341 = vunpack.c.l.b16 %v3765
      %v4342 = vunpack.c.l.b16 %v3766
      %v4343 = vunpack.c.l.b16 %v3767
      %v4344 = vunpack.c.l.b16 %v3768
      %v4345 = vpack.c.b16 %v4058, %v4057
      %v4346 = vpack.c.b16 %v4060, %v4059
      %v4347 = vpack.c.b16 %v4062, %v4061
      %v4348 = vpack.c.b16 %v4064, %v4063
      %v4349 = vpack.c.b16 %v4066, %v4065
      %v4350 = vpack.c.b16 %v4068, %v4067
      %v4351 = vpack.c.b16 %v4070, %v4069
      %v4352 = vpack.c.b16 %v4072, %v4071
      %v4353 = vpack.c.b16 %v4074, %v4073
      %v4354 = vpack.c.b16 %v4076, %v4075
      %v4355 = vpack.c.b16 %v4078, %v4077
      %v4356 = vpack.c.b16 %v4080, %v4079
      %v4357 = vpack.c.b16 %v4082, %v4081
      %v4358 = vpack.c.b16 %v4084, %v4083
      %v4359 = vpack.c.b16 %v4086, %v4085
      %v4360 = vpack.c.b16 %v4088, %v4087
      %v4361 = vpack.c.b16 %v4090, %v4089
      %v4362 = vpack.c.b16 %v4092, %v4091
      %v4363 = vpack.c.b16 %v4094, %v4093
      %v4364 = vpack.c.b16 %v4096, %v4095
      %v4365 = vpack.c.b16 %v4098, %v4097
      %v4366 = vpack.c.b16 %v4100, %v4099
      %v4367 = vpack.c.b16 %v4102, %v4101
      %v4368 = vpack.c.b16 %v4104, %v4103
      %v4369 = vpack.c.b16 %v4106, %v4105
      %v4370 = vpack.c.b16 %v4108, %v4107
      %v4371 = vpack.c.b16 %v4110, %v4109
      %v4372 = vpack.c.b16 %v4112, %v4111
      %v4373 = vpack.c.b16 %v4114, %v4113
      %v4374 = vpack.c.b16 %v4116, %v4115
      %v4375 = vpack.c.b16 %v4118, %v4117
      %v4376 = vpack.c.b16 %v4120, %v4119
      %v4377 = vpack.c.b16 %v4122, %v4121
      %v4378 = vpack.c.b16 %v4124, %v4123
      %v4379 = vpack.c.b16 %v4126, %v4125
      %v4380 = vpack.c.b16 %v4128, %v4127
      %v4381 = vpack.c.b16 %v4130, %v4129
      %v4382 = vpack.c.b16 %v4132, %v4131
      %v4383 = vpack.c.b16 %v4134, %v4133
      %v4384 = vpack.c.b16 %v4136, %v4135
      %v4385 = vpack.c.b16 %v4138, %v4137
      %v4386 = vpack.c.b16 %v4140, %v4139
      %v4387 = vpack.c.b16 %v4142, %v4141
      %v4388 = vpack.c.b16 %v4144, %v4143
      %v4389 = vpack.c.b16 %v4146, %v4145
      %v4390 = vpack.c.b16 %v4148, %v4147
      %v4391 = vpack.c.b16 %v4150, %v4149
      %v4392 = vpack.c.b16 %v4152, %v4151
      %v4393 = vpack.c.b16 %v4154, %v4153
      %v4394 = vpack.c.b16 %v4156, %v4155
      %v4395 = vpack.c.b16 %v4158, %v4157
      %v4396 = vpack.c.b16 %v4160, %v4159
      %v4397 = vpack.c.b16 %v4162, %v4161
      %v4398 = vpack.c.b16 %v4164, %v4163
      %v4399 = vpack.c.b16 %v4166, %v4165
      %v4400 = vpack.c.b16 %v4168, %v4167
      %v4401 = vpack.c.b16 %v4170, %v4169
      %v4402 = vpack.c.b16 %v4172, %v4171
      %v4403 = vpack.c.b16 %v4174, %v4173
      %v4404 = vpack.c.b16 %v4176, %v4175
      %v4405 = vpack.c.b16 %v4178, %v4177
      %v4406 = vpack.c.b16 %v4180, %v4179
      %v4407 = vpack.c.b16 %v4182, %v4181
      %v4408 = vpack.c.b16 %v4184, %v4183
      %v4409 = vpack.c.b16 %v4186, %v4185
      %v4410 = vpack.c.b16 %v4188, %v4187
      %v4411 = vpack.c.b16 %v4190, %v4189
      %v4412 = vpack.c.b16 %v4192, %v4191
      %v4413 = vpack.c.b16 %v4194, %v4193
      %v4414 = vpack.c.b16 %v4196, %v4195
      %v4415 = vpack.c.b16 %v4198, %v4197
      %v4416 = vpack.c.b16 %v4200, %v4199
      %v4417 = vpack.c.b16 %v4202, %v4201
      %v4418 = vpack.c.b16 %v4204, %v4203
      %v4419 = vpack.c.b16 %v4206, %v4205
      %v4420 = vpack.c.b16 %v4208, %v4207
      %v4421 = vpack.c.b16 %v4210, %v4209
      %v4422 = vpack.c.b16 %v4212, %v4211
      %v4423 = vpack.c.b16 %v4214, %v4213
      %v4424 = vpack.c.b16 %v4216, %v4215
      %v4425 = vpack.c.b16 %v4218, %v4217
      %v4426 = vpack.c.b16 %v4220, %v4219
      %v4427 = vpack.c.b16 %v4222, %v4221
      %v4428 = vpack.c.b16 %v4224, %v4223
      %v4429 = vpack.c.b16 %v4226, %v4225
      %v4430 = vpack.c.b16 %v4228, %v4227
      %v4431 = vpack.c.b16 %v4230, %v4229
      %v4432 = vpack.c.b16 %v4232, %v4231
      %v4433 = vpack.c.b16 %v4234, %v4233
      %v4434 = vpack.c.b16 %v4236, %v4235
      %v4435 = vpack.c.b16 %v4238, %v4237
      %v4436 = vpack.c.b16 %v4240, %v4239
      %v4437 = vpack.c.b16 %v4242, %v4241
      %v4438 = vpack.c.b16 %v4244, %v4243
      %v4439 = vpack.c.b16 %v4246, %v4245
      %v4440 = vpack.c.b16 %v4248, %v4247
      %v4441 = vpack.c.b16 %v4250, %v4249
      %v4442 = vpack.c.b16 %v4252, %v4251
      %v4443 = vpack.c.b16 %v4254, %v4253
      %v4444 = vpack.c.b16 %v4256, %v4255
      %v4445 = vpack.c.b16 %v4258, %v4257
      %v4446 = vpack.c.b16 %v4260, %v4259
      %v4447 = vpack.c.b16 %v4262, %v4261
      %v4448 = vpack.c.b16 %v4264, %v4263
      %v4449 = vpack.c.b16 %v4266, %v4265
      %v4450 = vpack.c.b16 %v4268, %v4267
      %v4451 = vpack.c.b16 %v4270, %v4269
      %v4452 = vpack.c.b16 %v4272, %v4271
      %v4453 = vpack.c.b16 %v4274, %v4273
      %v4454 = vpack.c.b16 %v4276, %v4275
      %v4455 = vpack.c.b16 %v4278, %v4277
      %v4456 = vpack.c.b16 %v4280, %v4279
      %v4457 = vpack.c.b16 %v4282, %v4281
      %v4458 = vpack.c.b16 %v4284, %v4283
      %v4459 = vpack.c.b16 %v4286, %v4285
      %v4460 = vpack.c.b16 %v4288, %v4287
      %v4461 = vpack.c.b16 %v4290, %v4289
      %v4462 = vpack.c.b16 %v4292, %v4291
      %v4463 = vpack.c.b16 %v4294, %v4293
      %v4464 = vpack.c.b16 %v4296, %v4295
      %v4465 = vpack.c.b16 %v4298, %v4297
      %v4466 = vpack.c.b16 %v4300, %v4299
      %v4467 = vpack.c.b16 %v4302, %v4301
      %v4468 = vpack.c.b16 %v4304, %v4303
      %v4469 = vpack.c.b16 %v4306, %v4305
      %v4470 = vpack.c.b16 %v4308, %v4307
      %v4471 = vpack.c.b16 %v4310, %v4309
      %v4472 = vpack.c.b16 %v4312, %v4311
      %v4473 = vpack.c.b16 %v4314, %v4313
      %v4474 = vpack.c.b16 %v4316, %v4315
      %v4475 = vpack.c.b16 %v4318, %v4317
      %v4476 = vpack.c.b16 %v4320, %v4319
      %v4477 = vpack.c.b16 %v4322, %v4321
      %v4478 = vpack.c.b16 %v4324, %v4323
      %v4479 = vpack.c.b16 %v4326, %v4325
      %v4480 = vpack.c.b16 %v4328, %v4327
      %v4481 = vpack.c.b16 %v4330, %v4329
      %v4482 = vpack.c.b16 %v4332, %v4331
      %v4483 = vpack.c.b16 %v4334, %v4333
      %v4484 = vpack.c.b16 %v4336, %v4335
      %v4485 = vpack.c.b16 %v4338, %v4337
      %v4486 = vpack.c.b16 %v4340, %v4339
      %v4487 = vpack.c.b16 %v4342, %v4341
      %v4488 = vpack.c.b16 %v4344, %v4343
      %4633 = vmatprep.subr.bf16.mxu0 0
      %4634 = vmatpush1.bf16.msra.mxu0 %v4345
      %4635 = vmatprep.subr.bf16.mxu0 0
      %4636 = vmatpush1.bf16.msra.mxu0 %v4346
      %4637 = vmatprep.subr.bf16.mxu0 0
      %4638 = vmatpush1.bf16.msra.mxu0 %v4347
      %4639 = vmatprep.subr.bf16.mxu0 0
      %4640 = vmatpush1.bf16.msra.mxu0 %v4348
      %4641 = vmatprep.subr.bf16.mxu0 0
      %4642 = vmatpush1.bf16.msra.mxu0 %v4349
      %4643 = vmatprep.subr.bf16.mxu0 0
      %4644 = vmatpush1.bf16.msra.mxu0 %v4350
      %4645 = vmatprep.subr.bf16.mxu0 0
      %4646 = vmatpush1.bf16.msra.mxu0 %v4351
      %4647 = vmatprep.subr.bf16.mxu0 0
      %4648 = vmatpush1.bf16.msra.mxu0 %v4352
      %4649 = vmatprep.subr.bf16.mxu0 0
      %4650 = vmatpush1.bf16.msra.mxu0 %v4353
      %4651 = vmatprep.subr.bf16.mxu0 0
      %4652 = vmatpush1.bf16.msra.mxu0 %v4354
      %4653 = vmatprep.subr.bf16.mxu0 0
      %4654 = vmatpush1.bf16.msra.mxu0 %v4355
      %4655 = vmatprep.subr.bf16.mxu0 0
      %4656 = vmatpush1.bf16.msra.mxu0 %v4356
      %4657 = vmatprep.subr.bf16.mxu0 0
      %4658 = vmatpush1.bf16.msra.mxu0 %v4357
      %4659 = vmatprep.subr.bf16.mxu0 0
      %4660 = vmatpush1.bf16.msra.mxu0 %v4358
      %4661 = vmatprep.subr.bf16.mxu0 0
      %4662 = vmatpush1.bf16.msra.mxu0 %v4359
      %4663 = vmatprep.subr.bf16.mxu0 0
      %4664 = vmatpush1.bf16.msra.mxu0 %v4360
      %4665 = vmatprep.mubr.bf16.mxu0 %v3464
      %4666 = vmatmul.mubr.bf16.gmra.mrb[0].mxu0 %v3463
      %v4667 = vpop.f32.mrb[0].mxu0
      %v4668 = vadd.f32 0.0, %v4667
      %v4669 = vpop.f32.mrb[0].mxu0
      %v4670 = vpop.f32.mrb[0].mxu0
      %v4671 = vadd.f32 0.0, %v4670
      %v4672 = vpop.f32.mrb[0].mxu0
      %4673 = vdwg.mxu0
      %4674 = vmatprep.subr.bf16.mxu0 0
      %4675 = vmatpush1.bf16.msra.mxu0 %v4361
      %4676 = vmatprep.subr.bf16.mxu0 0
      %4677 = vmatpush1.bf16.msra.mxu0 %v4362
      %4678 = vmatprep.subr.bf16.mxu0 0
      %4679 = vmatpush1.bf16.msra.mxu0 %v4363
      %4680 = vmatprep.subr.bf16.mxu0 0
      %4681 = vmatpush1.bf16.msra.mxu0 %v4364
      %4682 = vmatprep.subr.bf16.mxu0 0
      %4683 = vmatpush1.bf16.msra.mxu0 %v4365
      %4684 = vmatprep.subr.bf16.mxu0 0
      %4685 = vmatpush1.bf16.msra.mxu0 %v4366
      %4686 = vmatprep.subr.bf16.mxu0 0
      %4687 = vmatpush1.bf16.msra.mxu0 %v4367
      %4688 = vmatprep.subr.bf16.mxu0 0
      %4689 = vmatpush1.bf16.msra.mxu0 %v4368
      %4690 = vmatprep.subr.bf16.mxu0 0
      %4691 = vmatpush1.bf16.msra.mxu0 %v4369
      %4692 = vmatprep.subr.bf16.mxu0 0
      %4693 = vmatpush1.bf16.msra.mxu0 %v4370
      %4694 = vmatprep.subr.bf16.mxu0 0
      %4695 = vmatpush1.bf16.msra.mxu0 %v4371
      %4696 = vmatprep.subr.bf16.mxu0 0
      %4697 = vmatpush1.bf16.msra.mxu0 %v4372
      %4698 = vmatprep.subr.bf16.mxu0 0
      %4699 = vmatpush1.bf16.msra.mxu0 %v4373
      %4700 = vmatprep.subr.bf16.mxu0 0
      %4701 = vmatpush1.bf16.msra.mxu0 %v4374
      %4702 = vmatprep.subr.bf16.mxu0 0
      %4703 = vmatpush1.bf16.msra.mxu0 %v4375
      %4704 = vmatprep.subr.bf16.mxu0 0
      %4705 = vmatpush1.bf16.msra.mxu0 %v4376
      %4706 = vmatprep.mubr.bf16.mxu0 %v3466
      %4707 = vmatmul.mubr.bf16.gmra.mrb[0].mxu0 %v3465
      %v4708 = vpop.f32.mrb[0].mxu0
      %v4709 = vadd.f32 %v4668, %v4708
      %v4710 = vpop.f32.mrb[0].mxu0
      %v4711 = vpop.f32.mrb[0].mxu0
      %v4712 = vadd.f32 %v4671, %v4711
      %v4713 = vpop.f32.mrb[0].mxu0
      %4714 = vdwg.mxu0
      %4715 = vmatprep.subr.bf16.mxu0 0
      %4716 = vmatpush1.bf16.msra.mxu0 %v4377
      %4717 = vmatprep.subr.bf16.mxu0 0
      %4718 = vmatpush1.bf16.msra.mxu0 %v4378
      %4719 = vmatprep.subr.bf16.mxu0 0
      %4720 = vmatpush1.bf16.msra.mxu0 %v4379
      %4721 = vmatprep.subr.bf16.mxu0 0
      %4722 = vmatpush1.bf16.msra.mxu0 %v4380
      %4723 = vmatprep.subr.bf16.mxu0 0
      %4724 = vmatpush1.bf16.msra.mxu0 %v4381
      %4725 = vmatprep.subr.bf16.mxu0 0
      %4726 = vmatpush1.bf16.msra.mxu0 %v4382
      %4727 = vmatprep.subr.bf16.mxu0 0
      %4728 = vmatpush1.bf16.msra.mxu0 %v4383
      %4729 = vmatprep.subr.bf16.mxu0 0
      %4730 = vmatpush1.bf16.msra.mxu0 %v4384
      %4731 = vmatprep.subr.bf16.mxu0 0
      %4732 = vmatpush1.bf16.msra.mxu0 %v4385
      %4733 = vmatprep.subr.bf16.mxu0 0
      %4734 = vmatpush1.bf16.msra.mxu0 %v4386
      %4735 = vmatprep.subr.bf16.mxu0 0
      %4736 = vmatpush1.bf16.msra.mxu0 %v4387
      %4737 = vmatprep.subr.bf16.mxu0 0
      %4738 = vmatpush1.bf16.msra.mxu0 %v4388
      %4739 = vmatprep.subr.bf16.mxu0 0
      %4740 = vmatpush1.bf16.msra.mxu0 %v4389
      %4741 = vmatprep.subr.bf16.mxu0 0
      %4742 = vmatpush1.bf16.msra.mxu0 %v4390
      %4743 = vmatprep.subr.bf16.mxu0 0
      %4744 = vmatpush1.bf16.msra.mxu0 %v4391
      %4745 = vmatprep.subr.bf16.mxu0 0
      %4746 = vmatpush1.bf16.msra.mxu0 %v4392
      %4747 = vmatprep.mubr.bf16.mxu0 %v3468
      %4748 = vmatmul.mubr.bf16.gmra.mrb[0].mxu0 %v3467
      %v4749 = vpop.f32.mrb[0].mxu0
      %v4750 = vadd.f32 %v4709, %v4749
      %v4751 = vpop.f32.mrb[0].mxu0
      %v4752 = vpop.f32.mrb[0].mxu0
      %v4753 = vadd.f32 %v4712, %v4752
      %v4754 = vpop.f32.mrb[0].mxu0
      %4755 = vdwg.mxu0
      %4756 = vmatprep.subr.bf16.mxu0 0
      %4757 = vmatpush1.bf16.msra.mxu0 %v4393
      %4758 = vmatprep.subr.bf16.mxu0 0
      %4759 = vmatpush1.bf16.msra.mxu0 %v4394
      %4760 = vmatprep.subr.bf16.mxu0 0
      %4761 = vmatpush1.bf16.msra.mxu0 %v4395
      %4762 = vmatprep.subr.bf16.mxu0 0
      %4763 = vmatpush1.bf16.msra.mxu0 %v4396
      %4764 = vmatprep.subr.bf16.mxu0 0
      %4765 = vmatpush1.bf16.msra.mxu0 %v4397
      %4766 = vmatprep.subr.bf16.mxu0 0
      %4767 = vmatpush1.bf16.msra.mxu0 %v4398
      %4768 = vmatprep.subr.bf16.mxu0 0
      %4769 = vmatpush1.bf16.msra.mxu0 %v4399
      %4770 = vmatprep.subr.bf16.mxu0 0
      %4771 = vmatpush1.bf16.msra.mxu0 %v4400
      %4772 = vmatprep.subr.bf16.mxu0 0
      %4773 = vmatpush1.bf16.msra.mxu0 %v4401
      %4774 = vmatprep.subr.bf16.mxu0 0
      %4775 = vmatpush1.bf16.msra.mxu0 %v4402
      %4776 = vmatprep.subr.bf16.mxu0 0
      %4777 = vmatpush1.bf16.msra.mxu0 %v4403
      %4778 = vmatprep.subr.bf16.mxu0 0
      %4779 = vmatpush1.bf16.msra.mxu0 %v4404
      %4780 = vmatprep.subr.bf16.mxu0 0
      %4781 = vmatpush1.bf16.msra.mxu0 %v4405
      %4782 = vmatprep.subr.bf16.mxu0 0
      %4783 = vmatpush1.bf16.msra.mxu0 %v4406
      %4784 = vmatprep.subr.bf16.mxu0 0
      %4785 = vmatpush1.bf16.msra.mxu0 %v4407
      %4786 = vmatprep.subr.bf16.mxu0 0
      %4787 = vmatpush1.bf16.msra.mxu0 %v4408
      %4788 = vmatprep.mubr.bf16.mxu0 %v3470
      %4789 = vmatmul.mubr.bf16.gmra.mrb[0].mxu0 %v3469
      %v4790 = vpop.f32.mrb[0].mxu0
      %v4791 = vadd.f32 %v4750, %v4790
      %v4792 = vpop.f32.mrb[0].mxu0
      %v4793 = vpop.f32.mrb[0].mxu0
      %v4794 = vadd.f32 %v4753, %v4793
      %v4795 = vpop.f32.mrb[0].mxu0
      %4796 = vdwg.mxu0
      %4797 = vmatprep.subr.bf16.mxu0 0
      %4798 = vmatpush1.bf16.msra.mxu0 %v4409
      %4799 = vmatprep.subr.bf16.mxu0 0
      %4800 = vmatpush1.bf16.msra.mxu0 %v4410
      %4801 = vmatprep.subr.bf16.mxu0 0
      %4802 = vmatpush1.bf16.msra.mxu0 %v4411
      %4803 = vmatprep.subr.bf16.mxu0 0
      %4804 = vmatpush1.bf16.msra.mxu0 %v4412
      %4805 = vmatprep.subr.bf16.mxu0 0
      %4806 = vmatpush1.bf16.msra.mxu0 %v4413
      %4807 = vmatprep.subr.bf16.mxu0 0
      %4808 = vmatpush1.bf16.msra.mxu0 %v4414
      %4809 = vmatprep.subr.bf16.mxu0 0
      %4810 = vmatpush1.bf16.msra.mxu0 %v4415
      %4811 = vmatprep.subr.bf16.mxu0 0
      %4812 = vmatpush1.bf16.msra.mxu0 %v4416
      %4813 = vmatprep.subr.bf16.mxu0 0
      %4814 = vmatpush1.bf16.msra.mxu0 %v4417
      %4815 = vmatprep.subr.bf16.mxu0 0
      %4816 = vmatpush1.bf16.msra.mxu0 %v4418
      %4817 = vmatprep.subr.bf16.mxu0 0
      %4818 = vmatpush1.bf16.msra.mxu0 %v4419
      %4819 = vmatprep.subr.bf16.mxu0 0
      %4820 = vmatpush1.bf16.msra.mxu0 %v4420
      %4821 = vmatprep.subr.bf16.mxu0 0
      %4822 = vmatpush1.bf16.msra.mxu0 %v4421
      %4823 = vmatprep.subr.bf16.mxu0 0
      %4824 = vmatpush1.bf16.msra.mxu0 %v4422
      %4825 = vmatprep.subr.bf16.mxu0 0
      %4826 = vmatpush1.bf16.msra.mxu0 %v4423
      %4827 = vmatprep.subr.bf16.mxu0 0
      %4828 = vmatpush1.bf16.msra.mxu0 %v4424
      %4829 = vmatprep.mubr.bf16.mxu0 %v3472
      %4830 = vmatmul.mubr.bf16.gmra.mrb[0].mxu0 %v3471
      %v4831 = vpop.f32.mrb[0].mxu0
      %v4832 = vadd.f32 %v4791, %v4831
      %v4833 = vpop.f32.mrb[0].mxu0
      %v4834 = vpop.f32.mrb[0].mxu0
      %v4835 = vadd.f32 %v4794, %v4834
      %v4836 = vpop.f32.mrb[0].mxu0
      %4837 = vdwg.mxu0
      %4838 = vmatprep.subr.bf16.mxu0 0
      %4839 = vmatpush1.bf16.msra.mxu0 %v4425
      %4840 = vmatprep.subr.bf16.mxu0 0
      %4841 = vmatpush1.bf16.msra.mxu0 %v4426
      %4842 = vmatprep.subr.bf16.mxu0 0
      %4843 = vmatpush1.bf16.msra.mxu0 %v4427
      %4844 = vmatprep.subr.bf16.mxu0 0
      %4845 = vmatpush1.bf16.msra.mxu0 %v4428
      %4846 = vmatprep.subr.bf16.mxu0 0
      %4847 = vmatpush1.bf16.msra.mxu0 %v4429
      %4848 = vmatprep.subr.bf16.mxu0 0
      %4849 = vmatpush1.bf16.msra.mxu0 %v4430
      %4850 = vmatprep.subr.bf16.mxu0 0
      %4851 = vmatpush1.bf16.msra.mxu0 %v4431
      %4852 = vmatprep.subr.bf16.mxu0 0
      %4853 = vmatpush1.bf16.msra.mxu0 %v4432
      %4854 = vmatprep.subr.bf16.mxu0 0
      %4855 = vmatpush1.bf16.msra.mxu0 %v4433
      %4856 = vmatprep.subr.bf16.mxu0 0
      %4857 = vmatpush1.bf16.msra.mxu0 %v4434
      %4858 = vmatprep.subr.bf16.mxu0 0
      %4859 = vmatpush1.bf16.msra.mxu0 %v4435
      %4860 = vmatprep.subr.bf16.mxu0 0
      %4861 = vmatpush1.bf16.msra.mxu0 %v4436
      %4862 = vmatprep.subr.bf16.mxu0 0
      %4863 = vmatpush1.bf16.msra.mxu0 %v4437
      %4864 = vmatprep.subr.bf16.mxu0 0
      %4865 = vmatpush1.bf16.msra.mxu0 %v4438
      %4866 = vmatprep.subr.bf16.mxu0 0
      %4867 = vmatpush1.bf16.msra.mxu0 %v4439
      %4868 = vmatprep.subr.bf16.mxu0 0
      %4869 = vmatpush1.bf16.msra.mxu0 %v4440
      %4870 = vmatprep.mubr.bf16.mxu0 %v3474
      %4871 = vmatmul.mubr.bf16.gmra.mrb[0].mxu0 %v3473
      %v4872 = vpop.f32.mrb[0].mxu0
      %v4873 = vadd.f32 %v4832, %v4872
      %v4874 = vpop.f32.mrb[0].mxu0
      %v4875 = vpop.f32.mrb[0].mxu0
      %v4876 = vadd.f32 %v4835, %v4875
      %v4877 = vpop.f32.mrb[0].mxu0
      %4878 = vdwg.mxu0
      %4879 = vmatprep.subr.bf16.mxu0 0
      %4880 = vmatpush1.bf16.msra.mxu0 %v4441
      %4881 = vmatprep.subr.bf16.mxu0 0
      %4882 = vmatpush1.bf16.msra.mxu0 %v4442
      %4883 = vmatprep.subr.bf16.mxu0 0
      %4884 = vmatpush1.bf16.msra.mxu0 %v4443
      %4885 = vmatprep.subr.bf16.mxu0 0
      %4886 = vmatpush1.bf16.msra.mxu0 %v4444
      %4887 = vmatprep.subr.bf16.mxu0 0
      %4888 = vmatpush1.bf16.msra.mxu0 %v4445
      %4889 = vmatprep.subr.bf16.mxu0 0
      %4890 = vmatpush1.bf16.msra.mxu0 %v4446
      %4891 = vmatprep.subr.bf16.mxu0 0
      %4892 = vmatpush1.bf16.msra.mxu0 %v4447
      %4893 = vmatprep.subr.bf16.mxu0 0
      %4894 = vmatpush1.bf16.msra.mxu0 %v4448
      %4895 = vmatprep.subr.bf16.mxu0 0
      %4896 = vmatpush1.bf16.msra.mxu0 %v4449
      %4897 = vmatprep.subr.bf16.mxu0 0
      %4898 = vmatpush1.bf16.msra.mxu0 %v4450
      %4899 = vmatprep.subr.bf16.mxu0 0
      %4900 = vmatpush1.bf16.msra.mxu0 %v4451
      %4901 = vmatprep.subr.bf16.mxu0 0
      %4902 = vmatpush1.bf16.msra.mxu0 %v4452
      %4903 = vmatprep.subr.bf16.mxu0 0
      %4904 = vmatpush1.bf16.msra.mxu0 %v4453
      %4905 = vmatprep.subr.bf16.mxu0 0
      %4906 = vmatpush1.bf16.msra.mxu0 %v4454
      %4907 = vmatprep.subr.bf16.mxu0 0
      %4908 = vmatpush1.bf16.msra.mxu0 %v4455
      %4909 = vmatprep.subr.bf16.mxu0 0
      %4910 = vmatpush1.bf16.msra.mxu0 %v4456
      %4911 = vmatprep.mubr.bf16.mxu0 %v3476
      %4912 = vmatmul.mubr.bf16.gmra.mrb[0].mxu0 %v3475
      %v4913 = vpop.f32.mrb[0].mxu0
      %v4914 = vadd.f32 %v4873, %v4913
      %v4915 = vpop.f32.mrb[0].mxu0
      %v4916 = vpop.f32.mrb[0].mxu0
      %v4917 = vadd.f32 %v4876, %v4916
      %v4918 = vpop.f32.mrb[0].mxu0
      %4919 = vdwg.mxu0
      %4920 = vmatprep.subr.bf16.mxu0 0
      %4921 = vmatpush1.bf16.msra.mxu0 %v4457
      %4922 = vmatprep.subr.bf16.mxu0 0
      %4923 = vmatpush1.bf16.msra.mxu0 %v4458
      %4924 = vmatprep.subr.bf16.mxu0 0
      %4925 = vmatpush1.bf16.msra.mxu0 %v4459
      %4926 = vmatprep.subr.bf16.mxu0 0
      %4927 = vmatpush1.bf16.msra.mxu0 %v4460
      %4928 = vmatprep.subr.bf16.mxu0 0
      %4929 = vmatpush1.bf16.msra.mxu0 %v4461
      %4930 = vmatprep.subr.bf16.mxu0 0
      %4931 = vmatpush1.bf16.msra.mxu0 %v4462
      %4932 = vmatprep.subr.bf16.mxu0 0
      %4933 = vmatpush1.bf16.msra.mxu0 %v4463
      %4934 = vmatprep.subr.bf16.mxu0 0
      %4935 = vmatpush1.bf16.msra.mxu0 %v4464
      %4936 = vmatprep.subr.bf16.mxu0 0
      %4937 = vmatpush1.bf16.msra.mxu0 %v4465
      %4938 = vmatprep.subr.bf16.mxu0 0
      %4939 = vmatpush1.bf16.msra.mxu0 %v4466
      %4940 = vmatprep.subr.bf16.mxu0 0
      %4941 = vmatpush1.bf16.msra.mxu0 %v4467
      %4942 = vmatprep.subr.bf16.mxu0 0
      %4943 = vmatpush1.bf16.msra.mxu0 %v4468
      %4944 = vmatprep.subr.bf16.mxu0 0
      %4945 = vmatpush1.bf16.msra.mxu0 %v4469
      %4946 = vmatprep.subr.bf16.mxu0 0
      %4947 = vmatpush1.bf16.msra.mxu0 %v4470
      %4948 = vmatprep.subr.bf16.mxu0 0
      %4949 = vmatpush1.bf16.msra.mxu0 %v4471
      %4950 = vmatprep.subr.bf16.mxu0 0
      %4951 = vmatpush1.bf16.msra.mxu0 %v4472
      %4952 = vmatprep.mubr.bf16.mxu0 %v3478
      %4953 = vmatmul.mubr.bf16.gmra.mrb[0].mxu0 %v3477
      %v4954 = vpop.f32.mrb[0].mxu0
      %v4955 = vadd.f32 %v4914, %v4954
      %v4956 = vpop.f32.mrb[0].mxu0
      %v4957 = vpop.f32.mrb[0].mxu0
      %v4958 = vadd.f32 %v4917, %v4957
      %v4959 = vpop.f32.mrb[0].mxu0
      %4960 = vdwg.mxu0
      %4961 = vmatprep.subr.bf16.mxu0 0
      %4962 = vmatpush1.bf16.msra.mxu0 %v4473
      %4963 = vmatprep.subr.bf16.mxu0 0
      %4964 = vmatpush1.bf16.msra.mxu0 %v4474
      %4965 = vmatprep.subr.bf16.mxu0 0
      %4966 = vmatpush1.bf16.msra.mxu0 %v4475
      %4967 = vmatprep.subr.bf16.mxu0 0
      %4968 = vmatpush1.bf16.msra.mxu0 %v4476
      %4969 = vmatprep.subr.bf16.mxu0 0
      %4970 = vmatpush1.bf16.msra.mxu0 %v4477
      %4971 = vmatprep.subr.bf16.mxu0 0
      %4972 = vmatpush1.bf16.msra.mxu0 %v4478
      %4973 = vmatprep.subr.bf16.mxu0 0
      %4974 = vmatpush1.bf16.msra.mxu0 %v4479
      %4975 = vmatprep.subr.bf16.mxu0 0
      %4976 = vmatpush1.bf16.msra.mxu0 %v4480
      %4977 = vmatprep.subr.bf16.mxu0 0
      %4978 = vmatpush1.bf16.msra.mxu0 %v4481
      %4979 = vmatprep.subr.bf16.mxu0 0
      %4980 = vmatpush1.bf16.msra.mxu0 %v4482
      %4981 = vmatprep.subr.bf16.mxu0 0
      %4982 = vmatpush1.bf16.msra.mxu0 %v4483
      %4983 = vmatprep.subr.bf16.mxu0 0
      %4984 = vmatpush1.bf16.msra.mxu0 %v4484
      %4985 = vmatprep.subr.bf16.mxu0 0
      %4986 = vmatpush1.bf16.msra.mxu0 %v4485
      %4987 = vmatprep.subr.bf16.mxu0 0
      %4988 = vmatpush1.bf16.msra.mxu0 %v4486
      %4989 = vmatprep.subr.bf16.mxu0 0
      %4990 = vmatpush1.bf16.msra.mxu0 %v4487
      %4991 = vmatprep.subr.bf16.mxu0 0
      %4992 = vmatpush1.bf16.msra.mxu0 %v4488
      %4993 = vmatprep.mubr.bf16.mxu0 %v3480
      %4994 = vmatmul.mubr.bf16.gmra.mrb[0].mxu0 %v3479
      %v4995 = vpop.f32.mrb[0].mxu0
      %v4996 = vadd.f32 %v4955, %v4995
      %v4997 = vpop.f32.mrb[0].mxu0
      %v4998 = vpop.f32.mrb[0].mxu0
      %v4999 = vadd.f32 %v4958, %v4998
      %v5000 = vpop.f32.mrb[0].mxu0
      %5001 = vdwg.mxu0
      %v5002 = vld [vmem:[%s4] sm:$0xff]
      %v5003 = vld [vmem:[%s4 + $0x8] sm:$0xff]
      %v5004 = vld [vmem:[%s5] sm:$0xff]
      %v5005 = vld [vmem:[%s5 + $0x8] sm:$0xff]
      %v5006 = vmul.f32 %v4996, %v5004
      %v5007 = vmul.f32 %v4999, %v5005
      %v5008 = vadd.f32 %v5002, %v5006
      %v5009 = vadd.f32 %v5003, %v5007
      %v5010 = vld [vmem:[%s6] sm:$0xff]
      %v5011 = vld [vmem:[%s6 + $0x8] sm:$0xff]
      %v5012 = vld [vmem:[%s7] sm:$0x1]
      %v5014 = vlaneseq
      %v5015 = vshrl.u32 %v5014, 7
      %v5016 = vsub.s32 0, %v5015
      %v5017 = vrot.slane %v5012, %v5016
      %v5019 = vmul.f32 %v4996, %v5017
      %v5020 = vmul.f32 %v4999, %v5017
      %v5021 = vmul.f32 %v5019, 1.442695
      %v5022 = vpow.pop %v5021
      %v5023 = vmul.f32 %v5020, 1.442695
      %v5024 = vpow.pop %v5023
      %v5025 = vmul.f32 %v5010, %v5022
      %v5026 = vmul.f32 %v5011, %v5024
      %v5027 = vadd.f32 %v5008, %v5025
      %v5028 = vadd.f32 %v5009, %v5026
      %5029 = vst [vmem:[%s305] sm:$0xff] %v5027
      %5030 = vst [vmem:[%s305 + $0x8] sm:$0xff] %v5028
      %p5031 = scmp.lt.s32.totalorder %s19, 1
      %s5032 = scalar_select %p5031, %s19, 1
      %s5033 = smul.addr %s5032, 2
      %s5034 = smul.addr %s5033, 8
      %s5035 = scalar_lea.vmem %s8, %s5034
      // Predicated region
      $region53: #{_forward.1} parent=51 // pred_check
        %p5036 = pneg %p210
      $region54: #{_forward.1} parent=51 // pred_check_branch
        %5038 = sbr.rel (%p5036) target = $region56
      $region55: #{_forward.1} parent=51 // pred_region
        _
      $region56: #{_forward.1} parent=51 // pred_fallthru
        _
    $region52: #{_forward.1} parent=5 // pred_fallthru
      _
    %p5039 = scmp.le.s32.totalorder 2, %s14
    // Predicated region
    $region57: #{_forward.1} parent=5 // pred_check
      %p5040 = pneg %p5039
    $region58: #{_forward.1} parent=5 // pred_check_branch
      %5042 = sbr.rel (%p5040) target = $region60
    $region59: #{_forward.1} parent=5 // pred_region
      %s5043 = ssub.s32 %s14, 2
      // Predicated region
      $region61: #{_forward.1} parent=59 // pred_check
        %p5044 = pneg %p216
      $region62: #{_forward.1} parent=59 // pred_check_branch
        %5046 = sbr.rel (%p5044) target = $region64
      $region63: #{_forward.1} parent=59 // pred_region
        %p5047 = scmp.lt.s32.totalorder %s20, 1
        %s5048 = scalar_select %p5047, %s20, 1
        %s5049 = smul.addr %s5048, 2
        %s5050 = smul.addr %s5049, 8
        %s5051 = scalar_lea.vmem %s8, %s5050
      $region64: #{_forward.1} parent=59 // pred_fallthru
        _
    $region60: #{_forward.1} parent=5 // pred_fallthru
      _
  $region6: #{_forward.1} parent=0 // loop_footer
    %s18 = sadd.s32 1, %s14
  $region7: #{_forward.1} parent=0 // loop_footer_branch
    %13 = sbr.rel target = $region3
  $region8: #{_forward.1} parent=0 // loop_exit
    _

</llo_original>
